<compile_context>
chip_gen: v5e
topology: v5e:2x2
jax: 0.10.0
libtpu: 0.0.40
codegen_flags: <defaults>
</compile_context>

<pallas_src>
import functools
import math

import jax
import jax.numpy as jnp
from jax.experimental import pallas as pl
from jax.experimental.pallas import tpu as pltpu


def _mha_dense_kernel(q_ref, k_ref, v_ref, nmask_ref,
                      wq_ref, bq_ref, wk_ref, bk_ref, wv_ref, bv_ref,
                      wo_ref, bo_ref, wd_ref, bd_ref, bns_ref, bnb_ref,
                      o_ref, *, num_heads):
    TB, L, E = q_ref.shape
    S = k_ref.shape[1]
    H = num_heads
    hd = E // H
    bf16 = jnp.bfloat16

    # ---- fused in-projections: large-M bf16 MXU matmuls, f32 accumulation ----
    q2 = q_ref[...].reshape(TB * L, E)          # bf16
    k2 = k_ref[...].reshape(TB * S, E)
    v2 = v_ref[...].reshape(TB * S, E)

    # 1/sqrt(hd) is already folded into wq_ref / bq_ref by the wrapper.
    qp = jnp.dot(q2, wq_ref[...], preferred_element_type=jnp.float32) + bq_ref[...]
    kp = jnp.dot(k2, wk_ref[...], preferred_element_type=jnp.float32) + bk_ref[...]
    vp = jnp.dot(v2, wv_ref[...], preferred_element_type=jnp.float32) + bv_ref[...]

    qp3 = qp.astype(bf16).reshape(TB, L, E)
    kp3 = kp.astype(bf16).reshape(TB, S, E)
    vp3 = vp.astype(bf16).reshape(TB, S, E)

    # ---- head-batched attention: single leading batch dim g = h*TB + b ----
    qh = jnp.concatenate([qp3[:, :, h * hd:(h + 1) * hd] for h in range(H)], axis=0)
    kh = jnp.concatenate([kp3[:, :, h * hd:(h + 1) * hd] for h in range(H)], axis=0)
    vh = jnp.concatenate([vp3[:, :, h * hd:(h + 1) * hd] for h in range(H)], axis=0)

    s = jnp.einsum('gld,gsd->gls', qh, kh,
                   preferred_element_type=jnp.float32)           # (H*TB, L, S) f32
    s = s.reshape(H, TB, L, S) + nmask_ref[...][None, :, :, :]   # additive mask, f32
    mx = jnp.max(s, axis=-1, keepdims=True)
    e = jnp.exp(s - mx)
    denom = jnp.sum(e, axis=-1, keepdims=True)
    p = e * pl.reciprocal(denom, approx=True)                    # EUP vrcp
    p = p.astype(bf16).reshape(H * TB, L, S)

    ctx = jnp.einsum('gls,gsd->gld', p, vh,
                     preferred_element_type=jnp.float32)         # (H*TB, L, hd) f32
    ctx = ctx.reshape(H, TB, L, hd)
    ctx = jnp.concatenate([ctx[h] for h in range(H)], axis=-1)   # (TB, L, E)
    ctx = ctx.reshape(TB * L, E).astype(bf16)

    # ---- MHA out-projection + Dense: Linear -> Mish -> folded BatchNorm ----
    attn_out = (jnp.dot(ctx, wo_ref[...], preferred_element_type=jnp.float32)
                + bo_ref[...])
    z = (jnp.dot(attn_out.astype(bf16), wd_ref[...],
                 preferred_element_type=jnp.float32) + bd_ref[...])
    # Mish(z) = z * tanh(softplus(z)) == z * t(t+2) / (t(t+2)+2), t = exp(z).
    t = jnp.exp(jnp.minimum(z, 20.0))
    u = t * (t + 2.0)
    mish = jnp.where(z > 20.0, z, z * u * pl.reciprocal(u + 2.0, approx=True))
    y = mish * bns_ref[...] + bnb_ref[...]           # eval-mode BatchNorm1d
    # TODO(synk): training-mode dropout / BatchNorm batch-statistics update are
    # not implemented (inference: dropout = identity, BN uses running stats).

    o_ref[...] = y.reshape(TB, L, E).astype(o_ref.dtype)


def mha_dense_forward(q, k, v, mask,
                      wq, bq, wk, bk, wv, bv, wo, bo, wd, bd,
                      bn_gamma, bn_beta, bn_mean, bn_var,
                      *, num_heads, bn_eps=1e-5, batch_block=2):
    """q: [L, N, E], k/v: [S, N, E], mask: [N, S] (True == pad). Returns [N, L, E]."""
    L, N, E = q.shape
    S = k.shape[0]
    assert E % num_heads == 0
    hd = E // num_heads
    TB = batch_block
    assert N % TB == 0

    f32 = jnp.float32
    bf16 = jnp.bfloat16

    # Batch-major bf16 slabs: each grid step DMAs one contiguous (TB, L/S, E) slab
    # (bf16 halves DMA bytes / VMEM; matmuls accumulate in f32 in-kernel).
    qb = jnp.transpose(q, (1, 0, 2)).astype(bf16)
    kb = jnp.transpose(k, (1, 0, 2)).astype(bf16)
    vb = jnp.transpose(v, (1, 0, 2)).astype(bf16)

    # key_padding_mask -> f32 additive bias; the module forces mask[:, 0] = False.
    if mask is None:
        nmask = jnp.zeros((N, 1, S), f32)
    else:
        m = mask.astype(bool).at[:, 0].set(False)
        nmask = jnp.where(m, f32(-1e30), f32(0.0))[:, None, :]

    # nn.Linear does x @ W.T + b; pre-transpose once and fold 1/sqrt(hd) into q-proj.
    scale = 1.0 / math.sqrt(hd)
    wqT = (wq.T * scale).astype(bf16)
    wkT, wvT, woT, wdT = (w.T.astype(bf16) for w in (wk, wv, wo, wd))
    bq2 = (bq * scale).reshape(1, E).astype(f32)
    bk2, bv2, bo2, bd2 = (bb.reshape(1, E).astype(f32) for bb in (bk, bv, bo, bd))
    # Fold eval-mode BatchNorm1d into per-feature scale/shift (f32).
    bn_s = (bn_gamma / jnp.sqrt(bn_var + bn_eps)).astype(f32)
    bn_b = (bn_beta - bn_mean * bn_s).astype(f32)
    bn_s2, bn_b2 = bn_s.reshape(1, E), bn_b.reshape(1, E)

    kern = functools.partial(_mha_dense_kernel, num_heads=num_heads)

    wspec = pl.BlockSpec((E, E), lambda i: (0, 0))
    bspec = pl.BlockSpec((1, E), lambda i: (0, 0))

    out = pl.pallas_call(
        kern,
        out_shape=jax.ShapeDtypeStruct((N, L, E), f32),
        grid_spec=pltpu.PrefetchScalarGridSpec(
            num_scalar_prefetch=0,
            grid=(N // TB,),
            in_specs=[
                pl.BlockSpec((TB, L, E), lambda i: (i, 0, 0)),
                pl.BlockSpec((TB, S, E), lambda i: (i, 0, 0)),
                pl.BlockSpec((TB, S, E), lambda i: (i, 0, 0)),
                pl.BlockSpec((TB, 1, S), lambda i: (i, 0, 0)),
                wspec, bspec, wspec, bspec, wspec, bspec,
                wspec, bspec, wspec, bspec, bspec, bspec,
            ],
            out_specs=pl.BlockSpec((TB, L, E), lambda i: (i, 0, 0)),
        ),
        compiler_params=pltpu.CompilerParams(
            dimension_semantics=("parallel",),
            vmem_limit_bytes=32 * 1024 * 1024,
        ),
    )(qb, kb, vb, nmask,
      wqT, bq2, wkT, bk2, wvT, bv2, woT, bo2, wdT, bd2, bn_s2, bn_b2)

    return out  # [N, L, E] == attn_output.transpose(0, 1)


def ref_mha_dense(q, k, v, mask,
                  wq, bq, wk, bk, wv, bv, wo, bo, wd, bd,
                  bn_gamma, bn_beta, bn_mean, bn_var,
                  *, num_heads, bn_eps=1e-5):
    """Pure-JAX f32 reference mirroring the PyTorch forward (eval mode)."""
    L, N, E = q.shape
    S = k.shape[0]
    H = num_heads
    hd = E // H

    m = mask.astype(bool).at[:, 0].set(False)

    qp = (q @ wq.T + bq) * (1.0 / math.sqrt(hd))    # [L, N, E]
    kp = k @ wk.T + bk                              # [S, N, E]
    vp = v @ wv.T + bv

    qh = qp.reshape(L, N, H, hd)
    kh = kp.reshape(S, N, H, hd)
    vh = vp.reshape(S, N, H, hd)
    scores = jnp.einsum('lnhd,snhd->nhls', qh, kh)
    scores = scores + jnp.where(m, -1e30, 0.0)[:, None, None, :]
    p = jax.nn.softmax(scores, axis=-1)
    ctx = jnp.einsum('nhls,snhd->nlhd', p, vh).reshape(N, L, E)

    attn_out = ctx @ wo.T + bo
    z = attn_out @ wd.T + bd
    softplus = jnp.maximum(z, 0.0) + jnp.log(1.0 + jnp.exp(-jnp.abs(z)))
    y = z * jnp.tanh(softplus)                      # Mish
    y = (y - bn_mean) / jnp.sqrt(bn_var + bn_eps) * bn_gamma + bn_beta
    return y                                        # [N, L, E]


if __name__ == "__main__":
    # model_dim=256, num_heads=8 (module defaults); small seq, N=16 so the
    # grid has 8 pipelined steps with batch_block=2.
    L, S, N, E, H = 8, 16, 16, 256, 8

    key = jax.random.PRNGKey(0)
    k_q, k_k, k_v, k_m, k_w, k_b, k_bn = jax.random.split(key, 7)

    q = jax.random.normal(k_q, (L, N, E), dtype=jnp.float32)
    k = jax.random.normal(k_k, (S, N, E), dtype=jnp.float32)
    v = jax.random.normal(k_v, (S, N, E), dtype=jnp.float32)

    mask = jax.random.bernoulli(k_m, p=0.3, shape=(N, S))
    mask = mask.at[1, :].set(True)   # fully-masked row; module unmasks position 0

    wq, wk, wv, wo, wd = (0.05 * jax.random.normal(x, (E, E), dtype=jnp.float32)
                          for x in jax.random.split(k_w, 5))
    bq, bk, bv, bo, bd = (0.05 * jax.random.normal(x, (E,), dtype=jnp.float32)
                          for x in jax.random.split(k_b, 5))

    kg, kbt, kmu, kvr = jax.random.split(k_bn, 4)
    bn_gamma = 1.0 + 0.1 * jax.random.normal(kg, (E,), dtype=jnp.float32)
    bn_beta = 0.1 * jax.random.normal(kbt, (E,), dtype=jnp.float32)
    bn_mean = 0.1 * jax.random.normal(kmu, (E,), dtype=jnp.float32)
    bn_var = jax.random.uniform(kvr, (E,), minval=0.5, maxval=1.5, dtype=jnp.float32)

    out = mha_dense_forward(q, k, v, mask,
                            wq, bq, wk, bk, wv, bv, wo, bo, wd, bd,
                            bn_gamma, bn_beta, bn_mean, bn_var,
                            num_heads=H, batch_block=2)   # grid = N/TB = 8 steps
    out = jax.block_until_ready(out)

    ref = ref_mha_dense(q, k, v, mask,
                        wq, bq, wk, bk, wv, bv, wo, bo, wd, bd,
                        bn_gamma, bn_beta, bn_mean, bn_var, num_heads=H)

    assert out.shape == (N, L, E), out.shape
    # bf16 matmul operands + approx-reciprocal EUP paths vs an all-f32 reference:
    # expected max deviation ~1e-2; assert with headroom.
    max_err = float(jnp.max(jnp.abs(out - ref)))
    assert jnp.allclose(out, ref, atol=5e-2, rtol=5e-2), max_err
    print("KERNEL_OK")
</pallas_src>

<mosaic_0001>
module attributes {stable_mosaic.version = 11 : i64} {
  func.func @_mha_dense_kernel(%arg0: i32, %arg1: memref<2x8x256xbf16, #tpu.memory_space<vmem>>, %arg2: memref<2x16x256xbf16, #tpu.memory_space<vmem>>, %arg3: memref<2x16x256xbf16, #tpu.memory_space<vmem>>, %arg4: memref<2x1x16xf32, #tpu.memory_space<vmem>>, %arg5: memref<256x256xbf16, #tpu.memory_space<vmem>>, %arg6: memref<1x256xf32, #tpu.memory_space<vmem>>, %arg7: memref<256x256xbf16, #tpu.memory_space<vmem>>, %arg8: memref<1x256xf32, #tpu.memory_space<vmem>>, %arg9: memref<256x256xbf16, #tpu.memory_space<vmem>>, %arg10: memref<1x256xf32, #tpu.memory_space<vmem>>, %arg11: memref<256x256xbf16, #tpu.memory_space<vmem>>, %arg12: memref<1x256xf32, #tpu.memory_space<vmem>>, %arg13: memref<256x256xbf16, #tpu.memory_space<vmem>>, %arg14: memref<1x256xf32, #tpu.memory_space<vmem>>, %arg15: memref<1x256xf32, #tpu.memory_space<vmem>>, %arg16: memref<1x256xf32, #tpu.memory_space<vmem>>, %arg17: memref<2x8x256xf32, #tpu.memory_space<vmem>>) attributes {dimension_semantics = [#tpu.dimension_semantics<parallel>], iteration_bounds = array<i64: 8>, scalar_prefetch = 0 : i64, scratch_operands = 0 : i64, tpu.core_type = #tpu.core_type<tc>, window_params = [{transform_indices = @transform_0, window_bounds = array<i64: 2, 8, 256>}, {transform_indices = @transform_1, window_bounds = array<i64: 2, 16, 256>}, {transform_indices = @transform_2, window_bounds = array<i64: 2, 16, 256>}, {transform_indices = @transform_3, window_bounds = array<i64: 2, 1, 16>}, {pipeline_mode = #tpu.pipeline_mode<synchronous>, transform_indices = @transform_4, window_bounds = array<i64: 256, 256>}, {pipeline_mode = #tpu.pipeline_mode<synchronous>, transform_indices = @transform_5, window_bounds = array<i64: 1, 256>}, {pipeline_mode = #tpu.pipeline_mode<synchronous>, transform_indices = @transform_6, window_bounds = array<i64: 256, 256>}, {pipeline_mode = #tpu.pipeline_mode<synchronous>, transform_indices = @transform_7, window_bounds = array<i64: 1, 256>}, {pipeline_mode = #tpu.pipeline_mode<synchronous>, transform_indices = @transform_8, window_bounds = array<i64: 256, 256>}, {pipeline_mode = #tpu.pipeline_mode<synchronous>, transform_indices = @transform_9, window_bounds = array<i64: 1, 256>}, {pipeline_mode = #tpu.pipeline_mode<synchronous>, transform_indices = @transform_10, window_bounds = array<i64: 256, 256>}, {pipeline_mode = #tpu.pipeline_mode<synchronous>, transform_indices = @transform_11, window_bounds = array<i64: 1, 256>}, {pipeline_mode = #tpu.pipeline_mode<synchronous>, transform_indices = @transform_12, window_bounds = array<i64: 256, 256>}, {pipeline_mode = #tpu.pipeline_mode<synchronous>, transform_indices = @transform_13, window_bounds = array<i64: 1, 256>}, {pipeline_mode = #tpu.pipeline_mode<synchronous>, transform_indices = @transform_14, window_bounds = array<i64: 1, 256>}, {pipeline_mode = #tpu.pipeline_mode<synchronous>, transform_indices = @transform_15, window_bounds = array<i64: 1, 256>}, {transform_indices = @transform_16, window_bounds = array<i64: 2, 8, 256>}]} {
    %c0 = arith.constant 0 : index
    %c0_0 = arith.constant 0 : index
    %c0_1 = arith.constant 0 : index
    %0 = vector.load %arg1[%c0, %c0_0, %c0_1] : memref<2x8x256xbf16, #tpu.memory_space<vmem>>, vector<2x8x256xbf16>
    %1 = vector.shape_cast %0 : vector<2x8x256xbf16> to vector<16x256xbf16>
    %c0_2 = arith.constant 0 : index
    %c0_3 = arith.constant 0 : index
    %c0_4 = arith.constant 0 : index
    %2 = vector.load %arg2[%c0_2, %c0_3, %c0_4] : memref<2x16x256xbf16, #tpu.memory_space<vmem>>, vector<2x16x256xbf16>
    %3 = vector.shape_cast %2 : vector<2x16x256xbf16> to vector<32x256xbf16>
    %c0_5 = arith.constant 0 : index
    %c0_6 = arith.constant 0 : index
    %c0_7 = arith.constant 0 : index
    %4 = vector.load %arg3[%c0_5, %c0_6, %c0_7] : memref<2x16x256xbf16, #tpu.memory_space<vmem>>, vector<2x16x256xbf16>
    %5 = vector.shape_cast %4 : vector<2x16x256xbf16> to vector<32x256xbf16>
    %c0_8 = arith.constant 0 : index
    %c0_9 = arith.constant 0 : index
    %6 = vector.load %arg5[%c0_8, %c0_9] : memref<256x256xbf16, #tpu.memory_space<vmem>>, vector<256x256xbf16>
    %cst = arith.constant dense<0.000000e+00> : vector<16x256xf32>
    %7 = tpu.matmul %1, %6, %cst {dimension_numbers = #tpu.dot_dimension_numbers<[1], [0], [0], [1], [0, 0, 1, 1], [], []>} : vector<16x256xbf16>, vector<256x256xbf16>, vector<16x256xf32> -> vector<16x256xf32>
    %c0_10 = arith.constant 0 : index
    %c0_11 = arith.constant 0 : index
    %8 = vector.load %arg6[%c0_10, %c0_11] : memref<1x256xf32, #tpu.memory_space<vmem>>, vector<1x256xf32>
    %9 = vector.broadcast %8 : vector<1x256xf32> to vector<16x256xf32>
    %10 = arith.addf %7, %9 : vector<16x256xf32>
    %c0_12 = arith.constant 0 : index
    %c0_13 = arith.constant 0 : index
    %11 = vector.load %arg7[%c0_12, %c0_13] : memref<256x256xbf16, #tpu.memory_space<vmem>>, vector<256x256xbf16>
    %cst_14 = arith.constant dense<0.000000e+00> : vector<32x256xf32>
    %12 = tpu.matmul %3, %11, %cst_14 {dimension_numbers = #tpu.dot_dimension_numbers<[1], [0], [0], [1], [0, 0, 1, 1], [], []>} : vector<32x256xbf16>, vector<256x256xbf16>, vector<32x256xf32> -> vector<32x256xf32>
    %c0_15 = arith.constant 0 : index
    %c0_16 = arith.constant 0 : index
    %13 = vector.load %arg8[%c0_15, %c0_16] : memref<1x256xf32, #tpu.memory_space<vmem>>, vector<1x256xf32>
    %14 = vector.broadcast %13 : vector<1x256xf32> to vector<32x256xf32>
    %15 = arith.addf %12, %14 : vector<32x256xf32>
    %c0_17 = arith.constant 0 : index
    %c0_18 = arith.constant 0 : index
    %16 = vector.load %arg9[%c0_17, %c0_18] : memref<256x256xbf16, #tpu.memory_space<vmem>>, vector<256x256xbf16>
    %cst_19 = arith.constant dense<0.000000e+00> : vector<32x256xf32>
    %17 = tpu.matmul %5, %16, %cst_19 {dimension_numbers = #tpu.dot_dimension_numbers<[1], [0], [0], [1], [0, 0, 1, 1], [], []>} : vector<32x256xbf16>, vector<256x256xbf16>, vector<32x256xf32> -> vector<32x256xf32>
    %c0_20 = arith.constant 0 : index
    %c0_21 = arith.constant 0 : index
    %18 = vector.load %arg10[%c0_20, %c0_21] : memref<1x256xf32, #tpu.memory_space<vmem>>, vector<1x256xf32>
    %19 = vector.broadcast %18 : vector<1x256xf32> to vector<32x256xf32>
    %20 = arith.addf %17, %19 : vector<32x256xf32>
    %21 = arith.truncf %10 : vector<16x256xf32> to vector<16x256xbf16>
    %22 = vector.shape_cast %21 : vector<16x256xbf16> to vector<2x8x256xbf16>
    %23 = arith.truncf %15 : vector<32x256xf32> to vector<32x256xbf16>
    %24 = vector.shape_cast %23 : vector<32x256xbf16> to vector<2x16x256xbf16>
    %25 = arith.truncf %20 : vector<32x256xf32> to vector<32x256xbf16>
    %26 = vector.shape_cast %25 : vector<32x256xbf16> to vector<2x16x256xbf16>
    %27 = vector.extract_strided_slice %22 {offsets = [0, 0, 0], sizes = [2, 8, 32], strides = [1, 1, 1]} : vector<2x8x256xbf16> to vector<2x8x32xbf16>
    %28 = vector.extract_strided_slice %22 {offsets = [0, 0, 32], sizes = [2, 8, 32], strides = [1, 1, 1]} : vector<2x8x256xbf16> to vector<2x8x32xbf16>
    %29 = vector.extract_strided_slice %22 {offsets = [0, 0, 64], sizes = [2, 8, 32], strides = [1, 1, 1]} : vector<2x8x256xbf16> to vector<2x8x32xbf16>
    %30 = vector.extract_strided_slice %22 {offsets = [0, 0, 96], sizes = [2, 8, 32], strides = [1, 1, 1]} : vector<2x8x256xbf16> to vector<2x8x32xbf16>
    %31 = vector.extract_strided_slice %22 {offsets = [0, 0, 128], sizes = [2, 8, 32], strides = [1, 1, 1]} : vector<2x8x256xbf16> to vector<2x8x32xbf16>
    %32 = vector.extract_strided_slice %22 {offsets = [0, 0, 160], sizes = [2, 8, 32], strides = [1, 1, 1]} : vector<2x8x256xbf16> to vector<2x8x32xbf16>
    %33 = vector.extract_strided_slice %22 {offsets = [0, 0, 192], sizes = [2, 8, 32], strides = [1, 1, 1]} : vector<2x8x256xbf16> to vector<2x8x32xbf16>
    %34 = vector.extract_strided_slice %22 {offsets = [0, 0, 224], sizes = [2, 8, 32], strides = [1, 1, 1]} : vector<2x8x256xbf16> to vector<2x8x32xbf16>
    %35 = tpu.concatenate %27, %28, %29, %30, %31, %32, %33, %34 in 0 : vector<2x8x32xbf16>, vector<2x8x32xbf16>, vector<2x8x32xbf16>, vector<2x8x32xbf16>, vector<2x8x32xbf16>, vector<2x8x32xbf16>, vector<2x8x32xbf16>, vector<2x8x32xbf16> -> vector<16x8x32xbf16>
    %36 = vector.extract_strided_slice %24 {offsets = [0, 0, 0], sizes = [2, 16, 32], strides = [1, 1, 1]} : vector<2x16x256xbf16> to vector<2x16x32xbf16>
    %37 = vector.extract_strided_slice %24 {offsets = [0, 0, 32], sizes = [2, 16, 32], strides = [1, 1, 1]} : vector<2x16x256xbf16> to vector<2x16x32xbf16>
    %38 = vector.extract_strided_slice %24 {offsets = [0, 0, 64], sizes = [2, 16, 32], strides = [1, 1, 1]} : vector<2x16x256xbf16> to vector<2x16x32xbf16>
    %39 = vector.extract_strided_slice %24 {offsets = [0, 0, 96], sizes = [2, 16, 32], strides = [1, 1, 1]} : vector<2x16x256xbf16> to vector<2x16x32xbf16>
    %40 = vector.extract_strided_slice %24 {offsets = [0, 0, 128], sizes = [2, 16, 32], strides = [1, 1, 1]} : vector<2x16x256xbf16> to vector<2x16x32xbf16>
    %41 = vector.extract_strided_slice %24 {offsets = [0, 0, 160], sizes = [2, 16, 32], strides = [1, 1, 1]} : vector<2x16x256xbf16> to vector<2x16x32xbf16>
    %42 = vector.extract_strided_slice %24 {offsets = [0, 0, 192], sizes = [2, 16, 32], strides = [1, 1, 1]} : vector<2x16x256xbf16> to vector<2x16x32xbf16>
    %43 = vector.extract_strided_slice %24 {offsets = [0, 0, 224], sizes = [2, 16, 32], strides = [1, 1, 1]} : vector<2x16x256xbf16> to vector<2x16x32xbf16>
    %44 = tpu.concatenate %36, %37, %38, %39, %40, %41, %42, %43 in 0 : vector<2x16x32xbf16>, vector<2x16x32xbf16>, vector<2x16x32xbf16>, vector<2x16x32xbf16>, vector<2x16x32xbf16>, vector<2x16x32xbf16>, vector<2x16x32xbf16>, vector<2x16x32xbf16> -> vector<16x16x32xbf16>
    %45 = vector.extract_strided_slice %26 {offsets = [0, 0, 0], sizes = [2, 16, 32], strides = [1, 1, 1]} : vector<2x16x256xbf16> to vector<2x16x32xbf16>
    %46 = vector.extract_strided_slice %26 {offsets = [0, 0, 32], sizes = [2, 16, 32], strides = [1, 1, 1]} : vector<2x16x256xbf16> to vector<2x16x32xbf16>
    %47 = vector.extract_strided_slice %26 {offsets = [0, 0, 64], sizes = [2, 16, 32], strides = [1, 1, 1]} : vector<2x16x256xbf16> to vector<2x16x32xbf16>
    %48 = vector.extract_strided_slice %26 {offsets = [0, 0, 96], sizes = [2, 16, 32], strides = [1, 1, 1]} : vector<2x16x256xbf16> to vector<2x16x32xbf16>
    %49 = vector.extract_strided_slice %26 {offsets = [0, 0, 128], sizes = [2, 16, 32], strides = [1, 1, 1]} : vector<2x16x256xbf16> to vector<2x16x32xbf16>
    %50 = vector.extract_strided_slice %26 {offsets = [0, 0, 160], sizes = [2, 16, 32], strides = [1, 1, 1]} : vector<2x16x256xbf16> to vector<2x16x32xbf16>
    %51 = vector.extract_strided_slice %26 {offsets = [0, 0, 192], sizes = [2, 16, 32], strides = [1, 1, 1]} : vector<2x16x256xbf16> to vector<2x16x32xbf16>
    %52 = vector.extract_strided_slice %26 {offsets = [0, 0, 224], sizes = [2, 16, 32], strides = [1, 1, 1]} : vector<2x16x256xbf16> to vector<2x16x32xbf16>
    %53 = tpu.concatenate %45, %46, %47, %48, %49, %50, %51, %52 in 0 : vector<2x16x32xbf16>, vector<2x16x32xbf16>, vector<2x16x32xbf16>, vector<2x16x32xbf16>, vector<2x16x32xbf16>, vector<2x16x32xbf16>, vector<2x16x32xbf16>, vector<2x16x32xbf16> -> vector<16x16x32xbf16>
    "tpu.trace_start"() <{level = 10 : i32, message = "gld,gsd->gls"}> : () -> ()
    %cst_22 = arith.constant dense<0.000000e+00> : vector<16x8x16xf32>
    %54 = tpu.matmul %35, %44, %cst_22 {dimension_numbers = #tpu.dot_dimension_numbers<[2], [2], [1], [1], [0, 0, 0, 1, 1, 1], [0], [0]>} : vector<16x8x32xbf16>, vector<16x16x32xbf16>, vector<16x8x16xf32> -> vector<16x8x16xf32>
    "tpu.trace_stop"() : () -> ()
    %55 = vector.shape_cast %54 : vector<16x8x16xf32> to vector<8x2x8x16xf32>
    %c0_23 = arith.constant 0 : index
    %c0_24 = arith.constant 0 : index
    %c0_25 = arith.constant 0 : index
    %56 = vector.load %arg4[%c0_23, %c0_24, %c0_25] : memref<2x1x16xf32, #tpu.memory_space<vmem>>, vector<2x1x16xf32>
    %57 = vector.shape_cast %56 : vector<2x1x16xf32> to vector<1x2x1x16xf32>
    %58 = vector.broadcast %57 : vector<1x2x1x16xf32> to vector<8x2x8x16xf32>
    %59 = arith.addf %55, %58 : vector<8x2x8x16xf32>
    %cst_26 = arith.constant dense<0xFF800000> : vector<8x2x8xf32>
    %60 = vector.multi_reduction <maximumf>, %59, %cst_26 [3] : vector<8x2x8x16xf32> to vector<8x2x8xf32>
    %61 = vector.shape_cast %60 : vector<8x2x8xf32> to vector<8x2x8x1xf32>
    %62 = vector.broadcast %61 : vector<8x2x8x1xf32> to vector<8x2x8x16xf32>
    %63 = arith.subf %59, %62 : vector<8x2x8x16xf32>
    %64 = math.exp %63 : vector<8x2x8x16xf32>
    %cst_27 = arith.constant dense<0.000000e+00> : vector<8x2x8xf32>
    %65 = vector.multi_reduction <add>, %64, %cst_27 [3] : vector<8x2x8x16xf32> to vector<8x2x8xf32>
    %66 = vector.shape_cast %65 : vector<8x2x8xf32> to vector<8x2x8x1xf32>
    %67 = tpu.reciprocal %66 {approx = true} : vector<8x2x8x1xf32> -> vector<8x2x8x1xf32>
    %68 = vector.broadcast %67 : vector<8x2x8x1xf32> to vector<8x2x8x16xf32>
    %69 = arith.mulf %64, %68 : vector<8x2x8x16xf32>
    %70 = arith.truncf %69 : vector<8x2x8x16xf32> to vector<8x2x8x16xbf16>
    %71 = vector.shape_cast %70 : vector<8x2x8x16xbf16> to vector<16x8x16xbf16>
    "tpu.trace_start"() <{level = 10 : i32, message = "gls,gsd->gld"}> : () -> ()
    %cst_28 = arith.constant dense<0.000000e+00> : vector<16x8x32xf32>
    %72 = tpu.matmul %71, %53, %cst_28 {dimension_numbers = #tpu.dot_dimension_numbers<[2], [1], [1], [2], [0, 0, 0, 1, 1, 2], [0], [0]>} : vector<16x8x16xbf16>, vector<16x16x32xbf16>, vector<16x8x32xf32> -> vector<16x8x32xf32>
    "tpu.trace_stop"() : () -> ()
    %73 = vector.shape_cast %72 : vector<16x8x32xf32> to vector<8x2x8x32xf32>
    %74 = vector.extract_strided_slice %73 {offsets = [0, 0, 0, 0], sizes = [1, 2, 8, 32], strides = [1, 1, 1, 1]} : vector<8x2x8x32xf32> to vector<1x2x8x32xf32>
    %75 = vector.shape_cast %74 : vector<1x2x8x32xf32> to vector<2x8x32xf32>
    %76 = vector.extract_strided_slice %73 {offsets = [1, 0, 0, 0], sizes = [1, 2, 8, 32], strides = [1, 1, 1, 1]} : vector<8x2x8x32xf32> to vector<1x2x8x32xf32>
    %77 = vector.shape_cast %76 : vector<1x2x8x32xf32> to vector<2x8x32xf32>
    %78 = vector.extract_strided_slice %73 {offsets = [2, 0, 0, 0], sizes = [1, 2, 8, 32], strides = [1, 1, 1, 1]} : vector<8x2x8x32xf32> to vector<1x2x8x32xf32>
    %79 = vector.shape_cast %78 : vector<1x2x8x32xf32> to vector<2x8x32xf32>
    %80 = vector.extract_strided_slice %73 {offsets = [3, 0, 0, 0], sizes = [1, 2, 8, 32], strides = [1, 1, 1, 1]} : vector<8x2x8x32xf32> to vector<1x2x8x32xf32>
    %81 = vector.shape_cast %80 : vector<1x2x8x32xf32> to vector<2x8x32xf32>
    %82 = vector.extract_strided_slice %73 {offsets = [4, 0, 0, 0], sizes = [1, 2, 8, 32], strides = [1, 1, 1, 1]} : vector<8x2x8x32xf32> to vector<1x2x8x32xf32>
    %83 = vector.shape_cast %82 : vector<1x2x8x32xf32> to vector<2x8x32xf32>
    %84 = vector.extract_strided_slice %73 {offsets = [5, 0, 0, 0], sizes = [1, 2, 8, 32], strides = [1, 1, 1, 1]} : vector<8x2x8x32xf32> to vector<1x2x8x32xf32>
    %85 = vector.shape_cast %84 : vector<1x2x8x32xf32> to vector<2x8x32xf32>
    %86 = vector.extract_strided_slice %73 {offsets = [6, 0, 0, 0], sizes = [1, 2, 8, 32], strides = [1, 1, 1, 1]} : vector<8x2x8x32xf32> to vector<1x2x8x32xf32>
    %87 = vector.shape_cast %86 : vector<1x2x8x32xf32> to vector<2x8x32xf32>
    %88 = vector.extract_strided_slice %73 {offsets = [7, 0, 0, 0], sizes = [1, 2, 8, 32], strides = [1, 1, 1, 1]} : vector<8x2x8x32xf32> to vector<1x2x8x32xf32>
    %89 = vector.shape_cast %88 : vector<1x2x8x32xf32> to vector<2x8x32xf32>
    %90 = tpu.concatenate %75, %77, %79, %81, %83, %85, %87, %89 in 2 : vector<2x8x32xf32>, vector<2x8x32xf32>, vector<2x8x32xf32>, vector<2x8x32xf32>, vector<2x8x32xf32>, vector<2x8x32xf32>, vector<2x8x32xf32>, vector<2x8x32xf32> -> vector<2x8x256xf32>
    %91 = vector.shape_cast %90 : vector<2x8x256xf32> to vector<16x256xf32>
    %92 = arith.truncf %91 : vector<16x256xf32> to vector<16x256xbf16>
    %c0_29 = arith.constant 0 : index
    %c0_30 = arith.constant 0 : index
    %93 = vector.load %arg11[%c0_29, %c0_30] : memref<256x256xbf16, #tpu.memory_space<vmem>>, vector<256x256xbf16>
    %cst_31 = arith.constant dense<0.000000e+00> : vector<16x256xf32>
    %94 = tpu.matmul %92, %93, %cst_31 {dimension_numbers = #tpu.dot_dimension_numbers<[1], [0], [0], [1], [0, 0, 1, 1], [], []>} : vector<16x256xbf16>, vector<256x256xbf16>, vector<16x256xf32> -> vector<16x256xf32>
    %c0_32 = arith.constant 0 : index
    %c0_33 = arith.constant 0 : index
    %95 = vector.load %arg12[%c0_32, %c0_33] : memref<1x256xf32, #tpu.memory_space<vmem>>, vector<1x256xf32>
    %96 = vector.broadcast %95 : vector<1x256xf32> to vector<16x256xf32>
    %97 = arith.addf %94, %96 : vector<16x256xf32>
    %98 = arith.truncf %97 : vector<16x256xf32> to vector<16x256xbf16>
    %c0_34 = arith.constant 0 : index
    %c0_35 = arith.constant 0 : index
    %99 = vector.load %arg13[%c0_34, %c0_35] : memref<256x256xbf16, #tpu.memory_space<vmem>>, vector<256x256xbf16>
    %cst_36 = arith.constant dense<0.000000e+00> : vector<16x256xf32>
    %100 = tpu.matmul %98, %99, %cst_36 {dimension_numbers = #tpu.dot_dimension_numbers<[1], [0], [0], [1], [0, 0, 1, 1], [], []>} : vector<16x256xbf16>, vector<256x256xbf16>, vector<16x256xf32> -> vector<16x256xf32>
    %c0_37 = arith.constant 0 : index
    %c0_38 = arith.constant 0 : index
    %101 = vector.load %arg14[%c0_37, %c0_38] : memref<1x256xf32, #tpu.memory_space<vmem>>, vector<1x256xf32>
    %102 = vector.broadcast %101 : vector<1x256xf32> to vector<16x256xf32>
    %103 = arith.addf %100, %102 : vector<16x256xf32>
    %cst_39 = arith.constant 2.000000e+01 : f32
    %104 = vector.broadcast %cst_39 : f32 to vector<16x256xf32>
    %105 = arith.minimumf %103, %104 : vector<16x256xf32>
    %106 = math.exp %105 : vector<16x256xf32>
    %cst_40 = arith.constant 2.000000e+00 : f32
    %107 = vector.broadcast %cst_40 : f32 to vector<16x256xf32>
    %108 = arith.addf %106, %107 : vector<16x256xf32>
    %109 = arith.mulf %106, %108 : vector<16x256xf32>
    %cst_41 = arith.constant 2.000000e+01 : f32
    %110 = vector.broadcast %cst_41 : f32 to vector<16x256xf32>
    %111 = arith.cmpf ogt, %103, %110 : vector<16x256xf32>
    %112 = arith.mulf %103, %109 : vector<16x256xf32>
    %cst_42 = arith.constant 2.000000e+00 : f32
    %113 = vector.broadcast %cst_42 : f32 to vector<16x256xf32>
    %114 = arith.addf %109, %113 : vector<16x256xf32>
    %115 = tpu.reciprocal %114 {approx = true} : vector<16x256xf32> -> vector<16x256xf32>
    %116 = arith.mulf %112, %115 : vector<16x256xf32>
    %117 = arith.select %111, %103, %116 : vector<16x256xi1>, vector<16x256xf32>
    %c0_43 = arith.constant 0 : index
    %c0_44 = arith.constant 0 : index
    %118 = vector.load %arg15[%c0_43, %c0_44] : memref<1x256xf32, #tpu.memory_space<vmem>>, vector<1x256xf32>
    %119 = vector.broadcast %118 : vector<1x256xf32> to vector<16x256xf32>
    %120 = arith.mulf %117, %119 : vector<16x256xf32>
    %c0_45 = arith.constant 0 : index
    %c0_46 = arith.constant 0 : index
    %121 = vector.load %arg16[%c0_45, %c0_46] : memref<1x256xf32, #tpu.memory_space<vmem>>, vector<1x256xf32>
    %122 = vector.broadcast %121 : vector<1x256xf32> to vector<16x256xf32>
    %123 = arith.addf %120, %122 : vector<16x256xf32>
    %124 = vector.shape_cast %123 : vector<16x256xf32> to vector<2x8x256xf32>
    %c0_47 = arith.constant 0 : index
    %c0_48 = arith.constant 0 : index
    %c0_49 = arith.constant 0 : index
    %125 = vector.load %arg17[%c0_47, %c0_48, %c0_49] : memref<2x8x256xf32, #tpu.memory_space<vmem>>, vector<2x8x256xf32>
    tpu.vector_store %arg17[%c0_47, %c0_48, %c0_49], %124 {strides = array<i32>} : memref<2x8x256xf32, #tpu.memory_space<vmem>>, vector<2x8x256xf32>,
    return
  }
  func.func @transform_0(%arg0: i32) -> (i32, i32, i32) {
    %c0_i32 = arith.constant 0 : i32
    %c0_i32_0 = arith.constant 0 : i32
    %c0_i32_1 = arith.constant 0 : i32
    return %arg0, %c0_i32, %c0_i32_0 : i32, i32, i32
  }
  func.func @transform_1(%arg0: i32) -> (i32, i32, i32) {
    %c0_i32 = arith.constant 0 : i32
    %c0_i32_0 = arith.constant 0 : i32
    %c0_i32_1 = arith.constant 0 : i32
    return %arg0, %c0_i32, %c0_i32_0 : i32, i32, i32
  }
  func.func @transform_2(%arg0: i32) -> (i32, i32, i32) {
    %c0_i32 = arith.constant 0 : i32
    %c0_i32_0 = arith.constant 0 : i32
    %c0_i32_1 = arith.constant 0 : i32
    return %arg0, %c0_i32, %c0_i32_0 : i32, i32, i32
  }
  func.func @transform_3(%arg0: i32) -> (i32, i32, i32) {
    %c0_i32 = arith.constant 0 : i32
    %c0_i32_0 = arith.constant 0 : i32
    %c0_i32_1 = arith.constant 0 : i32
    return %arg0, %c0_i32, %c0_i32_0 : i32, i32, i32
  }
  func.func @transform_4(%arg0: i32) -> (i32, i32) {
    %c0_i32 = arith.constant 0 : i32
    %c0_i32_0 = arith.constant 0 : i32
    %c0_i32_1 = arith.constant 0 : i32
    return %c0_i32, %c0_i32_0 : i32, i32
  }
  func.func @transform_5(%arg0: i32) -> (i32, i32) {
    %c0_i32 = arith.constant 0 : i32
    %c0_i32_0 = arith.constant 0 : i32
    %c0_i32_1 = arith.constant 0 : i32
    return %c0_i32, %c0_i32_0 : i32, i32
  }
  func.func @transform_6(%arg0: i32) -> (i32, i32) {
    %c0_i32 = arith.constant 0 : i32
    %c0_i32_0 = arith.constant 0 : i32
    %c0_i32_1 = arith.constant 0 : i32
    return %c0_i32, %c0_i32_0 : i32, i32
  }
  func.func @transform_7(%arg0: i32) -> (i32, i32) {
    %c0_i32 = arith.constant 0 : i32
    %c0_i32_0 = arith.constant 0 : i32
    %c0_i32_1 = arith.constant 0 : i32
    return %c0_i32, %c0_i32_0 : i32, i32
  }
  func.func @transform_8(%arg0: i32) -> (i32, i32) {
    %c0_i32 = arith.constant 0 : i32
    %c0_i32_0 = arith.constant 0 : i32
    %c0_i32_1 = arith.constant 0 : i32
    return %c0_i32, %c0_i32_0 : i32, i32
  }
  func.func @transform_9(%arg0: i32) -> (i32, i32) {
    %c0_i32 = arith.constant 0 : i32
    %c0_i32_0 = arith.constant 0 : i32
    %c0_i32_1 = arith.constant 0 : i32
    return %c0_i32, %c0_i32_0 : i32, i32
  }
  func.func @transform_10(%arg0: i32) -> (i32, i32) {
    %c0_i32 = arith.constant 0 : i32
    %c0_i32_0 = arith.constant 0 : i32
    %c0_i32_1 = arith.constant 0 : i32
    return %c0_i32, %c0_i32_0 : i32, i32
  }
  func.func @transform_11(%arg0: i32) -> (i32, i32) {
    %c0_i32 = arith.constant 0 : i32
    %c0_i32_0 = arith.constant 0 : i32
    %c0_i32_1 = arith.constant 0 : i32
    return %c0_i32, %c0_i32_0 : i32, i32
  }
  func.func @transform_12(%arg0: i32) -> (i32, i32) {
    %c0_i32 = arith.constant 0 : i32
    %c0_i32_0 = arith.constant 0 : i32
    %c0_i32_1 = arith.constant 0 : i32
    return %c0_i32, %c0_i32_0 : i32, i32
  }
  func.func @transform_13(%arg0: i32) -> (i32, i32) {
    %c0_i32 = arith.constant 0 : i32
    %c0_i32_0 = arith.constant 0 : i32
    %c0_i32_1 = arith.constant 0 : i32
    return %c0_i32, %c0_i32_0 : i32, i32
  }
  func.func @transform_14(%arg0: i32) -> (i32, i32) {
    %c0_i32 = arith.constant 0 : i32
    %c0_i32_0 = arith.constant 0 : i32
    %c0_i32_1 = arith.constant 0 : i32
    return %c0_i32, %c0_i32_0 : i32, i32
  }
  func.func @transform_15(%arg0: i32) -> (i32, i32) {
    %c0_i32 = arith.constant 0 : i32
    %c0_i32_0 = arith.constant 0 : i32
    %c0_i32_1 = arith.constant 0 : i32
    return %c0_i32, %c0_i32_0 : i32, i32
  }
  func.func @transform_16(%arg0: i32) -> (i32, i32, i32) {
    %c0_i32 = arith.constant 0 : i32
    %c0_i32_0 = arith.constant 0 : i32
    %c0_i32_1 = arith.constant 0 : i32
    return %arg0, %c0_i32, %c0_i32_0 : i32, i32, i32
  }
}

</mosaic_0001>

<llo_original>
// kernel: tpu_custom_call.1
$region0: #{tpu_custom_call.1}
  #allocation0 [shape = 'u32[]', space=smem, size = 0x4, offset = 0x4, fixed_abs, tag = 'smem constant byte address 0x4 - core index']
  #allocation1 [shape = 'u32[72,128]{1,0:T(1,128)}', space=vmem, size = 0x9000, scoped, tag = 'internal scratch']
  %s0 = inlined_call_operand.hbm [shape: bf16[16,8,256], index: 0, kind: input, shape index: {}]
  %s1 = inlined_call_operand.hbm [shape: bf16[16,16,256], index: 1, kind: input, shape index: {}]
  %s2 = inlined_call_operand.hbm [shape: bf16[16,16,256], index: 2, kind: input, shape index: {}]
  %s3 = inlined_call_operand.hbm [shape: f32[16,1,16], index: 3, kind: input, shape index: {}]
  %s4 = inlined_call_operand.hbm [shape: bf16[256,256], index: 4, kind: input, shape index: {}]
  %s5 = inlined_call_operand.vmem [shape: f32[1,256], index: 5, kind: input, shape index: {}]
  %s6 = inlined_call_operand.hbm [shape: bf16[256,256], index: 6, kind: input, shape index: {}]
  %s7 = inlined_call_operand.vmem [shape: f32[1,256], index: 7, kind: input, shape index: {}]
  %s8 = inlined_call_operand.hbm [shape: bf16[256,256], index: 8, kind: input, shape index: {}]
  %s9 = inlined_call_operand.vmem [shape: f32[1,256], index: 9, kind: input, shape index: {}]
  %s10 = inlined_call_operand.hbm [shape: bf16[256,256], index: 10, kind: input, shape index: {}]
  %s11 = inlined_call_operand.vmem [shape: f32[1,256], index: 11, kind: input, shape index: {}]
  %s12 = inlined_call_operand.hbm [shape: bf16[256,256], index: 12, kind: input, shape index: {}]
  %s13 = inlined_call_operand.vmem [shape: f32[1,256], index: 13, kind: input, shape index: {}]
  %s14 = inlined_call_operand.vmem [shape: f32[1,256], index: 14, kind: input, shape index: {}]
  %s15 = inlined_call_operand.vmem [shape: f32[1,256], index: 15, kind: input, shape index: {}]
  %s16 = inlined_call_operand.hbm [shape: f32[16,8,256], index: 16, kind: output, shape index: {}]
  %s17 = sld [smem:[#allocation0]]
  $region133: #{tpu_custom_call.1} parent=0
    _
  %s19 = ssub.s32 1, %s17
  %s20 = scalar_select 0, %s19, %s17
  $region1: #{tpu_custom_call.1} parent=0
    #allocation2 [shape = 'u8[16384]{0}', space=vmem, size = 0x4000, scoped, tag = 'input window, operand 0']
    #allocation3 [shape = 's32[2]{0}', space=sflag, size = 0x8, scoped, tag = 'scoped memory for tpu_custom_call.1']
    #allocation4 [shape = 's32[2]{0}', space=sflag, size = 0x8, scoped, tag = 'scoped memory for tpu_custom_call.1']
    #allocation5 [shape = 'u8[32768]{0}', space=vmem, size = 0x8000, scoped, tag = 'input window, operand 1']
    #allocation6 [shape = 's32[2]{0}', space=sflag, size = 0x8, scoped, tag = 'scoped memory for tpu_custom_call.1']
    #allocation7 [shape = 'u8[32768]{0}', space=vmem, size = 0x8000, scoped, tag = 'input window, operand 2']
    #allocation8 [shape = 'u8[2048]{0}', space=vmem, size = 0x800, scoped, tag = 'input window, operand 3']
    #allocation9 [shape = 's32[2]{0}', space=sflag, size = 0x8, scoped, tag = 'scoped memory for tpu_custom_call.1']
    #allocation10 [shape = 'u8[131072]{0}', space=vmem, size = 0x20000, scoped, tag = 'input window, operand 4, single buffered']
    #allocation11 [shape = 'u8[131072]{0}', space=vmem, size = 0x20000, scoped, tag = 'input window, operand 6, single buffered']
    #allocation12 [shape = 's32[1]{0}', space=sflag, size = 0x4, scoped, tag = 'scoped memory for tpu_custom_call.1']
    #allocation13 [shape = 'u8[131072]{0}', space=vmem, size = 0x20000, scoped, tag = 'input window, operand 8, single buffered']
    #allocation14 [shape = 'u8[131072]{0}', space=vmem, size = 0x20000, scoped, tag = 'input window, operand 10, single buffered']
    #allocation15 [shape = 's32[1]{0}', space=sflag, size = 0x4, scoped, tag = 'scoped memory for tpu_custom_call.1']
    #allocation16 [shape = 'u8[131072]{0}', space=vmem, size = 0x20000, scoped, tag = 'input window, operand 12, single buffered']
    #allocation17 [shape = 'u8[32768]{0}', space=vmem, size = 0x8000, scoped, tag = 'output window, operand 0']
    %21 = vsyncpa [#allocation3], 0
    %s22 = scalar_lea.sflag [#allocation3], 1
    %23 = vsyncpa %s22, 0
    %24 = vsyncpa [#allocation6], 0
    %s25 = scalar_lea.sflag [#allocation6], 1
    %26 = vsyncpa %s25, 0
    %27 = vsyncpa [#allocation9], 0
    %s28 = scalar_lea.sflag [#allocation9], 1
    %29 = vsyncpa %s28, 0
    %30 = vsyncpa [#allocation12], 0
    %31 = vsyncpa [#allocation15], 0
    %32 = vsyncpa [#allocation4], 0
    %s33 = scalar_lea.sflag [#allocation4], 1
    %34 = vsyncpa %s33, 0
    loop: start=0, step=1, limit=10
    $region2: #{tpu_custom_call.1} parent=1 // loop_pre_header
      _
    $region3: #{tpu_custom_call.1} parent=1 // loop_header
      %s36 = sphi 0, %s40
      %p37 = scmp.ge.s32.totalorder %s36, 10
      %s46 = sphi 0, %s48
      %s49 = sphi 0, %s46
      %s50 = sphi 0, %s49
      %s66 = sphi 0, %s50
      %s72 = sphi 0, %s74
      %s75 = sphi 0, %s72
      %s76 = sphi 0, %s75
      %s92 = sphi 0, %s76
      %s98 = sphi 0, %s100
      %s101 = sphi 0, %s98
      %s102 = sphi 0, %s101
      %s118 = sphi 0, %s102
      %s124 = sphi 0, %s126
      %s127 = sphi 0, %s124
      %s128 = sphi 0, %s127
      %s144 = sphi 0, %s128
      %s148 = sphi 0, %s148
      %s150 = sphi 0, %s148
      %s151 = sphi 0, %s150
      %s165 = sphi 0, %s151
      %s169 = sphi 0, %s169
      %s171 = sphi 0, %s169
      %s172 = sphi 0, %s171
      %s186 = sphi 0, %s172
      %s190 = sphi 0, %s190
      %s192 = sphi 0, %s190
      %s193 = sphi 0, %s192
      %s207 = sphi 0, %s193
      %s211 = sphi 0, %s211
      %s213 = sphi 0, %s211
      %s214 = sphi 0, %s213
      %s228 = sphi 0, %s214
      %s232 = sphi 0, %s232
      %s234 = sphi 0, %s232
      %s235 = sphi 0, %s234
      %s249 = sphi 0, %s235
      %s253 = sphi 0, %s253
      %s255 = sphi 0, %s253
      %s256 = sphi 0, %s255
      %s270 = sphi 0, %s256
      %s274 = sphi 0, %s274
      %s276 = sphi 0, %s274
      %s277 = sphi 0, %s276
      %s291 = sphi 0, %s277
      %s295 = sphi 0, %s295
      %s297 = sphi 0, %s295
      %s298 = sphi 0, %s297
      %s312 = sphi 0, %s298
      %s316 = sphi 0, %s316
      %s318 = sphi 0, %s316
      %s319 = sphi 0, %s318
      %s333 = sphi 0, %s319
      %s337 = sphi 0, %s337
      %s339 = sphi 0, %s337
      %s340 = sphi 0, %s339
      %s354 = sphi 0, %s340
      %s358 = sphi 0, %s358
      %s360 = sphi 0, %s358
      %s361 = sphi 0, %s360
      %s375 = sphi 0, %s361
      %s379 = sphi 0, %s379
      %s381 = sphi 0, %s379
      %s382 = sphi 0, %s381
      %s396 = sphi 0, %s382
      %s402 = sphi 0, %s404
      %s405 = sphi 0, %s402
      %s406 = sphi 0, %s405
      %s422 = sphi 0, %s406
    $region4: #{tpu_custom_call.1} parent=1 // loop_header_branch
      %39 = sbr.rel (%p37) target = $region8
    $region5: #{tpu_custom_call.1} parent=1 // loop_body
      %s41 = ssub.s32 %s36, 1
      %s42 = ssub.s32 %s36, 2
      %s43 = sadd.s32 %s36, 1
      %s44 = ssub.s32 %s36, %s43
      %p45 = scmp.eq.s32.totalorder %s44, 0
      %s47 = sadd.s32 %s46, 1
      %s48 = scalar_select %p45, %s46, %s47
      %p51 = pneg %p45
      %p52 = scmp.eq.s32.totalorder %s36, 7
      %p53 = por %p51, %p52
      %p54 = scmp.ne.s32.totalorder %s46, %s49
      %p55 = scmp.eq.s32.totalorder %s36, 0
      %p56 = por %p54, %p55
      %p57 = scmp.ne.s32.totalorder %s46, %s49
      %p58 = scmp.eq.s32.totalorder %s41, 7
      %p59 = por %p57, %p58
      %p60 = scmp.ne.s32.totalorder %s49, %s50
      %p61 = scmp.eq.s32.totalorder %s41, 0
      %p62 = por %p60, %p61
      %p63 = scmp.ne.s32.totalorder %s49, %s50
      %p64 = scmp.eq.s32.totalorder %s42, 7
      %p65 = por %p63, %p64
      %p67 = scmp.ne.s32.totalorder %s50, %s66
      %p68 = scmp.eq.s32.totalorder %s42, 0
      %p69 = por %p67, %p68
      %s70 = ssub.s32 %s36, %s43
      %p71 = scmp.eq.s32.totalorder %s70, 0
      %s73 = sadd.s32 %s72, 1
      %s74 = scalar_select %p71, %s72, %s73
      %p77 = pneg %p71
      %p78 = scmp.eq.s32.totalorder %s36, 7
      %p79 = por %p77, %p78
      %p80 = scmp.ne.s32.totalorder %s72, %s75
      %p81 = scmp.eq.s32.totalorder %s36, 0
      %p82 = por %p80, %p81
      %p83 = scmp.ne.s32.totalorder %s72, %s75
      %p84 = scmp.eq.s32.totalorder %s41, 7
      %p85 = por %p83, %p84
      %p86 = scmp.ne.s32.totalorder %s75, %s76
      %p87 = scmp.eq.s32.totalorder %s41, 0
      %p88 = por %p86, %p87
      %p89 = scmp.ne.s32.totalorder %s75, %s76
      %p90 = scmp.eq.s32.totalorder %s42, 7
      %p91 = por %p89, %p90
      %p93 = scmp.ne.s32.totalorder %s76, %s92
      %p94 = scmp.eq.s32.totalorder %s42, 0
      %p95 = por %p93, %p94
      %s96 = ssub.s32 %s36, %s43
      %p97 = scmp.eq.s32.totalorder %s96, 0
      %s99 = sadd.s32 %s98, 1
      %s100 = scalar_select %p97, %s98, %s99
      %p103 = pneg %p97
      %p104 = scmp.eq.s32.totalorder %s36, 7
      %p105 = por %p103, %p104
      %p106 = scmp.ne.s32.totalorder %s98, %s101
      %p107 = scmp.eq.s32.totalorder %s36, 0
      %p108 = por %p106, %p107
      %p109 = scmp.ne.s32.totalorder %s98, %s101
      %p110 = scmp.eq.s32.totalorder %s41, 7
      %p111 = por %p109, %p110
      %p112 = scmp.ne.s32.totalorder %s101, %s102
      %p113 = scmp.eq.s32.totalorder %s41, 0
      %p114 = por %p112, %p113
      %p115 = scmp.ne.s32.totalorder %s101, %s102
      %p116 = scmp.eq.s32.totalorder %s42, 7
      %p117 = por %p115, %p116
      %p119 = scmp.ne.s32.totalorder %s102, %s118
      %p120 = scmp.eq.s32.totalorder %s42, 0
      %p121 = por %p119, %p120
      %s122 = ssub.s32 %s36, %s43
      %p123 = scmp.eq.s32.totalorder %s122, 0
      %s125 = sadd.s32 %s124, 1
      %s126 = scalar_select %p123, %s124, %s125
      %p129 = pneg %p123
      %p130 = scmp.eq.s32.totalorder %s36, 7
      %p131 = por %p129, %p130
      %p132 = scmp.ne.s32.totalorder %s124, %s127
      %p133 = scmp.eq.s32.totalorder %s36, 0
      %p134 = por %p132, %p133
      %p135 = scmp.ne.s32.totalorder %s124, %s127
      %p136 = scmp.eq.s32.totalorder %s41, 7
      %p137 = por %p135, %p136
      %p138 = scmp.ne.s32.totalorder %s127, %s128
      %p139 = scmp.eq.s32.totalorder %s41, 0
      %p140 = por %p138, %p139
      %p141 = scmp.ne.s32.totalorder %s127, %s128
      %p142 = scmp.eq.s32.totalorder %s42, 7
      %p143 = por %p141, %p142
      %p145 = scmp.ne.s32.totalorder %s128, %s144
      %p146 = scmp.eq.s32.totalorder %s42, 0
      %p147 = por %p145, %p146
      %s149 = sadd.s32 %s148, 1
      %p152 = scmp.eq.s32.totalorder %s36, 7
      %p153 = scmp.ne.s32.totalorder %s148, %s150
      %p154 = scmp.eq.s32.totalorder %s36, 0
      %p155 = por %p153, %p154
      %p156 = scmp.ne.s32.totalorder %s148, %s150
      %p157 = scmp.eq.s32.totalorder %s41, 7
      %p158 = por %p156, %p157
      %p159 = scmp.ne.s32.totalorder %s150, %s151
      %p160 = scmp.eq.s32.totalorder %s41, 0
      %p161 = por %p159, %p160
      %p162 = scmp.ne.s32.totalorder %s150, %s151
      %p163 = scmp.eq.s32.totalorder %s42, 7
      %p164 = por %p162, %p163
      %p166 = scmp.ne.s32.totalorder %s151, %s165
      %p167 = scmp.eq.s32.totalorder %s42, 0
      %p168 = por %p166, %p167
      %s170 = sadd.s32 %s169, 1
      %p173 = scmp.eq.s32.totalorder %s36, 7
      %p174 = scmp.ne.s32.totalorder %s169, %s171
      %p175 = scmp.eq.s32.totalorder %s36, 0
      %p176 = por %p174, %p175
      %p177 = scmp.ne.s32.totalorder %s169, %s171
      %p178 = scmp.eq.s32.totalorder %s41, 7
      %p179 = por %p177, %p178
      %p180 = scmp.ne.s32.totalorder %s171, %s172
      %p181 = scmp.eq.s32.totalorder %s41, 0
      %p182 = por %p180, %p181
      %p183 = scmp.ne.s32.totalorder %s171, %s172
      %p184 = scmp.eq.s32.totalorder %s42, 7
      %p185 = por %p183, %p184
      %p187 = scmp.ne.s32.totalorder %s172, %s186
      %p188 = scmp.eq.s32.totalorder %s42, 0
      %p189 = por %p187, %p188
      %s191 = sadd.s32 %s190, 1
      %p194 = scmp.eq.s32.totalorder %s36, 7
      %p195 = scmp.ne.s32.totalorder %s190, %s192
      %p196 = scmp.eq.s32.totalorder %s36, 0
      %p197 = por %p195, %p196
      %p198 = scmp.ne.s32.totalorder %s190, %s192
      %p199 = scmp.eq.s32.totalorder %s41, 7
      %p200 = por %p198, %p199
      %p201 = scmp.ne.s32.totalorder %s192, %s193
      %p202 = scmp.eq.s32.totalorder %s41, 0
      %p203 = por %p201, %p202
      %p204 = scmp.ne.s32.totalorder %s192, %s193
      %p205 = scmp.eq.s32.totalorder %s42, 7
      %p206 = por %p204, %p205
      %p208 = scmp.ne.s32.totalorder %s193, %s207
      %p209 = scmp.eq.s32.totalorder %s42, 0
      %p210 = por %p208, %p209
      %s212 = sadd.s32 %s211, 1
      %p215 = scmp.eq.s32.totalorder %s36, 7
      %p216 = scmp.ne.s32.totalorder %s211, %s213
      %p217 = scmp.eq.s32.totalorder %s36, 0
      %p218 = por %p216, %p217
      %p219 = scmp.ne.s32.totalorder %s211, %s213
      %p220 = scmp.eq.s32.totalorder %s41, 7
      %p221 = por %p219, %p220
      %p222 = scmp.ne.s32.totalorder %s213, %s214
      %p223 = scmp.eq.s32.totalorder %s41, 0
      %p224 = por %p222, %p223
      %p225 = scmp.ne.s32.totalorder %s213, %s214
      %p226 = scmp.eq.s32.totalorder %s42, 7
      %p227 = por %p225, %p226
      %p229 = scmp.ne.s32.totalorder %s214, %s228
      %p230 = scmp.eq.s32.totalorder %s42, 0
      %p231 = por %p229, %p230
      %s233 = sadd.s32 %s232, 1
      %p236 = scmp.eq.s32.totalorder %s36, 7
      %p237 = scmp.ne.s32.totalorder %s232, %s234
      %p238 = scmp.eq.s32.totalorder %s36, 0
      %p239 = por %p237, %p238
      %p240 = scmp.ne.s32.totalorder %s232, %s234
      %p241 = scmp.eq.s32.totalorder %s41, 7
      %p242 = por %p240, %p241
      %p243 = scmp.ne.s32.totalorder %s234, %s235
      %p244 = scmp.eq.s32.totalorder %s41, 0
      %p245 = por %p243, %p244
      %p246 = scmp.ne.s32.totalorder %s234, %s235
      %p247 = scmp.eq.s32.totalorder %s42, 7
      %p248 = por %p246, %p247
      %p250 = scmp.ne.s32.totalorder %s235, %s249
      %p251 = scmp.eq.s32.totalorder %s42, 0
      %p252 = por %p250, %p251
      %s254 = sadd.s32 %s253, 1
      %p257 = scmp.eq.s32.totalorder %s36, 7
      %p258 = scmp.ne.s32.totalorder %s253, %s255
      %p259 = scmp.eq.s32.totalorder %s36, 0
      %p260 = por %p258, %p259
      %p261 = scmp.ne.s32.totalorder %s253, %s255
      %p262 = scmp.eq.s32.totalorder %s41, 7
      %p263 = por %p261, %p262
      %p264 = scmp.ne.s32.totalorder %s255, %s256
      %p265 = scmp.eq.s32.totalorder %s41, 0
      %p266 = por %p264, %p265
      %p267 = scmp.ne.s32.totalorder %s255, %s256
      %p268 = scmp.eq.s32.totalorder %s42, 7
      %p269 = por %p267, %p268
      %p271 = scmp.ne.s32.totalorder %s256, %s270
      %p272 = scmp.eq.s32.totalorder %s42, 0
      %p273 = por %p271, %p272
      %s275 = sadd.s32 %s274, 1
      %p278 = scmp.eq.s32.totalorder %s36, 7
      %p279 = scmp.ne.s32.totalorder %s274, %s276
      %p280 = scmp.eq.s32.totalorder %s36, 0
      %p281 = por %p279, %p280
      %p282 = scmp.ne.s32.totalorder %s274, %s276
      %p283 = scmp.eq.s32.totalorder %s41, 7
      %p284 = por %p282, %p283
      %p285 = scmp.ne.s32.totalorder %s276, %s277
      %p286 = scmp.eq.s32.totalorder %s41, 0
      %p287 = por %p285, %p286
      %p288 = scmp.ne.s32.totalorder %s276, %s277
      %p289 = scmp.eq.s32.totalorder %s42, 7
      %p290 = por %p288, %p289
      %p292 = scmp.ne.s32.totalorder %s277, %s291
      %p293 = scmp.eq.s32.totalorder %s42, 0
      %p294 = por %p292, %p293
      %s296 = sadd.s32 %s295, 1
      %p299 = scmp.eq.s32.totalorder %s36, 7
      %p300 = scmp.ne.s32.totalorder %s295, %s297
      %p301 = scmp.eq.s32.totalorder %s36, 0
      %p302 = por %p300, %p301
      %p303 = scmp.ne.s32.totalorder %s295, %s297
      %p304 = scmp.eq.s32.totalorder %s41, 7
      %p305 = por %p303, %p304
      %p306 = scmp.ne.s32.totalorder %s297, %s298
      %p307 = scmp.eq.s32.totalorder %s41, 0
      %p308 = por %p306, %p307
      %p309 = scmp.ne.s32.totalorder %s297, %s298
      %p310 = scmp.eq.s32.totalorder %s42, 7
      %p311 = por %p309, %p310
      %p313 = scmp.ne.s32.totalorder %s298, %s312
      %p314 = scmp.eq.s32.totalorder %s42, 0
      %p315 = por %p313, %p314
      %s317 = sadd.s32 %s316, 1
      %p320 = scmp.eq.s32.totalorder %s36, 7
      %p321 = scmp.ne.s32.totalorder %s316, %s318
      %p322 = scmp.eq.s32.totalorder %s36, 0
      %p323 = por %p321, %p322
      %p324 = scmp.ne.s32.totalorder %s316, %s318
      %p325 = scmp.eq.s32.totalorder %s41, 7
      %p326 = por %p324, %p325
      %p327 = scmp.ne.s32.totalorder %s318, %s319
      %p328 = scmp.eq.s32.totalorder %s41, 0
      %p329 = por %p327, %p328
      %p330 = scmp.ne.s32.totalorder %s318, %s319
      %p331 = scmp.eq.s32.totalorder %s42, 7
      %p332 = por %p330, %p331
      %p334 = scmp.ne.s32.totalorder %s319, %s333
      %p335 = scmp.eq.s32.totalorder %s42, 0
      %p336 = por %p334, %p335
      %s338 = sadd.s32 %s337, 1
      %p341 = scmp.eq.s32.totalorder %s36, 7
      %p342 = scmp.ne.s32.totalorder %s337, %s339
      %p343 = scmp.eq.s32.totalorder %s36, 0
      %p344 = por %p342, %p343
      %p345 = scmp.ne.s32.totalorder %s337, %s339
      %p346 = scmp.eq.s32.totalorder %s41, 7
      %p347 = por %p345, %p346
      %p348 = scmp.ne.s32.totalorder %s339, %s340
      %p349 = scmp.eq.s32.totalorder %s41, 0
      %p350 = por %p348, %p349
      %p351 = scmp.ne.s32.totalorder %s339, %s340
      %p352 = scmp.eq.s32.totalorder %s42, 7
      %p353 = por %p351, %p352
      %p355 = scmp.ne.s32.totalorder %s340, %s354
      %p356 = scmp.eq.s32.totalorder %s42, 0
      %p357 = por %p355, %p356
      %s359 = sadd.s32 %s358, 1
      %p362 = scmp.eq.s32.totalorder %s36, 7
      %p363 = scmp.ne.s32.totalorder %s358, %s360
      %p364 = scmp.eq.s32.totalorder %s36, 0
      %p365 = por %p363, %p364
      %p366 = scmp.ne.s32.totalorder %s358, %s360
      %p367 = scmp.eq.s32.totalorder %s41, 7
      %p368 = por %p366, %p367
      %p369 = scmp.ne.s32.totalorder %s360, %s361
      %p370 = scmp.eq.s32.totalorder %s41, 0
      %p371 = por %p369, %p370
      %p372 = scmp.ne.s32.totalorder %s360, %s361
      %p373 = scmp.eq.s32.totalorder %s42, 7
      %p374 = por %p372, %p373
      %p376 = scmp.ne.s32.totalorder %s361, %s375
      %p377 = scmp.eq.s32.totalorder %s42, 0
      %p378 = por %p376, %p377
      %s380 = sadd.s32 %s379, 1
      %p383 = scmp.eq.s32.totalorder %s36, 7
      %p384 = scmp.ne.s32.totalorder %s379, %s381
      %p385 = scmp.eq.s32.totalorder %s36, 0
      %p386 = por %p384, %p385
      %p387 = scmp.ne.s32.totalorder %s379, %s381
      %p388 = scmp.eq.s32.totalorder %s41, 7
      %p389 = por %p387, %p388
      %p390 = scmp.ne.s32.totalorder %s381, %s382
      %p391 = scmp.eq.s32.totalorder %s41, 0
      %p392 = por %p390, %p391
      %p393 = scmp.ne.s32.totalorder %s381, %s382
      %p394 = scmp.eq.s32.totalorder %s42, 7
      %p395 = por %p393, %p394
      %p397 = scmp.ne.s32.totalorder %s382, %s396
      %p398 = scmp.eq.s32.totalorder %s42, 0
      %p399 = por %p397, %p398
      %s400 = ssub.s32 %s36, %s43
      %p401 = scmp.eq.s32.totalorder %s400, 0
      %s403 = sadd.s32 %s402, 1
      %s404 = scalar_select %p401, %s402, %s403
      %p407 = pneg %p401
      %p408 = scmp.eq.s32.totalorder %s36, 7
      %p409 = por %p407, %p408
      %p410 = scmp.ne.s32.totalorder %s402, %s405
      %p411 = scmp.eq.s32.totalorder %s36, 0
      %p412 = por %p410, %p411
      %p413 = scmp.ne.s32.totalorder %s402, %s405
      %p414 = scmp.eq.s32.totalorder %s41, 7
      %p415 = por %p413, %p414
      %p416 = scmp.ne.s32.totalorder %s405, %s406
      %p417 = scmp.eq.s32.totalorder %s41, 0
      %p418 = por %p416, %p417
      %p419 = scmp.ne.s32.totalorder %s405, %s406
      %p420 = scmp.eq.s32.totalorder %s42, 7
      %p421 = por %p419, %p420
      %p423 = scmp.ne.s32.totalorder %s406, %s422
      %p424 = scmp.eq.s32.totalorder %s42, 0
      %p425 = por %p423, %p424
      %p426 = scmp.le.s32.totalorder 1, %s36
      %p427 = scmp.lt.s32.totalorder %s36, 9
      %p428 = pnand %p426, %p427
      %p429 = pneg %p428
      // Predicated region
      $region9: #{tpu_custom_call.1} parent=5 // pred_check
        _
      $region10: #{tpu_custom_call.1} parent=5 // pred_check_branch
        %431 = sbr.rel (%p428) target = $region12
      $region11: #{tpu_custom_call.1} parent=5 // pred_region
        %s432 = ssub.s32 %s36, 1
        // Predicated region
        $region13: #{tpu_custom_call.1} parent=11 // pred_check
          %p433 = pneg %p161
        $region14: #{tpu_custom_call.1} parent=11 // pred_check_branch
          %435 = sbr.rel (%p433) target = $region16
        $region15: #{tpu_custom_call.1} parent=11 // pred_region
          %437 = vsyncadd [#allocation9], 0
          %s438 = sshll.u32 %s4, 4
          %s439 = int_to_ptr.hbm [resolvable:$true] %s438
          %s440 = sshll.u32 [#allocation10], 4
          %s441 = int_to_ptr.vmem [resolvable:$true] %s440
          %446 = dma.hbm_to_vmem [thread:$0]  %s439, 4096, %s441, [#allocation9], 128, 128, 8
        $region16: #{tpu_custom_call.1} parent=11 // pred_fallthru
          _
        // Predicated region
        $region17: #{tpu_custom_call.1} parent=11 // pred_check
          %p447 = pneg %p182
        $region18: #{tpu_custom_call.1} parent=11 // pred_check_branch
          %449 = sbr.rel (%p447) target = $region20
        $region19: #{tpu_custom_call.1} parent=11 // pred_region
          _
        $region20: #{tpu_custom_call.1} parent=11 // pred_fallthru
          _
        // Predicated region
        $region21: #{tpu_custom_call.1} parent=11 // pred_check
          %p450 = pneg %p203
        $region22: #{tpu_custom_call.1} parent=11 // pred_check_branch
          %452 = sbr.rel (%p450) target = $region24
        $region23: #{tpu_custom_call.1} parent=11 // pred_region
          %454 = vsyncadd [#allocation12], 0
          %s455 = sshll.u32 %s6, 4
          %s456 = int_to_ptr.hbm [resolvable:$true] %s455
          %s457 = sshll.u32 [#allocation11], 4
          %s458 = int_to_ptr.vmem [resolvable:$true] %s457
          %463 = dma.hbm_to_vmem [thread:$0]  %s456, 4096, %s458, [#allocation12], 128, 128, 8
        $region24: #{tpu_custom_call.1} parent=11 // pred_fallthru
          _
        // Predicated region
        $region25: #{tpu_custom_call.1} parent=11 // pred_check
          %p464 = pneg %p224
        $region26: #{tpu_custom_call.1} parent=11 // pred_check_branch
          %466 = sbr.rel (%p464) target = $region28
        $region27: #{tpu_custom_call.1} parent=11 // pred_region
          _
        $region28: #{tpu_custom_call.1} parent=11 // pred_fallthru
          _
        // Predicated region
        $region29: #{tpu_custom_call.1} parent=11 // pred_check
          %p467 = pneg %p245
        $region30: #{tpu_custom_call.1} parent=11 // pred_check_branch
          %469 = sbr.rel (%p467) target = $region32
        $region31: #{tpu_custom_call.1} parent=11 // pred_region
          %471 = vsyncadd [#allocation12], 0
          %s472 = sshll.u32 %s8, 4
          %s473 = int_to_ptr.hbm [resolvable:$true] %s472
          %s474 = sshll.u32 [#allocation13], 4
          %s475 = int_to_ptr.vmem [resolvable:$true] %s474
          %480 = dma.hbm_to_vmem [thread:$0]  %s473, 4096, %s475, [#allocation12], 128, 128, 8
        $region32: #{tpu_custom_call.1} parent=11 // pred_fallthru
          _
        // Predicated region
        $region33: #{tpu_custom_call.1} parent=11 // pred_check
          %p481 = pneg %p266
        $region34: #{tpu_custom_call.1} parent=11 // pred_check_branch
          %483 = sbr.rel (%p481) target = $region36
        $region35: #{tpu_custom_call.1} parent=11 // pred_region
          _
        $region36: #{tpu_custom_call.1} parent=11 // pred_fallthru
          _
        // Predicated region
        $region37: #{tpu_custom_call.1} parent=11 // pred_check
          %p484 = pneg %p287
        $region38: #{tpu_custom_call.1} parent=11 // pred_check_branch
          %486 = sbr.rel (%p484) target = $region40
        $region39: #{tpu_custom_call.1} parent=11 // pred_region
          %488 = vsyncadd [#allocation15], 0
          %s489 = sshll.u32 %s10, 4
          %s490 = int_to_ptr.hbm [resolvable:$true] %s489
          %s491 = sshll.u32 [#allocation14], 4
          %s492 = int_to_ptr.vmem [resolvable:$true] %s491
          %497 = dma.hbm_to_vmem [thread:$0]  %s490, 4096, %s492, [#allocation15], 128, 128, 8
        $region40: #{tpu_custom_call.1} parent=11 // pred_fallthru
          _
        // Predicated region
        $region41: #{tpu_custom_call.1} parent=11 // pred_check
          %p498 = pneg %p308
        $region42: #{tpu_custom_call.1} parent=11 // pred_check_branch
          %500 = sbr.rel (%p498) target = $region44
        $region43: #{tpu_custom_call.1} parent=11 // pred_region
          _
        $region44: #{tpu_custom_call.1} parent=11 // pred_fallthru
          _
        // Predicated region
        $region45: #{tpu_custom_call.1} parent=11 // pred_check
          %p501 = pneg %p329
        $region46: #{tpu_custom_call.1} parent=11 // pred_check_branch
          %503 = sbr.rel (%p501) target = $region48
        $region47: #{tpu_custom_call.1} parent=11 // pred_region
          %505 = vsyncadd [#allocation15], 0
          %s506 = sshll.u32 %s12, 4
          %s507 = int_to_ptr.hbm [resolvable:$true] %s506
          %s508 = sshll.u32 [#allocation16], 4
          %s509 = int_to_ptr.vmem [resolvable:$true] %s508
          %514 = dma.hbm_to_vmem [thread:$0]  %s507, 4096, %s509, [#allocation15], 128, 128, 8
        $region48: #{tpu_custom_call.1} parent=11 // pred_fallthru
          _
        // Predicated region
        $region49: #{tpu_custom_call.1} parent=11 // pred_check
          %p515 = pneg %p350
        $region50: #{tpu_custom_call.1} parent=11 // pred_check_branch
          %517 = sbr.rel (%p515) target = $region52
        $region51: #{tpu_custom_call.1} parent=11 // pred_region
          _
        $region52: #{tpu_custom_call.1} parent=11 // pred_fallthru
          _
        // Predicated region
        $region53: #{tpu_custom_call.1} parent=11 // pred_check
          %p518 = pneg %p371
        $region54: #{tpu_custom_call.1} parent=11 // pred_check_branch
          %520 = sbr.rel (%p518) target = $region56
        $region55: #{tpu_custom_call.1} parent=11 // pred_region
          _
        $region56: #{tpu_custom_call.1} parent=11 // pred_fallthru
          _
        // Predicated region
        $region57: #{tpu_custom_call.1} parent=11 // pred_check
          %p521 = pneg %p392
        $region58: #{tpu_custom_call.1} parent=11 // pred_check_branch
          %523 = sbr.rel (%p521) target = $region60
        $region59: #{tpu_custom_call.1} parent=11 // pred_region
          _
        $region60: #{tpu_custom_call.1} parent=11 // pred_fallthru
          _
      $region12: #{tpu_custom_call.1} parent=5 // pred_fallthru
        _
      %p524 = scmp.lt.s32.totalorder %s36, 8
      // Predicated region
      $region61: #{tpu_custom_call.1} parent=5 // pred_check
        %p525 = pneg %p524
      $region62: #{tpu_custom_call.1} parent=5 // pred_check_branch
        %527 = sbr.rel (%p525) target = $region64
      $region63: #{tpu_custom_call.1} parent=5 // pred_region
        // Predicated region
        $region65: #{tpu_custom_call.1} parent=63 // pred_check
          %p528 = pneg %p56
        $region66: #{tpu_custom_call.1} parent=63 // pred_check_branch
          %530 = sbr.rel (%p528) target = $region68
        $region67: #{tpu_custom_call.1} parent=63 // pred_region
          %s531 = sand.u32 %s46, 1
          %s532 = scalar_lea.sflag [#allocation3], %s531
          %s533 = sand.u32 %s46, 1
          %s534 = smul.addr %s533, 16
          %s535 = scalar_lea.vmem [#allocation2], %s534
          %s536 = smul.u32 2, %s36
          %538 = vsyncadd %s532, 0
          %s539 = smul.addr %s536, 2
          %s540 = smul.addr %s539, 4
          %s541 = scalar_lea.hbm %s0, %s540
          %s542 = sshll.u32 %s541, 4
          %s543 = int_to_ptr.hbm [resolvable:$true] %s542
          %s544 = sshll.u32 %s535, 4
          %s545 = int_to_ptr.vmem [resolvable:$true] %s544
          %550 = dma.hbm_to_vmem [thread:$0]  %s543, 256, %s545, %s532, 128, 128, 8
        $region68: #{tpu_custom_call.1} parent=63 // pred_fallthru
          _
        // Predicated region
        $region69: #{tpu_custom_call.1} parent=63 // pred_check
          %p551 = pneg %p82
        $region70: #{tpu_custom_call.1} parent=63 // pred_check_branch
          %553 = sbr.rel (%p551) target = $region72
        $region71: #{tpu_custom_call.1} parent=63 // pred_region
          %s554 = sand.u32 %s36, 1
          %s555 = scalar_lea.sflag [#allocation6], %s554
          %s556 = sand.u32 %s72, 1
          %s557 = smul.addr %s556, 32
          %s558 = scalar_lea.vmem [#allocation5], %s557
          %s559 = smul.u32 2, %s36
          %561 = vsyncadd %s555, 0
          %s562 = smul.addr %s559, 4
          %s563 = smul.addr %s562, 4
          %s564 = scalar_lea.hbm %s1, %s563
          %s565 = sshll.u32 %s564, 4
          %s566 = int_to_ptr.hbm [resolvable:$true] %s565
          %s567 = sshll.u32 %s558, 4
          %s568 = int_to_ptr.vmem [resolvable:$true] %s567
          %573 = dma.hbm_to_vmem [thread:$0]  %s566, 512, %s568, %s555, 128, 128, 8
        $region72: #{tpu_custom_call.1} parent=63 // pred_fallthru
          _
        // Predicated region
        $region73: #{tpu_custom_call.1} parent=63 // pred_check
          %p574 = pneg %p108
        $region74: #{tpu_custom_call.1} parent=63 // pred_check_branch
          %576 = sbr.rel (%p574) target = $region76
        $region75: #{tpu_custom_call.1} parent=63 // pred_region
          %s577 = sand.u32 %s36, 1
          %s578 = scalar_lea.sflag [#allocation6], %s577
          %s579 = sand.u32 %s98, 1
          %s580 = smul.addr %s579, 32
          %s581 = scalar_lea.vmem [#allocation7], %s580
          %s582 = smul.u32 2, %s36
          %584 = vsyncadd %s578, 0
          %s585 = smul.addr %s582, 4
          %s586 = smul.addr %s585, 4
          %s587 = scalar_lea.hbm %s2, %s586
          %s588 = sshll.u32 %s587, 4
          %s589 = int_to_ptr.hbm [resolvable:$true] %s588
          %s590 = sshll.u32 %s581, 4
          %s591 = int_to_ptr.vmem [resolvable:$true] %s590
          %596 = dma.hbm_to_vmem [thread:$0]  %s589, 512, %s591, %s578, 128, 128, 8
        $region76: #{tpu_custom_call.1} parent=63 // pred_fallthru
          _
        // Predicated region
        $region77: #{tpu_custom_call.1} parent=63 // pred_check
          %p597 = pneg %p134
        $region78: #{tpu_custom_call.1} parent=63 // pred_check_branch
          %599 = sbr.rel (%p597) target = $region80
        $region79: #{tpu_custom_call.1} parent=63 // pred_region
          %s600 = sand.u32 %s36, 1
          %s601 = scalar_lea.sflag [#allocation9], %s600
          %s602 = sand.u32 %s124, 1
          %s603 = smul.addr %s602, 2
          %s604 = scalar_lea.vmem [#allocation8], %s603
          %s605 = smul.u32 2, %s36
          %607 = vsyncadd %s601, 0
          %s608 = scalar_lea.hbm %s3, %s605
          %s609 = sshll.u32 %s608, 4
          %s610 = int_to_ptr.hbm [resolvable:$true] %s609
          %s611 = sshll.u32 %s604, 4
          %s612 = int_to_ptr.vmem [resolvable:$true] %s611
          %617 = dma.hbm_to_vmem [thread:$0]  %s610, 32, %s612, %s601, 16, 16, 1
        $region80: #{tpu_custom_call.1} parent=63 // pred_fallthru
          _
      $region64: #{tpu_custom_call.1} parent=5 // pred_fallthru
        _
      %p618 = scmp.le.s32.totalorder 1, %s36
      %p619 = scmp.lt.s32.totalorder %s36, 9
      %p620 = pnand %p618, %p619
      %p621 = pneg %p620
      // Predicated region
      $region81: #{tpu_custom_call.1} parent=5 // pred_check
        _
      $region82: #{tpu_custom_call.1} parent=5 // pred_check_branch
        %623 = sbr.rel (%p620) target = $region84
      $region83: #{tpu_custom_call.1} parent=5 // pred_region
        %s624 = ssub.s32 %s36, 1
        %s625 = sand.u32 %s49, 1
        %s626 = scalar_lea.sflag [#allocation3], %s625
        %s627 = sand.u32 %s49, 1
        %s628 = smul.addr %s627, 16
        %s629 = scalar_lea.vmem [#allocation2], %s628
        // Predicated region
        $region85: #{tpu_custom_call.1} parent=83 // pred_check
          %p630 = pneg %p62
        $region86: #{tpu_custom_call.1} parent=83 // pred_check_branch
          %632 = sbr.rel (%p630) target = $region88
        $region87: #{tpu_custom_call.1} parent=83 // pred_region
          %634 = dma.done %s626, 256
        $region88: #{tpu_custom_call.1} parent=83 // pred_fallthru
          _
        %s635 = sand.u32 %s41, 1
        %s636 = scalar_lea.sflag [#allocation6], %s635
        %s637 = sand.u32 %s75, 1
        %s638 = smul.addr %s637, 32
        %s639 = scalar_lea.vmem [#allocation5], %s638
        // Predicated region
        $region89: #{tpu_custom_call.1} parent=83 // pred_check
          %p640 = pneg %p88
        $region90: #{tpu_custom_call.1} parent=83 // pred_check_branch
          %642 = sbr.rel (%p640) target = $region92
        $region91: #{tpu_custom_call.1} parent=83 // pred_region
          %644 = dma.done %s636, 512
        $region92: #{tpu_custom_call.1} parent=83 // pred_fallthru
          _
        %s645 = sand.u32 %s41, 1
        %s646 = scalar_lea.sflag [#allocation6], %s645
        %s647 = sand.u32 %s101, 1
        %s648 = smul.addr %s647, 32
        %s649 = scalar_lea.vmem [#allocation7], %s648
        // Predicated region
        $region93: #{tpu_custom_call.1} parent=83 // pred_check
          %p650 = pneg %p114
        $region94: #{tpu_custom_call.1} parent=83 // pred_check_branch
          %652 = sbr.rel (%p650) target = $region96
        $region95: #{tpu_custom_call.1} parent=83 // pred_region
          %654 = dma.done %s646, 512
        $region96: #{tpu_custom_call.1} parent=83 // pred_fallthru
          _
        %s655 = sand.u32 %s41, 1
        %s656 = scalar_lea.sflag [#allocation9], %s655
        %s657 = sand.u32 %s127, 1
        %s658 = smul.addr %s657, 2
        %s659 = scalar_lea.vmem [#allocation8], %s658
        // Predicated region
        $region97: #{tpu_custom_call.1} parent=83 // pred_check
          %p660 = pneg %p140
        $region98: #{tpu_custom_call.1} parent=83 // pred_check_branch
          %662 = sbr.rel (%p660) target = $region100
        $region99: #{tpu_custom_call.1} parent=83 // pred_region
          %664 = dma.done %s656, 32
        $region100: #{tpu_custom_call.1} parent=83 // pred_fallthru
          _
        // Predicated region
        $region101: #{tpu_custom_call.1} parent=83 // pred_check
          %p665 = pneg %p161
        $region102: #{tpu_custom_call.1} parent=83 // pred_check_branch
          %667 = sbr.rel (%p665) target = $region104
        $region103: #{tpu_custom_call.1} parent=83 // pred_region
          %669 = dma.done [#allocation9], 4096
        $region104: #{tpu_custom_call.1} parent=83 // pred_fallthru
          _
        // Predicated region
        $region105: #{tpu_custom_call.1} parent=83 // pred_check
          %p670 = pneg %p203
        $region106: #{tpu_custom_call.1} parent=83 // pred_check_branch
          %672 = sbr.rel (%p670) target = $region108
        $region107: #{tpu_custom_call.1} parent=83 // pred_region
          %674 = dma.done [#allocation12], 4096
        $region108: #{tpu_custom_call.1} parent=83 // pred_fallthru
          _
        // Predicated region
        $region109: #{tpu_custom_call.1} parent=83 // pred_check
          %p675 = pneg %p245
        $region110: #{tpu_custom_call.1} parent=83 // pred_check_branch
          %677 = sbr.rel (%p675) target = $region112
        $region111: #{tpu_custom_call.1} parent=83 // pred_region
          %679 = dma.done [#allocation12], 4096
        $region112: #{tpu_custom_call.1} parent=83 // pred_fallthru
          _
        // Predicated region
        $region113: #{tpu_custom_call.1} parent=83 // pred_check
          %p680 = pneg %p287
        $region114: #{tpu_custom_call.1} parent=83 // pred_check_branch
          %682 = sbr.rel (%p680) target = $region116
        $region115: #{tpu_custom_call.1} parent=83 // pred_region
          %684 = dma.done [#allocation15], 4096
        $region116: #{tpu_custom_call.1} parent=83 // pred_fallthru
          _
        // Predicated region
        $region117: #{tpu_custom_call.1} parent=83 // pred_check
          %p685 = pneg %p329
        $region118: #{tpu_custom_call.1} parent=83 // pred_check_branch
          %687 = sbr.rel (%p685) target = $region120
        $region119: #{tpu_custom_call.1} parent=83 // pred_region
          %689 = dma.done [#allocation15], 4096
        $region120: #{tpu_custom_call.1} parent=83 // pred_fallthru
          _
        %s690 = sand.u32 %s49, 1
        %s691 = scalar_lea.sflag [#allocation3], %s690
        %s692 = sand.u32 %s49, 1
        %s693 = smul.addr %s692, 16
        %s694 = scalar_lea.vmem [#allocation2], %s693
        %p695 = pneg %p62
        %p696 = pneg %p59
        %s697 = sand.u32 %s41, 1
        %s698 = scalar_lea.sflag [#allocation6], %s697
        %s699 = sand.u32 %s75, 1
        %s700 = smul.addr %s699, 32
        %s701 = scalar_lea.vmem [#allocation5], %s700
        %p702 = pneg %p88
        %p703 = pneg %p85
        %s704 = sand.u32 %s41, 1
        %s705 = scalar_lea.sflag [#allocation6], %s704
        %s706 = sand.u32 %s101, 1
        %s707 = smul.addr %s706, 32
        %s708 = scalar_lea.vmem [#allocation7], %s707
        %p709 = pneg %p114
        %p710 = pneg %p111
        %s711 = sand.u32 %s41, 1
        %s712 = scalar_lea.sflag [#allocation9], %s711
        %s713 = sand.u32 %s127, 1
        %s714 = smul.addr %s713, 2
        %s715 = scalar_lea.vmem [#allocation8], %s714
        %p716 = pneg %p140
        %p717 = pneg %p137
        %p718 = pneg %p161
        %p719 = pneg %p158
        %p720 = pneg %p182
        %p721 = pneg %p179
        %p722 = pneg %p203
        %p723 = pneg %p200
        %p724 = pneg %p224
        %p725 = pneg %p221
        %p726 = pneg %p245
        %p727 = pneg %p242
        %p728 = pneg %p266
        %p729 = pneg %p263
        %p730 = pneg %p287
        %p731 = pneg %p284
        %p732 = pneg %p308
        %p733 = pneg %p305
        %p734 = pneg %p329
        %p735 = pneg %p326
        %p736 = pneg %p350
        %p737 = pneg %p347
        %p738 = pneg %p371
        %p739 = pneg %p368
        %p740 = pneg %p392
        %p741 = pneg %p389
        %p742 = pneg %p418
        %p743 = pneg %p415
        %s744 = sand.u32 %s405, 1
        %s745 = scalar_lea.sflag [#allocation4], %s744
        %s746 = sand.u32 %s405, 1
        %s747 = smul.addr %s746, 32
        %s748 = scalar_lea.vmem [#allocation17], %s747
        %s749 = smul.u32 2, %s41
        %s750 = smul.u32 2, %s41
        %s751 = smul.u32 2, %s41
        %s752 = smul.u32 2, %s41
        %s753 = smul.u32 2, %s41
        %v755 = vld [vmem:[%s629] sm:$0xff]
        %v756 = vld [vmem:[%s629 + $0x8] sm:$0xff]
        %v757 = vld [vmem:[%s639] sm:$0xff]
        %v758 = vld [vmem:[%s639 + $0x8] sm:$0xff]
        %v759 = vld [vmem:[%s639 + $0x10] sm:$0xff]
        %v760 = vld [vmem:[%s639 + $0x18] sm:$0xff]
        %v761 = vld [vmem:[%s649] sm:$0xff]
        %v762 = vld [vmem:[%s649 + $0x8] sm:$0xff]
        %v763 = vld [vmem:[%s649 + $0x10] sm:$0xff]
        %v764 = vld [vmem:[%s649 + $0x18] sm:$0xff]
        %v765 = vld [vmem:[#allocation10] sm:$0xff]
        %v766 = vld [vmem:[#allocation10 + $0x8] sm:$0xff]
        %v767 = vld [vmem:[#allocation10 + $0x10] sm:$0xff]
        %v768 = vld [vmem:[#allocation10 + $0x18] sm:$0xff]
        %v769 = vld [vmem:[#allocation10 + $0x20] sm:$0xff]
        %v770 = vld [vmem:[#allocation10 + $0x28] sm:$0xff]
        %v771 = vld [vmem:[#allocation10 + $0x30] sm:$0xff]
        %v772 = vld [vmem:[#allocation10 + $0x38] sm:$0xff]
        %v773 = vld [vmem:[#allocation10 + $0x40] sm:$0xff]
        %v774 = vld [vmem:[#allocation10 + $0x48] sm:$0xff]
        %v775 = vld [vmem:[#allocation10 + $0x50] sm:$0xff]
        %v776 = vld [vmem:[#allocation10 + $0x58] sm:$0xff]
        %v777 = vld [vmem:[#allocation10 + $0x60] sm:$0xff]
        %v778 = vld [vmem:[#allocation10 + $0x68] sm:$0xff]
        %v779 = vld [vmem:[#allocation10 + $0x70] sm:$0xff]
        %v780 = vld [vmem:[#allocation10 + $0x78] sm:$0xff]
        %v781 = vld [vmem:[#allocation10 + $0x80] sm:$0xff]
        %v782 = vld [vmem:[#allocation10 + $0x88] sm:$0xff]
        %v783 = vld [vmem:[#allocation10 + $0x90] sm:$0xff]
        %v784 = vld [vmem:[#allocation10 + $0x98] sm:$0xff]
        %v785 = vld [vmem:[#allocation10 + $0xa0] sm:$0xff]
        %v786 = vld [vmem:[#allocation10 + $0xa8] sm:$0xff]
        %v787 = vld [vmem:[#allocation10 + $0xb0] sm:$0xff]
        %v788 = vld [vmem:[#allocation10 + $0xb8] sm:$0xff]
        %v789 = vld [vmem:[#allocation10 + $0xc0] sm:$0xff]
        %v790 = vld [vmem:[#allocation10 + $0xc8] sm:$0xff]
        %v791 = vld [vmem:[#allocation10 + $0xd0] sm:$0xff]
        %v792 = vld [vmem:[#allocation10 + $0xd8] sm:$0xff]
        %v793 = vld [vmem:[#allocation10 + $0xe0] sm:$0xff]
        %v794 = vld [vmem:[#allocation10 + $0xe8] sm:$0xff]
        %v795 = vld [vmem:[#allocation10 + $0xf0] sm:$0xff]
        %v796 = vld [vmem:[#allocation10 + $0xf8] sm:$0xff]
        %v797 = vld [vmem:[%s5] sm:$0x3]
        %v799 = vperm.slane %v797, 0
        %v800 = vperm.slane %v797, 1
        %v805 = vunpack.c.l.b16 %v755
        %v806 = vunpack.c.h.b16 %v755
        %v807 = vunpack.c.l.b16 %v756
        %v808 = vunpack.c.h.b16 %v756
        %v809 = vpack.c.b16 %v807, %v805
        %v810 = vpack.c.b16 %v808, %v806
        %v845 = vunpack.c.l.b16 %v765
        %v846 = vunpack.c.h.b16 %v765
        %v847 = vunpack.c.l.b16 %v766
        %v848 = vunpack.c.h.b16 %v766
        %v849 = vunpack.c.l.b16 %v767
        %v850 = vunpack.c.h.b16 %v767
        %v851 = vunpack.c.l.b16 %v768
        %v852 = vunpack.c.h.b16 %v768
        %v853 = vunpack.c.l.b16 %v769
        %v854 = vunpack.c.h.b16 %v769
        %v855 = vunpack.c.l.b16 %v770
        %v856 = vunpack.c.h.b16 %v770
        %v857 = vunpack.c.l.b16 %v771
        %v858 = vunpack.c.h.b16 %v771
        %v859 = vunpack.c.l.b16 %v772
        %v860 = vunpack.c.h.b16 %v772
        %v861 = vunpack.c.l.b16 %v773
        %v862 = vunpack.c.h.b16 %v773
        %v863 = vunpack.c.l.b16 %v774
        %v864 = vunpack.c.h.b16 %v774
        %v865 = vunpack.c.l.b16 %v775
        %v866 = vunpack.c.h.b16 %v775
        %v867 = vunpack.c.l.b16 %v776
        %v868 = vunpack.c.h.b16 %v776
        %v869 = vunpack.c.l.b16 %v777
        %v870 = vunpack.c.h.b16 %v777
        %v871 = vunpack.c.l.b16 %v778
        %v872 = vunpack.c.h.b16 %v778
        %v873 = vunpack.c.l.b16 %v779
        %v874 = vunpack.c.h.b16 %v779
        %v875 = vunpack.c.l.b16 %v780
        %v876 = vunpack.c.h.b16 %v780
        %v877 = vunpack.c.l.b16 %v781
        %v878 = vunpack.c.h.b16 %v781
        %v879 = vunpack.c.l.b16 %v782
        %v880 = vunpack.c.h.b16 %v782
        %v881 = vunpack.c.l.b16 %v783
        %v882 = vunpack.c.h.b16 %v783
        %v883 = vunpack.c.l.b16 %v784
        %v884 = vunpack.c.h.b16 %v784
        %v885 = vunpack.c.l.b16 %v785
        %v886 = vunpack.c.h.b16 %v785
        %v887 = vunpack.c.l.b16 %v786
        %v888 = vunpack.c.h.b16 %v786
        %v889 = vunpack.c.l.b16 %v787
        %v890 = vunpack.c.h.b16 %v787
        %v891 = vunpack.c.l.b16 %v788
        %v892 = vunpack.c.h.b16 %v788
        %v893 = vunpack.c.l.b16 %v789
        %v894 = vunpack.c.h.b16 %v789
        %v895 = vunpack.c.l.b16 %v790
        %v896 = vunpack.c.h.b16 %v790
        %v897 = vunpack.c.l.b16 %v791
        %v898 = vunpack.c.h.b16 %v791
        %v899 = vunpack.c.l.b16 %v792
        %v900 = vunpack.c.h.b16 %v792
        %v901 = vunpack.c.l.b16 %v793
        %v902 = vunpack.c.h.b16 %v793
        %v903 = vunpack.c.l.b16 %v794
        %v904 = vunpack.c.h.b16 %v794
        %v905 = vunpack.c.l.b16 %v795
        %v906 = vunpack.c.h.b16 %v795
        %v907 = vunpack.c.l.b16 %v796
        %v908 = vunpack.c.h.b16 %v796
        %v909 = vpack.c.b16 %v847, %v845
        %v910 = vpack.c.b16 %v848, %v846
        %v911 = vpack.c.b16 %v851, %v849
        %v912 = vpack.c.b16 %v852, %v850
        %v913 = vpack.c.b16 %v855, %v853
        %v914 = vpack.c.b16 %v856, %v854
        %v915 = vpack.c.b16 %v859, %v857
        %v916 = vpack.c.b16 %v860, %v858
        %v917 = vpack.c.b16 %v863, %v861
        %v918 = vpack.c.b16 %v864, %v862
        %v919 = vpack.c.b16 %v867, %v865
        %v920 = vpack.c.b16 %v868, %v866
        %v921 = vpack.c.b16 %v871, %v869
        %v922 = vpack.c.b16 %v872, %v870
        %v923 = vpack.c.b16 %v875, %v873
        %v924 = vpack.c.b16 %v876, %v874
        %v925 = vpack.c.b16 %v879, %v877
        %v926 = vpack.c.b16 %v880, %v878
        %v927 = vpack.c.b16 %v883, %v881
        %v928 = vpack.c.b16 %v884, %v882
        %v929 = vpack.c.b16 %v887, %v885
        %v930 = vpack.c.b16 %v888, %v886
        %v931 = vpack.c.b16 %v891, %v889
        %v932 = vpack.c.b16 %v892, %v890
        %v933 = vpack.c.b16 %v895, %v893
        %v934 = vpack.c.b16 %v896, %v894
        %v935 = vpack.c.b16 %v899, %v897
        %v936 = vpack.c.b16 %v900, %v898
        %v937 = vpack.c.b16 %v903, %v901
        %v938 = vpack.c.b16 %v904, %v902
        %v939 = vpack.c.b16 %v907, %v905
        %v940 = vpack.c.b16 %v908, %v906
        %973 = vmatpush.bf16.msra.mxu0 %v923
        %974 = vmatpush.bf16.msra.mxu0 %v921
        %975 = vmatpush.bf16.msra.mxu0 %v919
        %976 = vmatpush.bf16.msra.mxu0 %v917
        %977 = vmatpush.bf16.msra.mxu0 %v915
        %978 = vmatpush.bf16.msra.mxu0 %v913
        %979 = vmatpush.bf16.msra.mxu0 %v911
        %980 = vmatpush.bf16.msra.mxu0 %v909
        %981 = vmatmul.bf16.gmra.mxu0 %v809
        %v982 = vpop.f32.mrf.mxu0
        %v983 = vadd.f32 %v799, %v982
        %v984 = vpop.f32.mrf.mxu0
        %v985 = vadd.f32 %v799, %v984
        %986 = vdwg.mxu0
        %987 = vmatpush.bf16.msra.mxu0 %v939
        %988 = vmatpush.bf16.msra.mxu0 %v937
        %989 = vmatpush.bf16.msra.mxu0 %v935
        %990 = vmatpush.bf16.msra.mxu0 %v933
        %991 = vmatpush.bf16.msra.mxu0 %v931
        %992 = vmatpush.bf16.msra.mxu0 %v929
        %993 = vmatpush.bf16.msra.mxu0 %v927
        %994 = vmatpush.bf16.msra.mxu0 %v925
        %995 = vmatmul.bf16.gmra.mxu0 %v810
        %v996 = vpop.f32.mrf.mxu0
        %v997 = vadd.f32 %v983, %v996
        %v998 = vpop.f32.mrf.mxu0
        %v999 = vadd.f32 %v985, %v998
        %1000 = vdwg.mxu0
        %1001 = vmatpush.bf16.msra.mxu0 %v924
        %1002 = vmatpush.bf16.msra.mxu0 %v922
        %1003 = vmatpush.bf16.msra.mxu0 %v920
        %1004 = vmatpush.bf16.msra.mxu0 %v918
        %1005 = vmatpush.bf16.msra.mxu0 %v916
        %1006 = vmatpush.bf16.msra.mxu0 %v914
        %1007 = vmatpush.bf16.msra.mxu0 %v912
        %1008 = vmatpush.bf16.msra.mxu0 %v910
        %1009 = vmatmul.bf16.gmra.mxu0 %v809
        %v1010 = vpop.f32.mrf.mxu0
        %v1011 = vadd.f32 %v800, %v1010
        %v1012 = vpop.f32.mrf.mxu0
        %v1013 = vadd.f32 %v800, %v1012
        %1014 = vdwg.mxu0
        %1015 = vmatpush.bf16.msra.mxu0 %v940
        %1016 = vmatpush.bf16.msra.mxu0 %v938
        %1017 = vmatpush.bf16.msra.mxu0 %v936
        %1018 = vmatpush.bf16.msra.mxu0 %v934
        %1019 = vmatpush.bf16.msra.mxu0 %v932
        %1020 = vmatpush.bf16.msra.mxu0 %v930
        %1021 = vmatpush.bf16.msra.mxu0 %v928
        %1022 = vmatpush.bf16.msra.mxu0 %v926
        %1023 = vmatmul.bf16.gmra.mxu0 %v810
        %v1024 = vpop.f32.mrf.mxu0
        %v1025 = vadd.f32 %v1011, %v1024
        %v1026 = vpop.f32.mrf.mxu0
        %v1027 = vadd.f32 %v1013, %v1026
        %1028 = vdwg.mxu0
        %v1029 = vld [vmem:[#allocation11] sm:$0xff]
        %v1030 = vld [vmem:[#allocation11 + $0x8] sm:$0xff]
        %v1031 = vld [vmem:[#allocation11 + $0x10] sm:$0xff]
        %v1032 = vld [vmem:[#allocation11 + $0x18] sm:$0xff]
        %v1033 = vld [vmem:[#allocation11 + $0x20] sm:$0xff]
        %v1034 = vld [vmem:[#allocation11 + $0x28] sm:$0xff]
        %v1035 = vld [vmem:[#allocation11 + $0x30] sm:$0xff]
        %v1036 = vld [vmem:[#allocation11 + $0x38] sm:$0xff]
        %v1037 = vld [vmem:[#allocation11 + $0x40] sm:$0xff]
        %v1038 = vld [vmem:[#allocation11 + $0x48] sm:$0xff]
        %v1039 = vld [vmem:[#allocation11 + $0x50] sm:$0xff]
        %v1040 = vld [vmem:[#allocation11 + $0x58] sm:$0xff]
        %v1041 = vld [vmem:[#allocation11 + $0x60] sm:$0xff]
        %v1042 = vld [vmem:[#allocation11 + $0x68] sm:$0xff]
        %v1043 = vld [vmem:[#allocation11 + $0x70] sm:$0xff]
        %v1044 = vld [vmem:[#allocation11 + $0x78] sm:$0xff]
        %v1045 = vld [vmem:[#allocation11 + $0x80] sm:$0xff]
        %v1046 = vld [vmem:[#allocation11 + $0x88] sm:$0xff]
        %v1047 = vld [vmem:[#allocation11 + $0x90] sm:$0xff]
        %v1048 = vld [vmem:[#allocation11 + $0x98] sm:$0xff]
        %v1049 = vld [vmem:[#allocation11 + $0xa0] sm:$0xff]
        %v1050 = vld [vmem:[#allocation11 + $0xa8] sm:$0xff]
        %v1051 = vld [vmem:[#allocation11 + $0xb0] sm:$0xff]
        %v1052 = vld [vmem:[#allocation11 + $0xb8] sm:$0xff]
        %v1053 = vld [vmem:[#allocation11 + $0xc0] sm:$0xff]
        %v1054 = vld [vmem:[#allocation11 + $0xc8] sm:$0xff]
        %v1055 = vld [vmem:[#allocation11 + $0xd0] sm:$0xff]
        %v1056 = vld [vmem:[#allocation11 + $0xd8] sm:$0xff]
        %v1057 = vld [vmem:[#allocation11 + $0xe0] sm:$0xff]
        %v1058 = vld [vmem:[#allocation11 + $0xe8] sm:$0xff]
        %v1059 = vld [vmem:[#allocation11 + $0xf0] sm:$0xff]
        %v1060 = vld [vmem:[#allocation11 + $0xf8] sm:$0xff]
        %v1061 = vld [vmem:[%s7] sm:$0x3]
        %v1063 = vperm.slane %v1061, 0
        %v1064 = vperm.slane %v1061, 1
        %v1071 = vunpack.c.l.b16 %v757
        %v1072 = vunpack.c.h.b16 %v757
        %v1073 = vunpack.c.l.b16 %v758
        %v1074 = vunpack.c.h.b16 %v758
        %v1075 = vunpack.c.l.b16 %v759
        %v1076 = vunpack.c.h.b16 %v759
        %v1077 = vunpack.c.l.b16 %v760
        %v1078 = vunpack.c.h.b16 %v760
        %v1079 = vpack.c.b16 %v1073, %v1071
        %v1080 = vpack.c.b16 %v1074, %v1072
        %v1081 = vpack.c.b16 %v1077, %v1075
        %v1082 = vpack.c.b16 %v1078, %v1076
        %v1119 = vunpack.c.l.b16 %v1029
        %v1120 = vunpack.c.h.b16 %v1029
        %v1121 = vunpack.c.l.b16 %v1030
        %v1122 = vunpack.c.h.b16 %v1030
        %v1123 = vunpack.c.l.b16 %v1031
        %v1124 = vunpack.c.h.b16 %v1031
        %v1125 = vunpack.c.l.b16 %v1032
        %v1126 = vunpack.c.h.b16 %v1032
        %v1127 = vunpack.c.l.b16 %v1033
        %v1128 = vunpack.c.h.b16 %v1033
        %v1129 = vunpack.c.l.b16 %v1034
        %v1130 = vunpack.c.h.b16 %v1034
        %v1131 = vunpack.c.l.b16 %v1035
        %v1132 = vunpack.c.h.b16 %v1035
        %v1133 = vunpack.c.l.b16 %v1036
        %v1134 = vunpack.c.h.b16 %v1036
        %v1135 = vunpack.c.l.b16 %v1037
        %v1136 = vunpack.c.h.b16 %v1037
        %v1137 = vunpack.c.l.b16 %v1038
        %v1138 = vunpack.c.h.b16 %v1038
        %v1139 = vunpack.c.l.b16 %v1039
        %v1140 = vunpack.c.h.b16 %v1039
        %v1141 = vunpack.c.l.b16 %v1040
        %v1142 = vunpack.c.h.b16 %v1040
        %v1143 = vunpack.c.l.b16 %v1041
        %v1144 = vunpack.c.h.b16 %v1041
        %v1145 = vunpack.c.l.b16 %v1042
        %v1146 = vunpack.c.h.b16 %v1042
        %v1147 = vunpack.c.l.b16 %v1043
        %v1148 = vunpack.c.h.b16 %v1043
        %v1149 = vunpack.c.l.b16 %v1044
        %v1150 = vunpack.c.h.b16 %v1044
        %v1151 = vunpack.c.l.b16 %v1045
        %v1152 = vunpack.c.h.b16 %v1045
        %v1153 = vunpack.c.l.b16 %v1046
        %v1154 = vunpack.c.h.b16 %v1046
        %v1155 = vunpack.c.l.b16 %v1047
        %v1156 = vunpack.c.h.b16 %v1047
        %v1157 = vunpack.c.l.b16 %v1048
        %v1158 = vunpack.c.h.b16 %v1048
        %v1159 = vunpack.c.l.b16 %v1049
        %v1160 = vunpack.c.h.b16 %v1049
        %v1161 = vunpack.c.l.b16 %v1050
        %v1162 = vunpack.c.h.b16 %v1050
        %v1163 = vunpack.c.l.b16 %v1051
        %v1164 = vunpack.c.h.b16 %v1051
        %v1165 = vunpack.c.l.b16 %v1052
        %v1166 = vunpack.c.h.b16 %v1052
        %v1167 = vunpack.c.l.b16 %v1053
        %v1168 = vunpack.c.h.b16 %v1053
        %v1169 = vunpack.c.l.b16 %v1054
        %v1170 = vunpack.c.h.b16 %v1054
        %v1171 = vunpack.c.l.b16 %v1055
        %v1172 = vunpack.c.h.b16 %v1055
        %v1173 = vunpack.c.l.b16 %v1056
        %v1174 = vunpack.c.h.b16 %v1056
        %v1175 = vunpack.c.l.b16 %v1057
        %v1176 = vunpack.c.h.b16 %v1057
        %v1177 = vunpack.c.l.b16 %v1058
        %v1178 = vunpack.c.h.b16 %v1058
        %v1179 = vunpack.c.l.b16 %v1059
        %v1180 = vunpack.c.h.b16 %v1059
        %v1181 = vunpack.c.l.b16 %v1060
        %v1182 = vunpack.c.h.b16 %v1060
        %v1183 = vpack.c.b16 %v1121, %v1119
        %v1184 = vpack.c.b16 %v1122, %v1120
        %v1185 = vpack.c.b16 %v1125, %v1123
        %v1186 = vpack.c.b16 %v1126, %v1124
        %v1187 = vpack.c.b16 %v1129, %v1127
        %v1188 = vpack.c.b16 %v1130, %v1128
        %v1189 = vpack.c.b16 %v1133, %v1131
        %v1190 = vpack.c.b16 %v1134, %v1132
        %v1191 = vpack.c.b16 %v1137, %v1135
        %v1192 = vpack.c.b16 %v1138, %v1136
        %v1193 = vpack.c.b16 %v1141, %v1139
        %v1194 = vpack.c.b16 %v1142, %v1140
        %v1195 = vpack.c.b16 %v1145, %v1143
        %v1196 = vpack.c.b16 %v1146, %v1144
        %v1197 = vpack.c.b16 %v1149, %v1147
        %v1198 = vpack.c.b16 %v1150, %v1148
        %v1199 = vpack.c.b16 %v1153, %v1151
        %v1200 = vpack.c.b16 %v1154, %v1152
        %v1201 = vpack.c.b16 %v1157, %v1155
        %v1202 = vpack.c.b16 %v1158, %v1156
        %v1203 = vpack.c.b16 %v1161, %v1159
        %v1204 = vpack.c.b16 %v1162, %v1160
        %v1205 = vpack.c.b16 %v1165, %v1163
        %v1206 = vpack.c.b16 %v1166, %v1164
        %v1207 = vpack.c.b16 %v1169, %v1167
        %v1208 = vpack.c.b16 %v1170, %v1168
        %v1209 = vpack.c.b16 %v1173, %v1171
        %v1210 = vpack.c.b16 %v1174, %v1172
        %v1211 = vpack.c.b16 %v1177, %v1175
        %v1212 = vpack.c.b16 %v1178, %v1176
        %v1213 = vpack.c.b16 %v1181, %v1179
        %v1214 = vpack.c.b16 %v1182, %v1180
        %1247 = vmatpush.bf16.msra.mxu0 %v1197
        %1248 = vmatpush.bf16.msra.mxu0 %v1195
        %1249 = vmatpush.bf16.msra.mxu0 %v1193
        %1250 = vmatpush.bf16.msra.mxu0 %v1191
        %1251 = vmatpush.bf16.msra.mxu0 %v1189
        %1252 = vmatpush.bf16.msra.mxu0 %v1187
        %1253 = vmatpush.bf16.msra.mxu0 %v1185
        %1254 = vmatpush.bf16.msra.mxu0 %v1183
        %1255 = vmatmul.bf16.gmra.mxu0 %v1079
        %v1256 = vpop.f32.mrf.mxu0
        %v1257 = vadd.f32 %v1063, %v1256
        %v1258 = vpop.f32.mrf.mxu0
        %v1259 = vadd.f32 %v1063, %v1258
        %1260 = vmatmul.bf16.gmra.mxu0 %v1081
        %v1261 = vpop.f32.mrf.mxu0
        %v1262 = vadd.f32 %v1063, %v1261
        %v1263 = vpop.f32.mrf.mxu0
        %v1264 = vadd.f32 %v1063, %v1263
        %1265 = vdwg.mxu0
        %1266 = vmatpush.bf16.msra.mxu0 %v1213
        %1267 = vmatpush.bf16.msra.mxu0 %v1211
        %1268 = vmatpush.bf16.msra.mxu0 %v1209
        %1269 = vmatpush.bf16.msra.mxu0 %v1207
        %1270 = vmatpush.bf16.msra.mxu0 %v1205
        %1271 = vmatpush.bf16.msra.mxu0 %v1203
        %1272 = vmatpush.bf16.msra.mxu0 %v1201
        %1273 = vmatpush.bf16.msra.mxu0 %v1199
        %1274 = vmatmul.bf16.gmra.mxu0 %v1080
        %v1275 = vpop.f32.mrf.mxu0
        %v1276 = vadd.f32 %v1257, %v1275
        %v1277 = vpop.f32.mrf.mxu0
        %v1278 = vadd.f32 %v1259, %v1277
        %1279 = vmatmul.bf16.gmra.mxu0 %v1082
        %v1280 = vpop.f32.mrf.mxu0
        %v1281 = vadd.f32 %v1262, %v1280
        %v1282 = vpop.f32.mrf.mxu0
        %v1283 = vadd.f32 %v1264, %v1282
        %1284 = vdwg.mxu0
        %1285 = vmatpush.bf16.msra.mxu0 %v1198
        %1286 = vmatpush.bf16.msra.mxu0 %v1196
        %1287 = vmatpush.bf16.msra.mxu0 %v1194
        %1288 = vmatpush.bf16.msra.mxu0 %v1192
        %1289 = vmatpush.bf16.msra.mxu0 %v1190
        %1290 = vmatpush.bf16.msra.mxu0 %v1188
        %1291 = vmatpush.bf16.msra.mxu0 %v1186
        %1292 = vmatpush.bf16.msra.mxu0 %v1184
        %1293 = vmatmul.bf16.gmra.mxu0 %v1079
        %v1294 = vpop.f32.mrf.mxu0
        %v1295 = vadd.f32 %v1064, %v1294
        %v1296 = vpop.f32.mrf.mxu0
        %v1297 = vadd.f32 %v1064, %v1296
        %1298 = vmatmul.bf16.gmra.mxu0 %v1081
        %v1299 = vpop.f32.mrf.mxu0
        %v1300 = vadd.f32 %v1064, %v1299
        %v1301 = vpop.f32.mrf.mxu0
        %v1302 = vadd.f32 %v1064, %v1301
        %1303 = vdwg.mxu0
        %1304 = vmatpush.bf16.msra.mxu0 %v1214
        %1305 = vmatpush.bf16.msra.mxu0 %v1212
        %1306 = vmatpush.bf16.msra.mxu0 %v1210
        %1307 = vmatpush.bf16.msra.mxu0 %v1208
        %1308 = vmatpush.bf16.msra.mxu0 %v1206
        %1309 = vmatpush.bf16.msra.mxu0 %v1204
        %1310 = vmatpush.bf16.msra.mxu0 %v1202
        %1311 = vmatpush.bf16.msra.mxu0 %v1200
        %1312 = vmatmul.bf16.gmra.mxu0 %v1080
        %v1313 = vpop.f32.mrf.mxu0
        %v1314 = vadd.f32 %v1295, %v1313
        %v1315 = vpop.f32.mrf.mxu0
        %v1316 = vadd.f32 %v1297, %v1315
        %1317 = vmatmul.bf16.gmra.mxu0 %v1082
        %v1318 = vpop.f32.mrf.mxu0
        %v1319 = vadd.f32 %v1300, %v1318
        %v1320 = vpop.f32.mrf.mxu0
        %v1321 = vadd.f32 %v1302, %v1320
        %1322 = vdwg.mxu0
        %v1323 = vld [vmem:[#allocation13] sm:$0xff]
        %v1324 = vld [vmem:[#allocation13 + $0x8] sm:$0xff]
        %v1325 = vld [vmem:[#allocation13 + $0x10] sm:$0xff]
        %v1326 = vld [vmem:[#allocation13 + $0x18] sm:$0xff]
        %v1327 = vld [vmem:[#allocation13 + $0x20] sm:$0xff]
        %v1328 = vld [vmem:[#allocation13 + $0x28] sm:$0xff]
        %v1329 = vld [vmem:[#allocation13 + $0x30] sm:$0xff]
        %v1330 = vld [vmem:[#allocation13 + $0x38] sm:$0xff]
        %v1331 = vld [vmem:[#allocation13 + $0x40] sm:$0xff]
        %v1332 = vld [vmem:[#allocation13 + $0x48] sm:$0xff]
        %v1333 = vld [vmem:[#allocation13 + $0x50] sm:$0xff]
        %v1334 = vld [vmem:[#allocation13 + $0x58] sm:$0xff]
        %v1335 = vld [vmem:[#allocation13 + $0x60] sm:$0xff]
        %v1336 = vld [vmem:[#allocation13 + $0x68] sm:$0xff]
        %v1337 = vld [vmem:[#allocation13 + $0x70] sm:$0xff]
        %v1338 = vld [vmem:[#allocation13 + $0x78] sm:$0xff]
        %v1339 = vld [vmem:[#allocation13 + $0x80] sm:$0xff]
        %v1340 = vld [vmem:[#allocation13 + $0x88] sm:$0xff]
        %v1341 = vld [vmem:[#allocation13 + $0x90] sm:$0xff]
        %v1342 = vld [vmem:[#allocation13 + $0x98] sm:$0xff]
        %v1343 = vld [vmem:[#allocation13 + $0xa0] sm:$0xff]
        %v1344 = vld [vmem:[#allocation13 + $0xa8] sm:$0xff]
        %v1345 = vld [vmem:[#allocation13 + $0xb0] sm:$0xff]
        %v1346 = vld [vmem:[#allocation13 + $0xb8] sm:$0xff]
        %v1347 = vld [vmem:[#allocation13 + $0xc0] sm:$0xff]
        %v1348 = vld [vmem:[#allocation13 + $0xc8] sm:$0xff]
        %v1349 = vld [vmem:[#allocation13 + $0xd0] sm:$0xff]
        %v1350 = vld [vmem:[#allocation13 + $0xd8] sm:$0xff]
        %v1351 = vld [vmem:[#allocation13 + $0xe0] sm:$0xff]
        %v1352 = vld [vmem:[#allocation13 + $0xe8] sm:$0xff]
        %v1353 = vld [vmem:[#allocation13 + $0xf0] sm:$0xff]
        %v1354 = vld [vmem:[#allocation13 + $0xf8] sm:$0xff]
        %v1355 = vld [vmem:[%s9] sm:$0x3]
        %v1357 = vperm.slane %v1355, 0
        %v1358 = vperm.slane %v1355, 1
        %v1365 = vunpack.c.l.b16 %v761
        %v1366 = vunpack.c.h.b16 %v761
        %v1367 = vunpack.c.l.b16 %v762
        %v1368 = vunpack.c.h.b16 %v762
        %v1369 = vunpack.c.l.b16 %v763
        %v1370 = vunpack.c.h.b16 %v763
        %v1371 = vunpack.c.l.b16 %v764
        %v1372 = vunpack.c.h.b16 %v764
        %v1373 = vpack.c.b16 %v1367, %v1365
        %v1374 = vpack.c.b16 %v1368, %v1366
        %v1375 = vpack.c.b16 %v1371, %v1369
        %v1376 = vpack.c.b16 %v1372, %v1370
        %v1413 = vunpack.c.l.b16 %v1323
        %v1414 = vunpack.c.h.b16 %v1323
        %v1415 = vunpack.c.l.b16 %v1324
        %v1416 = vunpack.c.h.b16 %v1324
        %v1417 = vunpack.c.l.b16 %v1325
        %v1418 = vunpack.c.h.b16 %v1325
        %v1419 = vunpack.c.l.b16 %v1326
        %v1420 = vunpack.c.h.b16 %v1326
        %v1421 = vunpack.c.l.b16 %v1327
        %v1422 = vunpack.c.h.b16 %v1327
        %v1423 = vunpack.c.l.b16 %v1328
        %v1424 = vunpack.c.h.b16 %v1328
        %v1425 = vunpack.c.l.b16 %v1329
        %v1426 = vunpack.c.h.b16 %v1329
        %v1427 = vunpack.c.l.b16 %v1330
        %v1428 = vunpack.c.h.b16 %v1330
        %v1429 = vunpack.c.l.b16 %v1331
        %v1430 = vunpack.c.h.b16 %v1331
        %v1431 = vunpack.c.l.b16 %v1332
        %v1432 = vunpack.c.h.b16 %v1332
        %v1433 = vunpack.c.l.b16 %v1333
        %v1434 = vunpack.c.h.b16 %v1333
        %v1435 = vunpack.c.l.b16 %v1334
        %v1436 = vunpack.c.h.b16 %v1334
        %v1437 = vunpack.c.l.b16 %v1335
        %v1438 = vunpack.c.h.b16 %v1335
        %v1439 = vunpack.c.l.b16 %v1336
        %v1440 = vunpack.c.h.b16 %v1336
        %v1441 = vunpack.c.l.b16 %v1337
        %v1442 = vunpack.c.h.b16 %v1337
        %v1443 = vunpack.c.l.b16 %v1338
        %v1444 = vunpack.c.h.b16 %v1338
        %v1445 = vunpack.c.l.b16 %v1339
        %v1446 = vunpack.c.h.b16 %v1339
        %v1447 = vunpack.c.l.b16 %v1340
        %v1448 = vunpack.c.h.b16 %v1340
        %v1449 = vunpack.c.l.b16 %v1341
        %v1450 = vunpack.c.h.b16 %v1341
        %v1451 = vunpack.c.l.b16 %v1342
        %v1452 = vunpack.c.h.b16 %v1342
        %v1453 = vunpack.c.l.b16 %v1343
        %v1454 = vunpack.c.h.b16 %v1343
        %v1455 = vunpack.c.l.b16 %v1344
        %v1456 = vunpack.c.h.b16 %v1344
        %v1457 = vunpack.c.l.b16 %v1345
        %v1458 = vunpack.c.h.b16 %v1345
        %v1459 = vunpack.c.l.b16 %v1346
        %v1460 = vunpack.c.h.b16 %v1346
        %v1461 = vunpack.c.l.b16 %v1347
        %v1462 = vunpack.c.h.b16 %v1347
        %v1463 = vunpack.c.l.b16 %v1348
        %v1464 = vunpack.c.h.b16 %v1348
        %v1465 = vunpack.c.l.b16 %v1349
        %v1466 = vunpack.c.h.b16 %v1349
        %v1467 = vunpack.c.l.b16 %v1350
        %v1468 = vunpack.c.h.b16 %v1350
        %v1469 = vunpack.c.l.b16 %v1351
        %v1470 = vunpack.c.h.b16 %v1351
        %v1471 = vunpack.c.l.b16 %v1352
        %v1472 = vunpack.c.h.b16 %v1352
        %v1473 = vunpack.c.l.b16 %v1353
        %v1474 = vunpack.c.h.b16 %v1353
        %v1475 = vunpack.c.l.b16 %v1354
        %v1476 = vunpack.c.h.b16 %v1354
        %v1477 = vpack.c.b16 %v1415, %v1413
        %v1478 = vpack.c.b16 %v1416, %v1414
        %v1479 = vpack.c.b16 %v1419, %v1417
        %v1480 = vpack.c.b16 %v1420, %v1418
        %v1481 = vpack.c.b16 %v1423, %v1421
        %v1482 = vpack.c.b16 %v1424, %v1422
        %v1483 = vpack.c.b16 %v1427, %v1425
        %v1484 = vpack.c.b16 %v1428, %v1426
        %v1485 = vpack.c.b16 %v1431, %v1429
        %v1486 = vpack.c.b16 %v1432, %v1430
        %v1487 = vpack.c.b16 %v1435, %v1433
        %v1488 = vpack.c.b16 %v1436, %v1434
        %v1489 = vpack.c.b16 %v1439, %v1437
        %v1490 = vpack.c.b16 %v1440, %v1438
        %v1491 = vpack.c.b16 %v1443, %v1441
        %v1492 = vpack.c.b16 %v1444, %v1442
        %v1493 = vpack.c.b16 %v1447, %v1445
        %v1494 = vpack.c.b16 %v1448, %v1446
        %v1495 = vpack.c.b16 %v1451, %v1449
        %v1496 = vpack.c.b16 %v1452, %v1450
        %v1497 = vpack.c.b16 %v1455, %v1453
        %v1498 = vpack.c.b16 %v1456, %v1454
        %v1499 = vpack.c.b16 %v1459, %v1457
        %v1500 = vpack.c.b16 %v1460, %v1458
        %v1501 = vpack.c.b16 %v1463, %v1461
        %v1502 = vpack.c.b16 %v1464, %v1462
        %v1503 = vpack.c.b16 %v1467, %v1465
        %v1504 = vpack.c.b16 %v1468, %v1466
        %v1505 = vpack.c.b16 %v1471, %v1469
        %v1506 = vpack.c.b16 %v1472, %v1470
        %v1507 = vpack.c.b16 %v1475, %v1473
        %v1508 = vpack.c.b16 %v1476, %v1474
        %1541 = vmatpush.bf16.msra.mxu0 %v1491
        %1542 = vmatpush.bf16.msra.mxu0 %v1489
        %1543 = vmatpush.bf16.msra.mxu0 %v1487
        %1544 = vmatpush.bf16.msra.mxu0 %v1485
        %1545 = vmatpush.bf16.msra.mxu0 %v1483
        %1546 = vmatpush.bf16.msra.mxu0 %v1481
        %1547 = vmatpush.bf16.msra.mxu0 %v1479
        %1548 = vmatpush.bf16.msra.mxu0 %v1477
        %1549 = vmatmul.bf16.gmra.mxu0 %v1373
        %v1550 = vpop.f32.mrf.mxu0
        %v1551 = vadd.f32 %v1357, %v1550
        %v1552 = vpop.f32.mrf.mxu0
        %v1553 = vadd.f32 %v1357, %v1552
        %1554 = vmatmul.bf16.gmra.mxu0 %v1375
        %v1555 = vpop.f32.mrf.mxu0
        %v1556 = vadd.f32 %v1357, %v1555
        %v1557 = vpop.f32.mrf.mxu0
        %v1558 = vadd.f32 %v1357, %v1557
        %1559 = vdwg.mxu0
        %1560 = vmatpush.bf16.msra.mxu0 %v1507
        %1561 = vmatpush.bf16.msra.mxu0 %v1505
        %1562 = vmatpush.bf16.msra.mxu0 %v1503
        %1563 = vmatpush.bf16.msra.mxu0 %v1501
        %1564 = vmatpush.bf16.msra.mxu0 %v1499
        %1565 = vmatpush.bf16.msra.mxu0 %v1497
        %1566 = vmatpush.bf16.msra.mxu0 %v1495
        %1567 = vmatpush.bf16.msra.mxu0 %v1493
        %1568 = vmatmul.bf16.gmra.mxu0 %v1374
        %v1569 = vpop.f32.mrf.mxu0
        %v1570 = vadd.f32 %v1551, %v1569
        %v1571 = vpop.f32.mrf.mxu0
        %v1572 = vadd.f32 %v1553, %v1571
        %1573 = vmatmul.bf16.gmra.mxu0 %v1376
        %v1574 = vpop.f32.mrf.mxu0
        %v1575 = vadd.f32 %v1556, %v1574
        %v1576 = vpop.f32.mrf.mxu0
        %v1577 = vadd.f32 %v1558, %v1576
        %1578 = vdwg.mxu0
        %1579 = vmatpush.bf16.msra.mxu0 %v1492
        %1580 = vmatpush.bf16.msra.mxu0 %v1490
        %1581 = vmatpush.bf16.msra.mxu0 %v1488
        %1582 = vmatpush.bf16.msra.mxu0 %v1486
        %1583 = vmatpush.bf16.msra.mxu0 %v1484
        %1584 = vmatpush.bf16.msra.mxu0 %v1482
        %1585 = vmatpush.bf16.msra.mxu0 %v1480
        %1586 = vmatpush.bf16.msra.mxu0 %v1478
        %1587 = vmatmul.bf16.gmra.mxu0 %v1373
        %v1588 = vpop.f32.mrf.mxu0
        %v1589 = vadd.f32 %v1358, %v1588
        %v1590 = vpop.f32.mrf.mxu0
        %v1591 = vadd.f32 %v1358, %v1590
        %1592 = vmatmul.bf16.gmra.mxu0 %v1375
        %v1593 = vpop.f32.mrf.mxu0
        %v1594 = vadd.f32 %v1358, %v1593
        %v1595 = vpop.f32.mrf.mxu0
        %v1596 = vadd.f32 %v1358, %v1595
        %1597 = vdwg.mxu0
        %1598 = vmatpush.bf16.msra.mxu0 %v1508
        %1599 = vmatpush.bf16.msra.mxu0 %v1506
        %1600 = vmatpush.bf16.msra.mxu0 %v1504
        %1601 = vmatpush.bf16.msra.mxu0 %v1502
        %1602 = vmatpush.bf16.msra.mxu0 %v1500
        %1603 = vmatpush.bf16.msra.mxu0 %v1498
        %1604 = vmatpush.bf16.msra.mxu0 %v1496
        %1605 = vmatpush.bf16.msra.mxu0 %v1494
        %1606 = vmatmul.bf16.gmra.mxu0 %v1374
        %v1607 = vpop.f32.mrf.mxu0
        %v1608 = vadd.f32 %v1589, %v1607
        %v1609 = vpop.f32.mrf.mxu0
        %v1610 = vadd.f32 %v1591, %v1609
        %1611 = vmatmul.bf16.gmra.mxu0 %v1376
        %v1612 = vpop.f32.mrf.mxu0
        %v1613 = vadd.f32 %v1594, %v1612
        %v1614 = vpop.f32.mrf.mxu0
        %v1615 = vadd.f32 %v1596, %v1614
        %1616 = vdwg.mxu0
        %v1617 = vpack.c.bf16 %v1025, %v997
        %v1618 = vpack.c.bf16 %v1027, %v999
        %v1619 = vpack.c.bf16 %v1314, %v1276
        %v1620 = vpack.c.bf16 %v1316, %v1278
        %v1621 = vpack.c.bf16 %v1319, %v1281
        %v1622 = vpack.c.bf16 %v1321, %v1283
        %v1623 = vpack.c.bf16 %v1608, %v1570
        %v1624 = vpack.c.bf16 %v1610, %v1572
        %v1625 = vpack.c.bf16 %v1613, %v1575
        %v1626 = vpack.c.bf16 %v1615, %v1577
        %1629 = vrot.lane.b32.xlu0 %v1617, 96
        %v1630 = vpop.permute.xlu0 %1629
        %1631 = vrot.lane.b32.xlu0 %v1618, 96
        %v1632 = vpop.permute.xlu0 %1631
        %1633 = vrot.lane.b32.xlu0 %v1617, 64
        %v1634 = vpop.permute.xlu0 %1633
        %1635 = vrot.lane.b32.xlu0 %v1618, 64
        %v1636 = vpop.permute.xlu0 %1635
        %1637 = vrot.lane.b32.xlu0 %v1617, 32
        %v1638 = vpop.permute.xlu0 %1637
        %1639 = vrot.lane.b32.xlu0 %v1618, 32
        %v1640 = vpop.permute.xlu0 %1639
        %v1641 = vrot.slane %v1617, 4
        %v1642 = vrot.slane %v1618, 4
        %v1643 = vrot.slane %v1630, 4
        %v1644 = vrot.slane %v1632, 4
        %v1645 = vrot.slane %v1634, 4
        %v1646 = vrot.slane %v1636, 4
        %v1647 = vrot.slane %v1638, 4
        %v1648 = vrot.slane %v1640, 4
        %1653 = vrot.lane.b32.xlu0 %v1619, 96
        %v1654 = vpop.permute.xlu0 %1653
        %1655 = vrot.lane.b32.xlu0 %v1620, 96
        %v1656 = vpop.permute.xlu0 %1655
        %1657 = vrot.lane.b32.xlu0 %v1621, 96
        %v1658 = vpop.permute.xlu0 %1657
        %1659 = vrot.lane.b32.xlu0 %v1622, 96
        %v1660 = vpop.permute.xlu0 %1659
        %1661 = vrot.lane.b32.xlu0 %v1619, 64
        %v1662 = vpop.permute.xlu0 %1661
        %1663 = vrot.lane.b32.xlu0 %v1620, 64
        %v1664 = vpop.permute.xlu0 %1663
        %1665 = vrot.lane.b32.xlu0 %v1621, 64
        %v1666 = vpop.permute.xlu0 %1665
        %1667 = vrot.lane.b32.xlu0 %v1622, 64
        %v1668 = vpop.permute.xlu0 %1667
        %1669 = vrot.lane.b32.xlu0 %v1619, 32
        %v1670 = vpop.permute.xlu0 %1669
        %1671 = vrot.lane.b32.xlu0 %v1620, 32
        %v1672 = vpop.permute.xlu0 %1671
        %1673 = vrot.lane.b32.xlu0 %v1621, 32
        %v1674 = vpop.permute.xlu0 %1673
        %1675 = vrot.lane.b32.xlu0 %v1622, 32
        %v1676 = vpop.permute.xlu0 %1675
        %v1677 = vrot.slane %v1619, 4
        %v1678 = vrot.slane %v1620, 4
        %v1679 = vrot.slane %v1621, 4
        %v1680 = vrot.slane %v1622, 4
        %v1681 = vrot.slane %v1654, 4
        %v1682 = vrot.slane %v1656, 4
        %v1683 = vrot.slane %v1658, 4
        %v1684 = vrot.slane %v1660, 4
        %v1685 = vrot.slane %v1662, 4
        %v1686 = vrot.slane %v1664, 4
        %v1687 = vrot.slane %v1666, 4
        %v1688 = vrot.slane %v1668, 4
        %v1689 = vrot.slane %v1670, 4
        %v1690 = vrot.slane %v1672, 4
        %v1691 = vrot.slane %v1674, 4
        %v1692 = vrot.slane %v1676, 4
        %1697 = vrot.lane.b32.xlu0 %v1623, 96
        %v1698 = vpop.permute.xlu0 %1697
        %1699 = vrot.lane.b32.xlu0 %v1624, 96
        %v1700 = vpop.permute.xlu0 %1699
        %1701 = vrot.lane.b32.xlu0 %v1625, 96
        %v1702 = vpop.permute.xlu0 %1701
        %1703 = vrot.lane.b32.xlu0 %v1626, 96
        %v1704 = vpop.permute.xlu0 %1703
        %1705 = vrot.lane.b32.xlu0 %v1623, 64
        %v1706 = vpop.permute.xlu0 %1705
        %1707 = vrot.lane.b32.xlu0 %v1624, 64
        %v1708 = vpop.permute.xlu0 %1707
        %1709 = vrot.lane.b32.xlu0 %v1625, 64
        %v1710 = vpop.permute.xlu0 %1709
        %1711 = vrot.lane.b32.xlu0 %v1626, 64
        %v1712 = vpop.permute.xlu0 %1711
        %1713 = vrot.lane.b32.xlu0 %v1623, 32
        %v1714 = vpop.permute.xlu0 %1713
        %1715 = vrot.lane.b32.xlu0 %v1624, 32
        %v1716 = vpop.permute.xlu0 %1715
        %1717 = vrot.lane.b32.xlu0 %v1625, 32
        %v1718 = vpop.permute.xlu0 %1717
        %1719 = vrot.lane.b32.xlu0 %v1626, 32
        %v1720 = vpop.permute.xlu0 %1719
        %v1721 = vrot.slane %v1623, 4
        %v1722 = vrot.slane %v1624, 4
        %v1723 = vrot.slane %v1625, 4
        %v1724 = vrot.slane %v1626, 4
        %v1725 = vrot.slane %v1698, 4
        %v1726 = vrot.slane %v1700, 4
        %v1727 = vrot.slane %v1702, 4
        %v1728 = vrot.slane %v1704, 4
        %v1729 = vrot.slane %v1706, 4
        %v1730 = vrot.slane %v1708, 4
        %v1731 = vrot.slane %v1710, 4
        %v1732 = vrot.slane %v1712, 4
        %v1733 = vrot.slane %v1714, 4
        %v1734 = vrot.slane %v1716, 4
        %v1735 = vrot.slane %v1718, 4
        %v1736 = vrot.slane %v1720, 4
        %v1737 = vunpack.c.l.b16 %v1619
        %v1738 = vunpack.c.l.b16 %v1620
        %v1739 = vpack.c.b16 %v1738, %v1737
        %vm1740 = vcmask 261120
        %v1742 = vsel %vm1740, %v1617, 0
        %v1745 = vsel %vm1740, %v1739, 0
        %1747 = vmatpush.bf16.xpose.msra.mxu0 0
        %1748 = vmatpush.bf16.xpose.msra.mxu0 0
        %1749 = vmatpush.bf16.xpose.msra.mxu0 0
        %1750 = vmatpush.bf16.xpose.msra.mxu0 0
        %1751 = vmatpush.bf16.xpose.msra.mxu0 0
        %1752 = vmatpush.bf16.xpose.msra.mxu0 0
        %1753 = vmatpush.bf16.xpose.msra.mxu0 0
        %1754 = vmatpush.bf16.xpose.msra.mxu0 %v1745
        %1755 = vmatmul.bf16.gmra.mxu0 %v1742
        %v1756 = vpop.f32.mrf.mxu0
        %v1757 = vadd.f32 0.0, %v1756
        %v1758 = vpop.f32.mrf.mxu0
        %1759 = vdwg.mxu0
        %v1760 = vunpack.c.l.b16 %v1621
        %v1761 = vunpack.c.l.b16 %v1622
        %v1762 = vpack.c.b16 %v1761, %v1760
        %v1764 = vsel %vm1740, %v1618, 0
        %v1767 = vsel %vm1740, %v1762, 0
        %1769 = vmatpush.bf16.xpose.msra.mxu0 0
        %1770 = vmatpush.bf16.xpose.msra.mxu0 0
        %1771 = vmatpush.bf16.xpose.msra.mxu0 0
        %1772 = vmatpush.bf16.xpose.msra.mxu0 0
        %1773 = vmatpush.bf16.xpose.msra.mxu0 0
        %1774 = vmatpush.bf16.xpose.msra.mxu0 0
        %1775 = vmatpush.bf16.xpose.msra.mxu0 0
        %1776 = vmatpush.bf16.xpose.msra.mxu0 %v1767
        %1777 = vmatmul.bf16.gmra.mxu0 %v1764
        %v1778 = vpop.f32.mrf.mxu0
        %v1779 = vadd.f32 0.0, %v1778
        %v1780 = vpop.f32.mrf.mxu0
        %1781 = vdwg.mxu0
        %v1782 = vunpack.c.l.b16 %v1654
        %v1783 = vunpack.c.l.b16 %v1656
        %v1784 = vpack.c.b16 %v1783, %v1782
        %v1786 = vsel %vm1740, %v1630, 0
        %v1789 = vsel %vm1740, %v1784, 0
        %1791 = vmatpush.bf16.xpose.msra.mxu0 0
        %1792 = vmatpush.bf16.xpose.msra.mxu0 0
        %1793 = vmatpush.bf16.xpose.msra.mxu0 0
        %1794 = vmatpush.bf16.xpose.msra.mxu0 0
        %1795 = vmatpush.bf16.xpose.msra.mxu0 0
        %1796 = vmatpush.bf16.xpose.msra.mxu0 0
        %1797 = vmatpush.bf16.xpose.msra.mxu0 0
        %1798 = vmatpush.bf16.xpose.msra.mxu0 %v1789
        %1799 = vmatmul.bf16.gmra.mxu0 %v1786
        %v1800 = vpop.f32.mrf.mxu0
        %v1801 = vadd.f32 0.0, %v1800
        %v1802 = vpop.f32.mrf.mxu0
        %1803 = vdwg.mxu0
        %v1804 = vunpack.c.l.b16 %v1658
        %v1805 = vunpack.c.l.b16 %v1660
        %v1806 = vpack.c.b16 %v1805, %v1804
        %v1808 = vsel %vm1740, %v1632, 0
        %v1811 = vsel %vm1740, %v1806, 0
        %1813 = vmatpush.bf16.xpose.msra.mxu0 0
        %1814 = vmatpush.bf16.xpose.msra.mxu0 0
        %1815 = vmatpush.bf16.xpose.msra.mxu0 0
        %1816 = vmatpush.bf16.xpose.msra.mxu0 0
        %1817 = vmatpush.bf16.xpose.msra.mxu0 0
        %1818 = vmatpush.bf16.xpose.msra.mxu0 0
        %1819 = vmatpush.bf16.xpose.msra.mxu0 0
        %1820 = vmatpush.bf16.xpose.msra.mxu0 %v1811
        %1821 = vmatmul.bf16.gmra.mxu0 %v1808
        %v1822 = vpop.f32.mrf.mxu0
        %v1823 = vadd.f32 0.0, %v1822
        %v1824 = vpop.f32.mrf.mxu0
        %1825 = vdwg.mxu0
        %v1826 = vunpack.c.l.b16 %v1662
        %v1827 = vunpack.c.l.b16 %v1664
        %v1828 = vpack.c.b16 %v1827, %v1826
        %v1830 = vsel %vm1740, %v1634, 0
        %v1833 = vsel %vm1740, %v1828, 0
        %1835 = vmatpush.bf16.xpose.msra.mxu0 0
        %1836 = vmatpush.bf16.xpose.msra.mxu0 0
        %1837 = vmatpush.bf16.xpose.msra.mxu0 0
        %1838 = vmatpush.bf16.xpose.msra.mxu0 0
        %1839 = vmatpush.bf16.xpose.msra.mxu0 0
        %1840 = vmatpush.bf16.xpose.msra.mxu0 0
        %1841 = vmatpush.bf16.xpose.msra.mxu0 0
        %1842 = vmatpush.bf16.xpose.msra.mxu0 %v1833
        %1843 = vmatmul.bf16.gmra.mxu0 %v1830
        %v1844 = vpop.f32.mrf.mxu0
        %v1845 = vadd.f32 0.0, %v1844
        %v1846 = vpop.f32.mrf.mxu0
        %1847 = vdwg.mxu0
        %v1848 = vunpack.c.l.b16 %v1666
        %v1849 = vunpack.c.l.b16 %v1668
        %v1850 = vpack.c.b16 %v1849, %v1848
        %v1852 = vsel %vm1740, %v1636, 0
        %v1855 = vsel %vm1740, %v1850, 0
        %1857 = vmatpush.bf16.xpose.msra.mxu0 0
        %1858 = vmatpush.bf16.xpose.msra.mxu0 0
        %1859 = vmatpush.bf16.xpose.msra.mxu0 0
        %1860 = vmatpush.bf16.xpose.msra.mxu0 0
        %1861 = vmatpush.bf16.xpose.msra.mxu0 0
        %1862 = vmatpush.bf16.xpose.msra.mxu0 0
        %1863 = vmatpush.bf16.xpose.msra.mxu0 0
        %1864 = vmatpush.bf16.xpose.msra.mxu0 %v1855
        %1865 = vmatmul.bf16.gmra.mxu0 %v1852
        %v1866 = vpop.f32.mrf.mxu0
        %v1867 = vadd.f32 0.0, %v1866
        %v1868 = vpop.f32.mrf.mxu0
        %1869 = vdwg.mxu0
        %v1870 = vunpack.c.l.b16 %v1670
        %v1871 = vunpack.c.l.b16 %v1672
        %v1872 = vpack.c.b16 %v1871, %v1870
        %v1874 = vsel %vm1740, %v1638, 0
        %v1877 = vsel %vm1740, %v1872, 0
        %1879 = vmatpush.bf16.xpose.msra.mxu0 0
        %1880 = vmatpush.bf16.xpose.msra.mxu0 0
        %1881 = vmatpush.bf16.xpose.msra.mxu0 0
        %1882 = vmatpush.bf16.xpose.msra.mxu0 0
        %1883 = vmatpush.bf16.xpose.msra.mxu0 0
        %1884 = vmatpush.bf16.xpose.msra.mxu0 0
        %1885 = vmatpush.bf16.xpose.msra.mxu0 0
        %1886 = vmatpush.bf16.xpose.msra.mxu0 %v1877
        %1887 = vmatmul.bf16.gmra.mxu0 %v1874
        %v1888 = vpop.f32.mrf.mxu0
        %v1889 = vadd.f32 0.0, %v1888
        %v1890 = vpop.f32.mrf.mxu0
        %1891 = vdwg.mxu0
        %v1892 = vunpack.c.l.b16 %v1674
        %v1893 = vunpack.c.l.b16 %v1676
        %v1894 = vpack.c.b16 %v1893, %v1892
        %v1896 = vsel %vm1740, %v1640, 0
        %v1899 = vsel %vm1740, %v1894, 0
        %1901 = vmatpush.bf16.xpose.msra.mxu0 0
        %1902 = vmatpush.bf16.xpose.msra.mxu0 0
        %1903 = vmatpush.bf16.xpose.msra.mxu0 0
        %1904 = vmatpush.bf16.xpose.msra.mxu0 0
        %1905 = vmatpush.bf16.xpose.msra.mxu0 0
        %1906 = vmatpush.bf16.xpose.msra.mxu0 0
        %1907 = vmatpush.bf16.xpose.msra.mxu0 0
        %1908 = vmatpush.bf16.xpose.msra.mxu0 %v1899
        %1909 = vmatmul.bf16.gmra.mxu0 %v1896
        %v1910 = vpop.f32.mrf.mxu0
        %v1911 = vadd.f32 0.0, %v1910
        %v1912 = vpop.f32.mrf.mxu0
        %1913 = vdwg.mxu0
        %v1914 = vunpack.c.l.b16 %v1677
        %v1915 = vunpack.c.l.b16 %v1678
        %v1916 = vpack.c.b16 %v1915, %v1914
        %v1918 = vsel %vm1740, %v1641, 0
        %v1921 = vsel %vm1740, %v1916, 0
        %1923 = vmatpush.bf16.xpose.msra.mxu0 0
        %1924 = vmatpush.bf16.xpose.msra.mxu0 0
        %1925 = vmatpush.bf16.xpose.msra.mxu0 0
        %1926 = vmatpush.bf16.xpose.msra.mxu0 0
        %1927 = vmatpush.bf16.xpose.msra.mxu0 0
        %1928 = vmatpush.bf16.xpose.msra.mxu0 0
        %1929 = vmatpush.bf16.xpose.msra.mxu0 0
        %1930 = vmatpush.bf16.xpose.msra.mxu0 %v1921
        %1931 = vmatmul.bf16.gmra.mxu0 %v1918
        %v1932 = vpop.f32.mrf.mxu0
        %v1933 = vadd.f32 0.0, %v1932
        %v1934 = vpop.f32.mrf.mxu0
        %1935 = vdwg.mxu0
        %v1936 = vunpack.c.l.b16 %v1679
        %v1937 = vunpack.c.l.b16 %v1680
        %v1938 = vpack.c.b16 %v1937, %v1936
        %v1940 = vsel %vm1740, %v1642, 0
        %v1943 = vsel %vm1740, %v1938, 0
        %1945 = vmatpush.bf16.xpose.msra.mxu0 0
        %1946 = vmatpush.bf16.xpose.msra.mxu0 0
        %1947 = vmatpush.bf16.xpose.msra.mxu0 0
        %1948 = vmatpush.bf16.xpose.msra.mxu0 0
        %1949 = vmatpush.bf16.xpose.msra.mxu0 0
        %1950 = vmatpush.bf16.xpose.msra.mxu0 0
        %1951 = vmatpush.bf16.xpose.msra.mxu0 0
        %1952 = vmatpush.bf16.xpose.msra.mxu0 %v1943
        %1953 = vmatmul.bf16.gmra.mxu0 %v1940
        %v1954 = vpop.f32.mrf.mxu0
        %v1955 = vadd.f32 0.0, %v1954
        %v1956 = vpop.f32.mrf.mxu0
        %1957 = vdwg.mxu0
        %v1958 = vunpack.c.l.b16 %v1681
        %v1959 = vunpack.c.l.b16 %v1682
        %v1960 = vpack.c.b16 %v1959, %v1958
        %v1962 = vsel %vm1740, %v1643, 0
        %v1965 = vsel %vm1740, %v1960, 0
        %1967 = vmatpush.bf16.xpose.msra.mxu0 0
        %1968 = vmatpush.bf16.xpose.msra.mxu0 0
        %1969 = vmatpush.bf16.xpose.msra.mxu0 0
        %1970 = vmatpush.bf16.xpose.msra.mxu0 0
        %1971 = vmatpush.bf16.xpose.msra.mxu0 0
        %1972 = vmatpush.bf16.xpose.msra.mxu0 0
        %1973 = vmatpush.bf16.xpose.msra.mxu0 0
        %1974 = vmatpush.bf16.xpose.msra.mxu0 %v1965
        %1975 = vmatmul.bf16.gmra.mxu0 %v1962
        %v1976 = vpop.f32.mrf.mxu0
        %v1977 = vadd.f32 0.0, %v1976
        %v1978 = vpop.f32.mrf.mxu0
        %1979 = vdwg.mxu0
        %v1980 = vunpack.c.l.b16 %v1683
        %v1981 = vunpack.c.l.b16 %v1684
        %v1982 = vpack.c.b16 %v1981, %v1980
        %v1984 = vsel %vm1740, %v1644, 0
        %v1987 = vsel %vm1740, %v1982, 0
        %1989 = vmatpush.bf16.xpose.msra.mxu0 0
        %1990 = vmatpush.bf16.xpose.msra.mxu0 0
        %1991 = vmatpush.bf16.xpose.msra.mxu0 0
        %1992 = vmatpush.bf16.xpose.msra.mxu0 0
        %1993 = vmatpush.bf16.xpose.msra.mxu0 0
        %1994 = vmatpush.bf16.xpose.msra.mxu0 0
        %1995 = vmatpush.bf16.xpose.msra.mxu0 0
        %1996 = vmatpush.bf16.xpose.msra.mxu0 %v1987
        %1997 = vmatmul.bf16.gmra.mxu0 %v1984
        %v1998 = vpop.f32.mrf.mxu0
        %v1999 = vadd.f32 0.0, %v1998
        %v2000 = vpop.f32.mrf.mxu0
        %2001 = vdwg.mxu0
        %v2002 = vunpack.c.l.b16 %v1685
        %v2003 = vunpack.c.l.b16 %v1686
        %v2004 = vpack.c.b16 %v2003, %v2002
        %v2006 = vsel %vm1740, %v1645, 0
        %v2009 = vsel %vm1740, %v2004, 0
        %2011 = vmatpush.bf16.xpose.msra.mxu0 0
        %2012 = vmatpush.bf16.xpose.msra.mxu0 0
        %2013 = vmatpush.bf16.xpose.msra.mxu0 0
        %2014 = vmatpush.bf16.xpose.msra.mxu0 0
        %2015 = vmatpush.bf16.xpose.msra.mxu0 0
        %2016 = vmatpush.bf16.xpose.msra.mxu0 0
        %2017 = vmatpush.bf16.xpose.msra.mxu0 0
        %2018 = vmatpush.bf16.xpose.msra.mxu0 %v2009
        %2019 = vmatmul.bf16.gmra.mxu0 %v2006
        %v2020 = vpop.f32.mrf.mxu0
        %v2021 = vadd.f32 0.0, %v2020
        %v2022 = vpop.f32.mrf.mxu0
        %2023 = vdwg.mxu0
        %v2024 = vunpack.c.l.b16 %v1687
        %v2025 = vunpack.c.l.b16 %v1688
        %v2026 = vpack.c.b16 %v2025, %v2024
        %v2028 = vsel %vm1740, %v1646, 0
        %v2031 = vsel %vm1740, %v2026, 0
        %2033 = vmatpush.bf16.xpose.msra.mxu0 0
        %2034 = vmatpush.bf16.xpose.msra.mxu0 0
        %2035 = vmatpush.bf16.xpose.msra.mxu0 0
        %2036 = vmatpush.bf16.xpose.msra.mxu0 0
        %2037 = vmatpush.bf16.xpose.msra.mxu0 0
        %2038 = vmatpush.bf16.xpose.msra.mxu0 0
        %2039 = vmatpush.bf16.xpose.msra.mxu0 0
        %2040 = vmatpush.bf16.xpose.msra.mxu0 %v2031
        %2041 = vmatmul.bf16.gmra.mxu0 %v2028
        %v2042 = vpop.f32.mrf.mxu0
        %v2043 = vadd.f32 0.0, %v2042
        %v2044 = vpop.f32.mrf.mxu0
        %2045 = vdwg.mxu0
        %v2046 = vunpack.c.l.b16 %v1689
        %v2047 = vunpack.c.l.b16 %v1690
        %v2048 = vpack.c.b16 %v2047, %v2046
        %v2050 = vsel %vm1740, %v1647, 0
        %v2053 = vsel %vm1740, %v2048, 0
        %2055 = vmatpush.bf16.xpose.msra.mxu0 0
        %2056 = vmatpush.bf16.xpose.msra.mxu0 0
        %2057 = vmatpush.bf16.xpose.msra.mxu0 0
        %2058 = vmatpush.bf16.xpose.msra.mxu0 0
        %2059 = vmatpush.bf16.xpose.msra.mxu0 0
        %2060 = vmatpush.bf16.xpose.msra.mxu0 0
        %2061 = vmatpush.bf16.xpose.msra.mxu0 0
        %2062 = vmatpush.bf16.xpose.msra.mxu0 %v2053
        %2063 = vmatmul.bf16.gmra.mxu0 %v2050
        %v2064 = vpop.f32.mrf.mxu0
        %v2065 = vadd.f32 0.0, %v2064
        %v2066 = vpop.f32.mrf.mxu0
        %2067 = vdwg.mxu0
        %v2068 = vunpack.c.l.b16 %v1691
        %v2069 = vunpack.c.l.b16 %v1692
        %v2070 = vpack.c.b16 %v2069, %v2068
        %v2072 = vsel %vm1740, %v1648, 0
        %v2075 = vsel %vm1740, %v2070, 0
        %2077 = vmatpush.bf16.xpose.msra.mxu0 0
        %2078 = vmatpush.bf16.xpose.msra.mxu0 0
        %2079 = vmatpush.bf16.xpose.msra.mxu0 0
        %2080 = vmatpush.bf16.xpose.msra.mxu0 0
        %2081 = vmatpush.bf16.xpose.msra.mxu0 0
        %2082 = vmatpush.bf16.xpose.msra.mxu0 0
        %2083 = vmatpush.bf16.xpose.msra.mxu0 0
        %2084 = vmatpush.bf16.xpose.msra.mxu0 %v2075
        %2085 = vmatmul.bf16.gmra.mxu0 %v2072
        %v2086 = vpop.f32.mrf.mxu0
        %v2087 = vadd.f32 0.0, %v2086
        %v2088 = vpop.f32.mrf.mxu0
        %2089 = vdwg.mxu0
        %v2090 = vld [vmem:[%s659] sm:$0x1]
        %v2091 = vld [vmem:[%s659 + $0x1] sm:$0x1]
        %v2094 = vperm.slane %v2090, 0
        %v2095 = vperm.slane %v2091, 0
        %v2098 = vadd.f32 %v1757, %v2094
        %v2099 = vadd.f32 %v1779, %v2095
        %v2100 = vadd.f32 %v1801, %v2094
        %v2101 = vadd.f32 %v1823, %v2095
        %v2102 = vadd.f32 %v1845, %v2094
        %v2103 = vadd.f32 %v1867, %v2095
        %v2104 = vadd.f32 %v1889, %v2094
        %v2105 = vadd.f32 %v1911, %v2095
        %v2106 = vadd.f32 %v1933, %v2094
        %v2107 = vadd.f32 %v1955, %v2095
        %v2108 = vadd.f32 %v1977, %v2094
        %v2109 = vadd.f32 %v1999, %v2095
        %v2110 = vadd.f32 %v2021, %v2094
        %v2111 = vadd.f32 %v2043, %v2095
        %v2112 = vadd.f32 %v2065, %v2094
        %v2113 = vadd.f32 %v2087, %v2095
        %vm2114 = vcmask 130048
        %v2115 = vsel %vm2114, %v2098, -inf
        %2116 = vmax.xlane.f32.xlu0 %v2115
        %v2117 = vpop.xlane.xlu0 %2116
        %v2118 = vsel %vm2114, %v2099, -inf
        %2119 = vmax.xlane.f32.xlu0 %v2118
        %v2120 = vpop.xlane.xlu0 %2119
        %v2121 = vsel %vm2114, %v2100, -inf
        %2122 = vmax.xlane.f32.xlu0 %v2121
        %v2123 = vpop.xlane.xlu0 %2122
        %v2124 = vsel %vm2114, %v2101, -inf
        %2125 = vmax.xlane.f32.xlu0 %v2124
        %v2126 = vpop.xlane.xlu0 %2125
        %v2127 = vsel %vm2114, %v2102, -inf
        %2128 = vmax.xlane.f32.xlu0 %v2127
        %v2129 = vpop.xlane.xlu0 %2128
        %v2130 = vsel %vm2114, %v2103, -inf
        %2131 = vmax.xlane.f32.xlu0 %v2130
        %v2132 = vpop.xlane.xlu0 %2131
        %v2133 = vsel %vm2114, %v2104, -inf
        %2134 = vmax.xlane.f32.xlu0 %v2133
        %v2135 = vpop.xlane.xlu0 %2134
        %v2136 = vsel %vm2114, %v2105, -inf
        %2137 = vmax.xlane.f32.xlu0 %v2136
        %v2138 = vpop.xlane.xlu0 %2137
        %v2139 = vsel %vm2114, %v2106, -inf
        %2140 = vmax.xlane.f32.xlu0 %v2139
        %v2141 = vpop.xlane.xlu0 %2140
        %v2142 = vsel %vm2114, %v2107, -inf
        %2143 = vmax.xlane.f32.xlu0 %v2142
        %v2144 = vpop.xlane.xlu0 %2143
        %v2145 = vsel %vm2114, %v2108, -inf
        %2146 = vmax.xlane.f32.xlu0 %v2145
        %v2147 = vpop.xlane.xlu0 %2146
        %v2148 = vsel %vm2114, %v2109, -inf
        %2149 = vmax.xlane.f32.xlu0 %v2148
        %v2150 = vpop.xlane.xlu0 %2149
        %v2151 = vsel %vm2114, %v2110, -inf
        %2152 = vmax.xlane.f32.xlu0 %v2151
        %v2153 = vpop.xlane.xlu0 %2152
        %v2154 = vsel %vm2114, %v2111, -inf
        %2155 = vmax.xlane.f32.xlu0 %v2154
        %v2156 = vpop.xlane.xlu0 %2155
        %v2157 = vsel %vm2114, %v2112, -inf
        %2158 = vmax.xlane.f32.xlu0 %v2157
        %v2159 = vpop.xlane.xlu0 %2158
        %v2160 = vsel %vm2114, %v2113, -inf
        %2161 = vmax.xlane.f32.xlu0 %v2160
        %v2162 = vpop.xlane.xlu0 %2161
        %v2163 = vsub.f32 %v2098, %v2117
        %v2164 = vsub.f32 %v2099, %v2120
        %v2165 = vsub.f32 %v2100, %v2123
        %v2166 = vsub.f32 %v2101, %v2126
        %v2167 = vsub.f32 %v2102, %v2129
        %v2168 = vsub.f32 %v2103, %v2132
        %v2169 = vsub.f32 %v2104, %v2135
        %v2170 = vsub.f32 %v2105, %v2138
        %v2171 = vsub.f32 %v2106, %v2141
        %v2172 = vsub.f32 %v2107, %v2144
        %v2173 = vsub.f32 %v2108, %v2147
        %v2174 = vsub.f32 %v2109, %v2150
        %v2175 = vsub.f32 %v2110, %v2153
        %v2176 = vsub.f32 %v2111, %v2156
        %v2177 = vsub.f32 %v2112, %v2159
        %v2178 = vsub.f32 %v2113, %v2162
        %v2179 = vmul.f32 %v2163, 1.442695
        %v2180 = vpow.pop %v2179
        %v2181 = vmul.f32 %v2164, 1.442695
        %v2182 = vpow.pop %v2181
        %v2183 = vmul.f32 %v2165, 1.442695
        %v2184 = vpow.pop %v2183
        %v2185 = vmul.f32 %v2166, 1.442695
        %v2186 = vpow.pop %v2185
        %v2187 = vmul.f32 %v2167, 1.442695
        %v2188 = vpow.pop %v2187
        %v2189 = vmul.f32 %v2168, 1.442695
        %v2190 = vpow.pop %v2189
        %v2191 = vmul.f32 %v2169, 1.442695
        %v2192 = vpow.pop %v2191
        %v2193 = vmul.f32 %v2170, 1.442695
        %v2194 = vpow.pop %v2193
        %v2195 = vmul.f32 %v2171, 1.442695
        %v2196 = vpow.pop %v2195
        %v2197 = vmul.f32 %v2172, 1.442695
        %v2198 = vpow.pop %v2197
        %v2199 = vmul.f32 %v2173, 1.442695
        %v2200 = vpow.pop %v2199
        %v2201 = vmul.f32 %v2174, 1.442695
        %v2202 = vpow.pop %v2201
        %v2203 = vmul.f32 %v2175, 1.442695
        %v2204 = vpow.pop %v2203
        %v2205 = vmul.f32 %v2176, 1.442695
        %v2206 = vpow.pop %v2205
        %v2207 = vmul.f32 %v2177, 1.442695
        %v2208 = vpow.pop %v2207
        %v2209 = vmul.f32 %v2178, 1.442695
        %v2210 = vpow.pop %v2209
        %v2211 = vsel %vm2114, %v2180, 0.0
        %2212 = vadd.xlane.f32.xlu0 %v2211
        %v2213 = vpop.xlane.xlu0 %2212
        %v2214 = vsel %vm2114, %v2182, 0.0
        %2215 = vadd.xlane.f32.xlu0 %v2214
        %v2216 = vpop.xlane.xlu0 %2215
        %v2217 = vsel %vm2114, %v2184, 0.0
        %2218 = vadd.xlane.f32.xlu0 %v2217
        %v2219 = vpop.xlane.xlu0 %2218
        %v2220 = vsel %vm2114, %v2186, 0.0
        %2221 = vadd.xlane.f32.xlu0 %v2220
        %v2222 = vpop.xlane.xlu0 %2221
        %v2223 = vsel %vm2114, %v2188, 0.0
        %2224 = vadd.xlane.f32.xlu0 %v2223
        %v2225 = vpop.xlane.xlu0 %2224
        %v2226 = vsel %vm2114, %v2190, 0.0
        %2227 = vadd.xlane.f32.xlu0 %v2226
        %v2228 = vpop.xlane.xlu0 %2227
        %v2229 = vsel %vm2114, %v2192, 0.0
        %2230 = vadd.xlane.f32.xlu0 %v2229
        %v2231 = vpop.xlane.xlu0 %2230
        %v2232 = vsel %vm2114, %v2194, 0.0
        %2233 = vadd.xlane.f32.xlu0 %v2232
        %v2234 = vpop.xlane.xlu0 %2233
        %v2235 = vsel %vm2114, %v2196, 0.0
        %2236 = vadd.xlane.f32.xlu0 %v2235
        %v2237 = vpop.xlane.xlu0 %2236
        %v2238 = vsel %vm2114, %v2198, 0.0
        %2239 = vadd.xlane.f32.xlu0 %v2238
        %v2240 = vpop.xlane.xlu0 %2239
        %v2241 = vsel %vm2114, %v2200, 0.0
        %2242 = vadd.xlane.f32.xlu0 %v2241
        %v2243 = vpop.xlane.xlu0 %2242
        %v2244 = vsel %vm2114, %v2202, 0.0
        %2245 = vadd.xlane.f32.xlu0 %v2244
        %v2246 = vpop.xlane.xlu0 %2245
        %v2247 = vsel %vm2114, %v2204, 0.0
        %2248 = vadd.xlane.f32.xlu0 %v2247
        %v2249 = vpop.xlane.xlu0 %2248
        %v2250 = vsel %vm2114, %v2206, 0.0
        %2251 = vadd.xlane.f32.xlu0 %v2250
        %v2252 = vpop.xlane.xlu0 %2251
        %v2253 = vsel %vm2114, %v2208, 0.0
        %2254 = vadd.xlane.f32.xlu0 %v2253
        %v2255 = vpop.xlane.xlu0 %2254
        %v2256 = vsel %vm2114, %v2210, 0.0
        %2257 = vadd.xlane.f32.xlu0 %v2256
        %v2258 = vpop.xlane.xlu0 %2257
        %v2259 = vrcp.pop %v2213
        %v2260 = vrcp.pop %v2216
        %v2261 = vrcp.pop %v2219
        %v2262 = vrcp.pop %v2222
        %v2263 = vrcp.pop %v2225
        %v2264 = vrcp.pop %v2228
        %v2265 = vrcp.pop %v2231
        %v2266 = vrcp.pop %v2234
        %v2267 = vrcp.pop %v2237
        %v2268 = vrcp.pop %v2240
        %v2269 = vrcp.pop %v2243
        %v2270 = vrcp.pop %v2246
        %v2271 = vrcp.pop %v2249
        %v2272 = vrcp.pop %v2252
        %v2273 = vrcp.pop %v2255
        %v2274 = vrcp.pop %v2258
        %v2275 = vmul.f32 %v2180, %v2259
        %v2276 = vmul.f32 %v2182, %v2260
        %v2277 = vmul.f32 %v2184, %v2261
        %v2278 = vmul.f32 %v2186, %v2262
        %v2279 = vmul.f32 %v2188, %v2263
        %v2280 = vmul.f32 %v2190, %v2264
        %v2281 = vmul.f32 %v2192, %v2265
        %v2282 = vmul.f32 %v2194, %v2266
        %v2283 = vmul.f32 %v2196, %v2267
        %v2284 = vmul.f32 %v2198, %v2268
        %v2285 = vmul.f32 %v2200, %v2269
        %v2286 = vmul.f32 %v2202, %v2270
        %v2287 = vmul.f32 %v2204, %v2271
        %v2288 = vmul.f32 %v2206, %v2272
        %v2289 = vmul.f32 %v2208, %v2273
        %v2290 = vmul.f32 %v2210, %v2274
        %v2291 = vpack.c.bf16 %v2275, %v2275
        %v2292 = vpack.c.bf16 %v2276, %v2276
        %v2293 = vpack.c.bf16 %v2277, %v2277
        %v2294 = vpack.c.bf16 %v2278, %v2278
        %v2295 = vpack.c.bf16 %v2279, %v2279
        %v2296 = vpack.c.bf16 %v2280, %v2280
        %v2297 = vpack.c.bf16 %v2281, %v2281
        %v2298 = vpack.c.bf16 %v2282, %v2282
        %v2299 = vpack.c.bf16 %v2283, %v2283
        %v2300 = vpack.c.bf16 %v2284, %v2284
        %v2301 = vpack.c.bf16 %v2285, %v2285
        %v2302 = vpack.c.bf16 %v2286, %v2286
        %v2303 = vpack.c.bf16 %v2287, %v2287
        %v2304 = vpack.c.bf16 %v2288, %v2288
        %v2305 = vpack.c.bf16 %v2289, %v2289
        %v2306 = vpack.c.bf16 %v2290, %v2290
        %v2307 = vunpack.c.l.b16 %v1623
        %v2308 = vunpack.c.l.b16 %v1624
        %v2309 = vpack.c.b16 %v2308, %v2307
        %v2312 = vsel %vm2114, %v2291, 0
        %2314 = vmatpush.bf16.msra.mxu0 0
        %2315 = vmatpush.bf16.msra.mxu0 0
        %2316 = vmatpush.bf16.msra.mxu0 0
        %2317 = vmatpush.bf16.msra.mxu0 0
        %2318 = vmatpush.bf16.msra.mxu0 0
        %2319 = vmatpush.bf16.msra.mxu0 0
        %2320 = vmatpush.bf16.msra.mxu0 0
        %2321 = vmatpush.bf16.msra.mxu0 %v2309
        %2322 = vmatmul.bf16.gmra.mxu0 %v2312
        %v2323 = vpop.f32.mrf.mxu0
        %v2324 = vadd.f32 0.0, %v2323
        %v2325 = vpop.f32.mrf.mxu0
        %2326 = vdwg.mxu0
        %v2327 = vunpack.c.l.b16 %v1625
        %v2328 = vunpack.c.l.b16 %v1626
        %v2329 = vpack.c.b16 %v2328, %v2327
        %v2332 = vsel %vm2114, %v2292, 0
        %2334 = vmatpush.bf16.msra.mxu0 0
        %2335 = vmatpush.bf16.msra.mxu0 0
        %2336 = vmatpush.bf16.msra.mxu0 0
        %2337 = vmatpush.bf16.msra.mxu0 0
        %2338 = vmatpush.bf16.msra.mxu0 0
        %2339 = vmatpush.bf16.msra.mxu0 0
        %2340 = vmatpush.bf16.msra.mxu0 0
        %2341 = vmatpush.bf16.msra.mxu0 %v2329
        %2342 = vmatmul.bf16.gmra.mxu0 %v2332
        %v2343 = vpop.f32.mrf.mxu0
        %v2344 = vadd.f32 0.0, %v2343
        %v2345 = vpop.f32.mrf.mxu0
        %2346 = vdwg.mxu0
        %v2347 = vunpack.c.l.b16 %v1698
        %v2348 = vunpack.c.l.b16 %v1700
        %v2349 = vpack.c.b16 %v2348, %v2347
        %v2352 = vsel %vm2114, %v2293, 0
        %2354 = vmatpush.bf16.msra.mxu0 0
        %2355 = vmatpush.bf16.msra.mxu0 0
        %2356 = vmatpush.bf16.msra.mxu0 0
        %2357 = vmatpush.bf16.msra.mxu0 0
        %2358 = vmatpush.bf16.msra.mxu0 0
        %2359 = vmatpush.bf16.msra.mxu0 0
        %2360 = vmatpush.bf16.msra.mxu0 0
        %2361 = vmatpush.bf16.msra.mxu0 %v2349
        %2362 = vmatmul.bf16.gmra.mxu0 %v2352
        %v2363 = vpop.f32.mrf.mxu0
        %v2364 = vadd.f32 0.0, %v2363
        %v2365 = vpop.f32.mrf.mxu0
        %2366 = vdwg.mxu0
        %v2367 = vunpack.c.l.b16 %v1702
        %v2368 = vunpack.c.l.b16 %v1704
        %v2369 = vpack.c.b16 %v2368, %v2367
        %v2372 = vsel %vm2114, %v2294, 0
        %2374 = vmatpush.bf16.msra.mxu0 0
        %2375 = vmatpush.bf16.msra.mxu0 0
        %2376 = vmatpush.bf16.msra.mxu0 0
        %2377 = vmatpush.bf16.msra.mxu0 0
        %2378 = vmatpush.bf16.msra.mxu0 0
        %2379 = vmatpush.bf16.msra.mxu0 0
        %2380 = vmatpush.bf16.msra.mxu0 0
        %2381 = vmatpush.bf16.msra.mxu0 %v2369
        %2382 = vmatmul.bf16.gmra.mxu0 %v2372
        %v2383 = vpop.f32.mrf.mxu0
        %v2384 = vadd.f32 0.0, %v2383
        %v2385 = vpop.f32.mrf.mxu0
        %2386 = vdwg.mxu0
        %v2387 = vunpack.c.l.b16 %v1706
        %v2388 = vunpack.c.l.b16 %v1708
        %v2389 = vpack.c.b16 %v2388, %v2387
        %v2392 = vsel %vm2114, %v2295, 0
        %2394 = vmatpush.bf16.msra.mxu0 0
        %2395 = vmatpush.bf16.msra.mxu0 0
        %2396 = vmatpush.bf16.msra.mxu0 0
        %2397 = vmatpush.bf16.msra.mxu0 0
        %2398 = vmatpush.bf16.msra.mxu0 0
        %2399 = vmatpush.bf16.msra.mxu0 0
        %2400 = vmatpush.bf16.msra.mxu0 0
        %2401 = vmatpush.bf16.msra.mxu0 %v2389
        %2402 = vmatmul.bf16.gmra.mxu0 %v2392
        %v2403 = vpop.f32.mrf.mxu0
        %v2404 = vadd.f32 0.0, %v2403
        %v2405 = vpop.f32.mrf.mxu0
        %2406 = vdwg.mxu0
        %v2407 = vunpack.c.l.b16 %v1710
        %v2408 = vunpack.c.l.b16 %v1712
        %v2409 = vpack.c.b16 %v2408, %v2407
        %v2412 = vsel %vm2114, %v2296, 0
        %2414 = vmatpush.bf16.msra.mxu0 0
        %2415 = vmatpush.bf16.msra.mxu0 0
        %2416 = vmatpush.bf16.msra.mxu0 0
        %2417 = vmatpush.bf16.msra.mxu0 0
        %2418 = vmatpush.bf16.msra.mxu0 0
        %2419 = vmatpush.bf16.msra.mxu0 0
        %2420 = vmatpush.bf16.msra.mxu0 0
        %2421 = vmatpush.bf16.msra.mxu0 %v2409
        %2422 = vmatmul.bf16.gmra.mxu0 %v2412
        %v2423 = vpop.f32.mrf.mxu0
        %v2424 = vadd.f32 0.0, %v2423
        %v2425 = vpop.f32.mrf.mxu0
        %2426 = vdwg.mxu0
        %v2427 = vunpack.c.l.b16 %v1714
        %v2428 = vunpack.c.l.b16 %v1716
        %v2429 = vpack.c.b16 %v2428, %v2427
        %v2432 = vsel %vm2114, %v2297, 0
        %2434 = vmatpush.bf16.msra.mxu0 0
        %2435 = vmatpush.bf16.msra.mxu0 0
        %2436 = vmatpush.bf16.msra.mxu0 0
        %2437 = vmatpush.bf16.msra.mxu0 0
        %2438 = vmatpush.bf16.msra.mxu0 0
        %2439 = vmatpush.bf16.msra.mxu0 0
        %2440 = vmatpush.bf16.msra.mxu0 0
        %2441 = vmatpush.bf16.msra.mxu0 %v2429
        %2442 = vmatmul.bf16.gmra.mxu0 %v2432
        %v2443 = vpop.f32.mrf.mxu0
        %v2444 = vadd.f32 0.0, %v2443
        %v2445 = vpop.f32.mrf.mxu0
        %2446 = vdwg.mxu0
        %v2447 = vunpack.c.l.b16 %v1718
        %v2448 = vunpack.c.l.b16 %v1720
        %v2449 = vpack.c.b16 %v2448, %v2447
        %v2452 = vsel %vm2114, %v2298, 0
        %2454 = vmatpush.bf16.msra.mxu0 0
        %2455 = vmatpush.bf16.msra.mxu0 0
        %2456 = vmatpush.bf16.msra.mxu0 0
        %2457 = vmatpush.bf16.msra.mxu0 0
        %2458 = vmatpush.bf16.msra.mxu0 0
        %2459 = vmatpush.bf16.msra.mxu0 0
        %2460 = vmatpush.bf16.msra.mxu0 0
        %2461 = vmatpush.bf16.msra.mxu0 %v2449
        %2462 = vmatmul.bf16.gmra.mxu0 %v2452
        %v2463 = vpop.f32.mrf.mxu0
        %v2464 = vadd.f32 0.0, %v2463
        %v2465 = vpop.f32.mrf.mxu0
        %2466 = vdwg.mxu0
        %v2467 = vunpack.c.l.b16 %v1721
        %v2468 = vunpack.c.l.b16 %v1722
        %v2469 = vpack.c.b16 %v2468, %v2467
        %v2472 = vsel %vm2114, %v2299, 0
        %2474 = vmatpush.bf16.msra.mxu0 0
        %2475 = vmatpush.bf16.msra.mxu0 0
        %2476 = vmatpush.bf16.msra.mxu0 0
        %2477 = vmatpush.bf16.msra.mxu0 0
        %2478 = vmatpush.bf16.msra.mxu0 0
        %2479 = vmatpush.bf16.msra.mxu0 0
        %2480 = vmatpush.bf16.msra.mxu0 0
        %2481 = vmatpush.bf16.msra.mxu0 %v2469
        %2482 = vmatmul.bf16.gmra.mxu0 %v2472
        %v2483 = vpop.f32.mrf.mxu0
        %v2484 = vadd.f32 0.0, %v2483
        %v2485 = vpop.f32.mrf.mxu0
        %2486 = vdwg.mxu0
        %v2487 = vunpack.c.l.b16 %v1723
        %v2488 = vunpack.c.l.b16 %v1724
        %v2489 = vpack.c.b16 %v2488, %v2487
        %v2492 = vsel %vm2114, %v2300, 0
        %2494 = vmatpush.bf16.msra.mxu0 0
        %2495 = vmatpush.bf16.msra.mxu0 0
        %2496 = vmatpush.bf16.msra.mxu0 0
        %2497 = vmatpush.bf16.msra.mxu0 0
        %2498 = vmatpush.bf16.msra.mxu0 0
        %2499 = vmatpush.bf16.msra.mxu0 0
        %2500 = vmatpush.bf16.msra.mxu0 0
        %2501 = vmatpush.bf16.msra.mxu0 %v2489
        %2502 = vmatmul.bf16.gmra.mxu0 %v2492
        %v2503 = vpop.f32.mrf.mxu0
        %v2504 = vadd.f32 0.0, %v2503
        %v2505 = vpop.f32.mrf.mxu0
        %2506 = vdwg.mxu0
        %v2507 = vunpack.c.l.b16 %v1725
        %v2508 = vunpack.c.l.b16 %v1726
        %v2509 = vpack.c.b16 %v2508, %v2507
        %v2512 = vsel %vm2114, %v2301, 0
        %2514 = vmatpush.bf16.msra.mxu0 0
        %2515 = vmatpush.bf16.msra.mxu0 0
        %2516 = vmatpush.bf16.msra.mxu0 0
        %2517 = vmatpush.bf16.msra.mxu0 0
        %2518 = vmatpush.bf16.msra.mxu0 0
        %2519 = vmatpush.bf16.msra.mxu0 0
        %2520 = vmatpush.bf16.msra.mxu0 0
        %2521 = vmatpush.bf16.msra.mxu0 %v2509
        %2522 = vmatmul.bf16.gmra.mxu0 %v2512
        %v2523 = vpop.f32.mrf.mxu0
        %v2524 = vadd.f32 0.0, %v2523
        %v2525 = vpop.f32.mrf.mxu0
        %2526 = vdwg.mxu0
        %v2527 = vunpack.c.l.b16 %v1727
        %v2528 = vunpack.c.l.b16 %v1728
        %v2529 = vpack.c.b16 %v2528, %v2527
        %v2532 = vsel %vm2114, %v2302, 0
        %2534 = vmatpush.bf16.msra.mxu0 0
        %2535 = vmatpush.bf16.msra.mxu0 0
        %2536 = vmatpush.bf16.msra.mxu0 0
        %2537 = vmatpush.bf16.msra.mxu0 0
        %2538 = vmatpush.bf16.msra.mxu0 0
        %2539 = vmatpush.bf16.msra.mxu0 0
        %2540 = vmatpush.bf16.msra.mxu0 0
        %2541 = vmatpush.bf16.msra.mxu0 %v2529
        %2542 = vmatmul.bf16.gmra.mxu0 %v2532
        %v2543 = vpop.f32.mrf.mxu0
        %v2544 = vadd.f32 0.0, %v2543
        %v2545 = vpop.f32.mrf.mxu0
        %2546 = vdwg.mxu0
        %v2547 = vunpack.c.l.b16 %v1729
        %v2548 = vunpack.c.l.b16 %v1730
        %v2549 = vpack.c.b16 %v2548, %v2547
        %v2552 = vsel %vm2114, %v2303, 0
        %2554 = vmatpush.bf16.msra.mxu0 0
        %2555 = vmatpush.bf16.msra.mxu0 0
        %2556 = vmatpush.bf16.msra.mxu0 0
        %2557 = vmatpush.bf16.msra.mxu0 0
        %2558 = vmatpush.bf16.msra.mxu0 0
        %2559 = vmatpush.bf16.msra.mxu0 0
        %2560 = vmatpush.bf16.msra.mxu0 0
        %2561 = vmatpush.bf16.msra.mxu0 %v2549
        %2562 = vmatmul.bf16.gmra.mxu0 %v2552
        %v2563 = vpop.f32.mrf.mxu0
        %v2564 = vadd.f32 0.0, %v2563
        %v2565 = vpop.f32.mrf.mxu0
        %2566 = vdwg.mxu0
        %v2567 = vunpack.c.l.b16 %v1731
        %v2568 = vunpack.c.l.b16 %v1732
        %v2569 = vpack.c.b16 %v2568, %v2567
        %v2572 = vsel %vm2114, %v2304, 0
        %2574 = vmatpush.bf16.msra.mxu0 0
        %2575 = vmatpush.bf16.msra.mxu0 0
        %2576 = vmatpush.bf16.msra.mxu0 0
        %2577 = vmatpush.bf16.msra.mxu0 0
        %2578 = vmatpush.bf16.msra.mxu0 0
        %2579 = vmatpush.bf16.msra.mxu0 0
        %2580 = vmatpush.bf16.msra.mxu0 0
        %2581 = vmatpush.bf16.msra.mxu0 %v2569
        %2582 = vmatmul.bf16.gmra.mxu0 %v2572
        %v2583 = vpop.f32.mrf.mxu0
        %v2584 = vadd.f32 0.0, %v2583
        %v2585 = vpop.f32.mrf.mxu0
        %2586 = vdwg.mxu0
        %v2587 = vunpack.c.l.b16 %v1733
        %v2588 = vunpack.c.l.b16 %v1734
        %v2589 = vpack.c.b16 %v2588, %v2587
        %v2592 = vsel %vm2114, %v2305, 0
        %2594 = vmatpush.bf16.msra.mxu0 0
        %2595 = vmatpush.bf16.msra.mxu0 0
        %2596 = vmatpush.bf16.msra.mxu0 0
        %2597 = vmatpush.bf16.msra.mxu0 0
        %2598 = vmatpush.bf16.msra.mxu0 0
        %2599 = vmatpush.bf16.msra.mxu0 0
        %2600 = vmatpush.bf16.msra.mxu0 0
        %2601 = vmatpush.bf16.msra.mxu0 %v2589
        %2602 = vmatmul.bf16.gmra.mxu0 %v2592
        %v2603 = vpop.f32.mrf.mxu0
        %v2604 = vadd.f32 0.0, %v2603
        %v2605 = vpop.f32.mrf.mxu0
        %2606 = vdwg.mxu0
        %v2607 = vunpack.c.l.b16 %v1735
        %v2608 = vunpack.c.l.b16 %v1736
        %v2609 = vpack.c.b16 %v2608, %v2607
        %v2612 = vsel %vm2114, %v2306, 0
        %2614 = vmatpush.bf16.msra.mxu0 0
        %2615 = vmatpush.bf16.msra.mxu0 0
        %2616 = vmatpush.bf16.msra.mxu0 0
        %2617 = vmatpush.bf16.msra.mxu0 0
        %2618 = vmatpush.bf16.msra.mxu0 0
        %2619 = vmatpush.bf16.msra.mxu0 0
        %2620 = vmatpush.bf16.msra.mxu0 0
        %2621 = vmatpush.bf16.msra.mxu0 %v2609
        %2622 = vmatmul.bf16.gmra.mxu0 %v2612
        %v2623 = vpop.f32.mrf.mxu0
        %v2624 = vadd.f32 0.0, %v2623
        %v2625 = vpop.f32.mrf.mxu0
        %2626 = vdwg.mxu0
        %2629 = vrot.lane.b32.xlu0 %v2364, 32
        %v2630 = vpop.permute.xlu0 %2629
        %2631 = vrot.lane.b32.xlu0 %v2384, 32
        %v2632 = vpop.permute.xlu0 %2631
        %2637 = vrot.lane.b32.xlu0 %v2404, 64
        %v2638 = vpop.permute.xlu0 %2637
        %2639 = vrot.lane.b32.xlu0 %v2424, 64
        %v2640 = vpop.permute.xlu0 %2639
        %2645 = vrot.lane.b32.xlu0 %v2444, 96
        %v2646 = vpop.permute.xlu0 %2645
        %2647 = vrot.lane.b32.xlu0 %v2464, 96
        %v2648 = vpop.permute.xlu0 %2647
        %2653 = vrot.lane.b32.xlu0 %v2524, 32
        %v2654 = vpop.permute.xlu0 %2653
        %2655 = vrot.lane.b32.xlu0 %v2544, 32
        %v2656 = vpop.permute.xlu0 %2655
        %2661 = vrot.lane.b32.xlu0 %v2564, 64
        %v2662 = vpop.permute.xlu0 %2661
        %2663 = vrot.lane.b32.xlu0 %v2584, 64
        %v2664 = vpop.permute.xlu0 %2663
        %2669 = vrot.lane.b32.xlu0 %v2604, 96
        %v2670 = vpop.permute.xlu0 %2669
        %2671 = vrot.lane.b32.xlu0 %v2624, 96
        %v2672 = vpop.permute.xlu0 %2671
        %v2675 = vsel %vm1740, %v2324, %v2630
        %v2676 = vsel %vm1740, %v2344, %v2632
        %vm2677 = vcmask 523264
        %v2678 = vsel %vm2677, %v2675, %v2638
        %v2679 = vsel %vm2677, %v2676, %v2640
        %vm2680 = vcmask 785408
        %v2681 = vsel %vm2680, %v2678, %v2646
        %v2682 = vsel %vm2680, %v2679, %v2648
        %v2683 = vsel %vm1740, %v2484, %v2654
        %v2684 = vsel %vm1740, %v2504, %v2656
        %v2685 = vsel %vm2677, %v2683, %v2662
        %v2686 = vsel %vm2677, %v2684, %v2664
        %v2687 = vsel %vm2680, %v2685, %v2670
        %v2688 = vsel %vm2680, %v2686, %v2672
        %v2689 = vpack.c.bf16 %v2682, %v2681
        %v2690 = vpack.c.bf16 %v2688, %v2687
        %v2691 = vld [vmem:[#allocation14] sm:$0xff]
        %v2692 = vld [vmem:[#allocation14 + $0x8] sm:$0xff]
        %v2693 = vld [vmem:[#allocation14 + $0x10] sm:$0xff]
        %v2694 = vld [vmem:[#allocation14 + $0x18] sm:$0xff]
        %v2695 = vld [vmem:[#allocation14 + $0x20] sm:$0xff]
        %v2696 = vld [vmem:[#allocation14 + $0x28] sm:$0xff]
        %v2697 = vld [vmem:[#allocation14 + $0x30] sm:$0xff]
        %v2698 = vld [vmem:[#allocation14 + $0x38] sm:$0xff]
        %v2699 = vld [vmem:[#allocation14 + $0x40] sm:$0xff]
        %v2700 = vld [vmem:[#allocation14 + $0x48] sm:$0xff]
        %v2701 = vld [vmem:[#allocation14 + $0x50] sm:$0xff]
        %v2702 = vld [vmem:[#allocation14 + $0x58] sm:$0xff]
        %v2703 = vld [vmem:[#allocation14 + $0x60] sm:$0xff]
        %v2704 = vld [vmem:[#allocation14 + $0x68] sm:$0xff]
        %v2705 = vld [vmem:[#allocation14 + $0x70] sm:$0xff]
        %v2706 = vld [vmem:[#allocation14 + $0x78] sm:$0xff]
        %v2707 = vld [vmem:[#allocation14 + $0x80] sm:$0xff]
        %v2708 = vld [vmem:[#allocation14 + $0x88] sm:$0xff]
        %v2709 = vld [vmem:[#allocation14 + $0x90] sm:$0xff]
        %v2710 = vld [vmem:[#allocation14 + $0x98] sm:$0xff]
        %v2711 = vld [vmem:[#allocation14 + $0xa0] sm:$0xff]
        %v2712 = vld [vmem:[#allocation14 + $0xa8] sm:$0xff]
        %v2713 = vld [vmem:[#allocation14 + $0xb0] sm:$0xff]
        %v2714 = vld [vmem:[#allocation14 + $0xb8] sm:$0xff]
        %v2715 = vld [vmem:[#allocation14 + $0xc0] sm:$0xff]
        %v2716 = vld [vmem:[#allocation14 + $0xc8] sm:$0xff]
        %v2717 = vld [vmem:[#allocation14 + $0xd0] sm:$0xff]
        %v2718 = vld [vmem:[#allocation14 + $0xd8] sm:$0xff]
        %v2719 = vld [vmem:[#allocation14 + $0xe0] sm:$0xff]
        %v2720 = vld [vmem:[#allocation14 + $0xe8] sm:$0xff]
        %v2721 = vld [vmem:[#allocation14 + $0xf0] sm:$0xff]
        %v2722 = vld [vmem:[#allocation14 + $0xf8] sm:$0xff]
        %v2723 = vld [vmem:[%s11] sm:$0x3]
        %v2725 = vperm.slane %v2723, 0
        %v2726 = vperm.slane %v2723, 1
        %v2761 = vunpack.c.l.b16 %v2691
        %v2762 = vunpack.c.h.b16 %v2691
        %v2763 = vunpack.c.l.b16 %v2692
        %v2764 = vunpack.c.h.b16 %v2692
        %v2765 = vunpack.c.l.b16 %v2693
        %v2766 = vunpack.c.h.b16 %v2693
        %v2767 = vunpack.c.l.b16 %v2694
        %v2768 = vunpack.c.h.b16 %v2694
        %v2769 = vunpack.c.l.b16 %v2695
        %v2770 = vunpack.c.h.b16 %v2695
        %v2771 = vunpack.c.l.b16 %v2696
        %v2772 = vunpack.c.h.b16 %v2696
        %v2773 = vunpack.c.l.b16 %v2697
        %v2774 = vunpack.c.h.b16 %v2697
        %v2775 = vunpack.c.l.b16 %v2698
        %v2776 = vunpack.c.h.b16 %v2698
        %v2777 = vunpack.c.l.b16 %v2699
        %v2778 = vunpack.c.h.b16 %v2699
        %v2779 = vunpack.c.l.b16 %v2700
        %v2780 = vunpack.c.h.b16 %v2700
        %v2781 = vunpack.c.l.b16 %v2701
        %v2782 = vunpack.c.h.b16 %v2701
        %v2783 = vunpack.c.l.b16 %v2702
        %v2784 = vunpack.c.h.b16 %v2702
        %v2785 = vunpack.c.l.b16 %v2703
        %v2786 = vunpack.c.h.b16 %v2703
        %v2787 = vunpack.c.l.b16 %v2704
        %v2788 = vunpack.c.h.b16 %v2704
        %v2789 = vunpack.c.l.b16 %v2705
        %v2790 = vunpack.c.h.b16 %v2705
        %v2791 = vunpack.c.l.b16 %v2706
        %v2792 = vunpack.c.h.b16 %v2706
        %v2793 = vunpack.c.l.b16 %v2707
        %v2794 = vunpack.c.h.b16 %v2707
        %v2795 = vunpack.c.l.b16 %v2708
        %v2796 = vunpack.c.h.b16 %v2708
        %v2797 = vunpack.c.l.b16 %v2709
        %v2798 = vunpack.c.h.b16 %v2709
        %v2799 = vunpack.c.l.b16 %v2710
        %v2800 = vunpack.c.h.b16 %v2710
        %v2801 = vunpack.c.l.b16 %v2711
        %v2802 = vunpack.c.h.b16 %v2711
        %v2803 = vunpack.c.l.b16 %v2712
        %v2804 = vunpack.c.h.b16 %v2712
        %v2805 = vunpack.c.l.b16 %v2713
        %v2806 = vunpack.c.h.b16 %v2713
        %v2807 = vunpack.c.l.b16 %v2714
        %v2808 = vunpack.c.h.b16 %v2714
        %v2809 = vunpack.c.l.b16 %v2715
        %v2810 = vunpack.c.h.b16 %v2715
        %v2811 = vunpack.c.l.b16 %v2716
        %v2812 = vunpack.c.h.b16 %v2716
        %v2813 = vunpack.c.l.b16 %v2717
        %v2814 = vunpack.c.h.b16 %v2717
        %v2815 = vunpack.c.l.b16 %v2718
        %v2816 = vunpack.c.h.b16 %v2718
        %v2817 = vunpack.c.l.b16 %v2719
        %v2818 = vunpack.c.h.b16 %v2719
        %v2819 = vunpack.c.l.b16 %v2720
        %v2820 = vunpack.c.h.b16 %v2720
        %v2821 = vunpack.c.l.b16 %v2721
        %v2822 = vunpack.c.h.b16 %v2721
        %v2823 = vunpack.c.l.b16 %v2722
        %v2824 = vunpack.c.h.b16 %v2722
        %v2825 = vpack.c.b16 %v2763, %v2761
        %v2826 = vpack.c.b16 %v2764, %v2762
        %v2827 = vpack.c.b16 %v2767, %v2765
        %v2828 = vpack.c.b16 %v2768, %v2766
        %v2829 = vpack.c.b16 %v2771, %v2769
        %v2830 = vpack.c.b16 %v2772, %v2770
        %v2831 = vpack.c.b16 %v2775, %v2773
        %v2832 = vpack.c.b16 %v2776, %v2774
        %v2833 = vpack.c.b16 %v2779, %v2777
        %v2834 = vpack.c.b16 %v2780, %v2778
        %v2835 = vpack.c.b16 %v2783, %v2781
        %v2836 = vpack.c.b16 %v2784, %v2782
        %v2837 = vpack.c.b16 %v2787, %v2785
        %v2838 = vpack.c.b16 %v2788, %v2786
        %v2839 = vpack.c.b16 %v2791, %v2789
        %v2840 = vpack.c.b16 %v2792, %v2790
        %v2841 = vpack.c.b16 %v2795, %v2793
        %v2842 = vpack.c.b16 %v2796, %v2794
        %v2843 = vpack.c.b16 %v2799, %v2797
        %v2844 = vpack.c.b16 %v2800, %v2798
        %v2845 = vpack.c.b16 %v2803, %v2801
        %v2846 = vpack.c.b16 %v2804, %v2802
        %v2847 = vpack.c.b16 %v2807, %v2805
        %v2848 = vpack.c.b16 %v2808, %v2806
        %v2849 = vpack.c.b16 %v2811, %v2809
        %v2850 = vpack.c.b16 %v2812, %v2810
        %v2851 = vpack.c.b16 %v2815, %v2813
        %v2852 = vpack.c.b16 %v2816, %v2814
        %v2853 = vpack.c.b16 %v2819, %v2817
        %v2854 = vpack.c.b16 %v2820, %v2818
        %v2855 = vpack.c.b16 %v2823, %v2821
        %v2856 = vpack.c.b16 %v2824, %v2822
        %2889 = vmatpush.bf16.msra.mxu0 %v2839
        %2890 = vmatpush.bf16.msra.mxu0 %v2837
        %2891 = vmatpush.bf16.msra.mxu0 %v2835
        %2892 = vmatpush.bf16.msra.mxu0 %v2833
        %2893 = vmatpush.bf16.msra.mxu0 %v2831
        %2894 = vmatpush.bf16.msra.mxu0 %v2829
        %2895 = vmatpush.bf16.msra.mxu0 %v2827
        %2896 = vmatpush.bf16.msra.mxu0 %v2825
        %2897 = vmatmul.bf16.gmra.mxu0 %v2689
        %v2898 = vpop.f32.mrf.mxu0
        %v2899 = vadd.f32 %v2725, %v2898
        %v2900 = vpop.f32.mrf.mxu0
        %v2901 = vadd.f32 %v2725, %v2900
        %2902 = vdwg.mxu0
        %2903 = vmatpush.bf16.msra.mxu0 %v2855
        %2904 = vmatpush.bf16.msra.mxu0 %v2853
        %2905 = vmatpush.bf16.msra.mxu0 %v2851
        %2906 = vmatpush.bf16.msra.mxu0 %v2849
        %2907 = vmatpush.bf16.msra.mxu0 %v2847
        %2908 = vmatpush.bf16.msra.mxu0 %v2845
        %2909 = vmatpush.bf16.msra.mxu0 %v2843
        %2910 = vmatpush.bf16.msra.mxu0 %v2841
        %2911 = vmatmul.bf16.gmra.mxu0 %v2690
        %v2912 = vpop.f32.mrf.mxu0
        %v2913 = vadd.f32 %v2899, %v2912
        %v2914 = vpop.f32.mrf.mxu0
        %v2915 = vadd.f32 %v2901, %v2914
        %2916 = vdwg.mxu0
        %2917 = vmatpush.bf16.msra.mxu0 %v2840
        %2918 = vmatpush.bf16.msra.mxu0 %v2838
        %2919 = vmatpush.bf16.msra.mxu0 %v2836
        %2920 = vmatpush.bf16.msra.mxu0 %v2834
        %2921 = vmatpush.bf16.msra.mxu0 %v2832
        %2922 = vmatpush.bf16.msra.mxu0 %v2830
        %2923 = vmatpush.bf16.msra.mxu0 %v2828
        %2924 = vmatpush.bf16.msra.mxu0 %v2826
        %2925 = vmatmul.bf16.gmra.mxu0 %v2689
        %v2926 = vpop.f32.mrf.mxu0
        %v2927 = vadd.f32 %v2726, %v2926
        %v2928 = vpop.f32.mrf.mxu0
        %v2929 = vadd.f32 %v2726, %v2928
        %2930 = vdwg.mxu0
        %2931 = vmatpush.bf16.msra.mxu0 %v2856
        %2932 = vmatpush.bf16.msra.mxu0 %v2854
        %2933 = vmatpush.bf16.msra.mxu0 %v2852
        %2934 = vmatpush.bf16.msra.mxu0 %v2850
        %2935 = vmatpush.bf16.msra.mxu0 %v2848
        %2936 = vmatpush.bf16.msra.mxu0 %v2846
        %2937 = vmatpush.bf16.msra.mxu0 %v2844
        %2938 = vmatpush.bf16.msra.mxu0 %v2842
        %2939 = vmatmul.bf16.gmra.mxu0 %v2690
        %v2940 = vpop.f32.mrf.mxu0
        %v2941 = vadd.f32 %v2927, %v2940
        %v2942 = vpop.f32.mrf.mxu0
        %v2943 = vadd.f32 %v2929, %v2942
        %2944 = vdwg.mxu0
        %v2945 = vpack.c.bf16 %v2915, %v2913
        %v2946 = vpack.c.bf16 %v2943, %v2941
        %v2947 = vld [vmem:[#allocation16] sm:$0xff]
        %v2948 = vld [vmem:[#allocation16 + $0x8] sm:$0xff]
        %v2949 = vld [vmem:[#allocation16 + $0x10] sm:$0xff]
        %v2950 = vld [vmem:[#allocation16 + $0x18] sm:$0xff]
        %v2951 = vld [vmem:[#allocation16 + $0x20] sm:$0xff]
        %v2952 = vld [vmem:[#allocation16 + $0x28] sm:$0xff]
        %v2953 = vld [vmem:[#allocation16 + $0x30] sm:$0xff]
        %v2954 = vld [vmem:[#allocation16 + $0x38] sm:$0xff]
        %v2955 = vld [vmem:[#allocation16 + $0x40] sm:$0xff]
        %v2956 = vld [vmem:[#allocation16 + $0x48] sm:$0xff]
        %v2957 = vld [vmem:[#allocation16 + $0x50] sm:$0xff]
        %v2958 = vld [vmem:[#allocation16 + $0x58] sm:$0xff]
        %v2959 = vld [vmem:[#allocation16 + $0x60] sm:$0xff]
        %v2960 = vld [vmem:[#allocation16 + $0x68] sm:$0xff]
        %v2961 = vld [vmem:[#allocation16 + $0x70] sm:$0xff]
        %v2962 = vld [vmem:[#allocation16 + $0x78] sm:$0xff]
        %v2963 = vld [vmem:[#allocation16 + $0x80] sm:$0xff]
        %v2964 = vld [vmem:[#allocation16 + $0x88] sm:$0xff]
        %v2965 = vld [vmem:[#allocation16 + $0x90] sm:$0xff]
        %v2966 = vld [vmem:[#allocation16 + $0x98] sm:$0xff]
        %v2967 = vld [vmem:[#allocation16 + $0xa0] sm:$0xff]
        %v2968 = vld [vmem:[#allocation16 + $0xa8] sm:$0xff]
        %v2969 = vld [vmem:[#allocation16 + $0xb0] sm:$0xff]
        %v2970 = vld [vmem:[#allocation16 + $0xb8] sm:$0xff]
        %v2971 = vld [vmem:[#allocation16 + $0xc0] sm:$0xff]
        %v2972 = vld [vmem:[#allocation16 + $0xc8] sm:$0xff]
        %v2973 = vld [vmem:[#allocation16 + $0xd0] sm:$0xff]
        %v2974 = vld [vmem:[#allocation16 + $0xd8] sm:$0xff]
        %v2975 = vld [vmem:[#allocation16 + $0xe0] sm:$0xff]
        %v2976 = vld [vmem:[#allocation16 + $0xe8] sm:$0xff]
        %v2977 = vld [vmem:[#allocation16 + $0xf0] sm:$0xff]
        %v2978 = vld [vmem:[#allocation16 + $0xf8] sm:$0xff]
        %v2979 = vld [vmem:[%s13] sm:$0x3]
        %v2981 = vperm.slane %v2979, 0
        %v2982 = vperm.slane %v2979, 1
        %v3017 = vunpack.c.l.b16 %v2947
        %v3018 = vunpack.c.h.b16 %v2947
        %v3019 = vunpack.c.l.b16 %v2948
        %v3020 = vunpack.c.h.b16 %v2948
        %v3021 = vunpack.c.l.b16 %v2949
        %v3022 = vunpack.c.h.b16 %v2949
        %v3023 = vunpack.c.l.b16 %v2950
        %v3024 = vunpack.c.h.b16 %v2950
        %v3025 = vunpack.c.l.b16 %v2951
        %v3026 = vunpack.c.h.b16 %v2951
        %v3027 = vunpack.c.l.b16 %v2952
        %v3028 = vunpack.c.h.b16 %v2952
        %v3029 = vunpack.c.l.b16 %v2953
        %v3030 = vunpack.c.h.b16 %v2953
        %v3031 = vunpack.c.l.b16 %v2954
        %v3032 = vunpack.c.h.b16 %v2954
        %v3033 = vunpack.c.l.b16 %v2955
        %v3034 = vunpack.c.h.b16 %v2955
        %v3035 = vunpack.c.l.b16 %v2956
        %v3036 = vunpack.c.h.b16 %v2956
        %v3037 = vunpack.c.l.b16 %v2957
        %v3038 = vunpack.c.h.b16 %v2957
        %v3039 = vunpack.c.l.b16 %v2958
        %v3040 = vunpack.c.h.b16 %v2958
        %v3041 = vunpack.c.l.b16 %v2959
        %v3042 = vunpack.c.h.b16 %v2959
        %v3043 = vunpack.c.l.b16 %v2960
        %v3044 = vunpack.c.h.b16 %v2960
        %v3045 = vunpack.c.l.b16 %v2961
        %v3046 = vunpack.c.h.b16 %v2961
        %v3047 = vunpack.c.l.b16 %v2962
        %v3048 = vunpack.c.h.b16 %v2962
        %v3049 = vunpack.c.l.b16 %v2963
        %v3050 = vunpack.c.h.b16 %v2963
        %v3051 = vunpack.c.l.b16 %v2964
        %v3052 = vunpack.c.h.b16 %v2964
        %v3053 = vunpack.c.l.b16 %v2965
        %v3054 = vunpack.c.h.b16 %v2965
        %v3055 = vunpack.c.l.b16 %v2966
        %v3056 = vunpack.c.h.b16 %v2966
        %v3057 = vunpack.c.l.b16 %v2967
        %v3058 = vunpack.c.h.b16 %v2967
        %v3059 = vunpack.c.l.b16 %v2968
        %v3060 = vunpack.c.h.b16 %v2968
        %v3061 = vunpack.c.l.b16 %v2969
        %v3062 = vunpack.c.h.b16 %v2969
        %v3063 = vunpack.c.l.b16 %v2970
        %v3064 = vunpack.c.h.b16 %v2970
        %v3065 = vunpack.c.l.b16 %v2971
        %v3066 = vunpack.c.h.b16 %v2971
        %v3067 = vunpack.c.l.b16 %v2972
        %v3068 = vunpack.c.h.b16 %v2972
        %v3069 = vunpack.c.l.b16 %v2973
        %v3070 = vunpack.c.h.b16 %v2973
        %v3071 = vunpack.c.l.b16 %v2974
        %v3072 = vunpack.c.h.b16 %v2974
        %v3073 = vunpack.c.l.b16 %v2975
        %v3074 = vunpack.c.h.b16 %v2975
        %v3075 = vunpack.c.l.b16 %v2976
        %v3076 = vunpack.c.h.b16 %v2976
        %v3077 = vunpack.c.l.b16 %v2977
        %v3078 = vunpack.c.h.b16 %v2977
        %v3079 = vunpack.c.l.b16 %v2978
        %v3080 = vunpack.c.h.b16 %v2978
        %v3081 = vpack.c.b16 %v3019, %v3017
        %v3082 = vpack.c.b16 %v3020, %v3018
        %v3083 = vpack.c.b16 %v3023, %v3021
        %v3084 = vpack.c.b16 %v3024, %v3022
        %v3085 = vpack.c.b16 %v3027, %v3025
        %v3086 = vpack.c.b16 %v3028, %v3026
        %v3087 = vpack.c.b16 %v3031, %v3029
        %v3088 = vpack.c.b16 %v3032, %v3030
        %v3089 = vpack.c.b16 %v3035, %v3033
        %v3090 = vpack.c.b16 %v3036, %v3034
        %v3091 = vpack.c.b16 %v3039, %v3037
        %v3092 = vpack.c.b16 %v3040, %v3038
        %v3093 = vpack.c.b16 %v3043, %v3041
        %v3094 = vpack.c.b16 %v3044, %v3042
        %v3095 = vpack.c.b16 %v3047, %v3045
        %v3096 = vpack.c.b16 %v3048, %v3046
        %v3097 = vpack.c.b16 %v3051, %v3049
        %v3098 = vpack.c.b16 %v3052, %v3050
        %v3099 = vpack.c.b16 %v3055, %v3053
        %v3100 = vpack.c.b16 %v3056, %v3054
        %v3101 = vpack.c.b16 %v3059, %v3057
        %v3102 = vpack.c.b16 %v3060, %v3058
        %v3103 = vpack.c.b16 %v3063, %v3061
        %v3104 = vpack.c.b16 %v3064, %v3062
        %v3105 = vpack.c.b16 %v3067, %v3065
        %v3106 = vpack.c.b16 %v3068, %v3066
        %v3107 = vpack.c.b16 %v3071, %v3069
        %v3108 = vpack.c.b16 %v3072, %v3070
        %v3109 = vpack.c.b16 %v3075, %v3073
        %v3110 = vpack.c.b16 %v3076, %v3074
        %v3111 = vpack.c.b16 %v3079, %v3077
        %v3112 = vpack.c.b16 %v3080, %v3078
        %3145 = vmatpush.bf16.msra.mxu0 %v3095
        %3146 = vmatpush.bf16.msra.mxu0 %v3093
        %3147 = vmatpush.bf16.msra.mxu0 %v3091
        %3148 = vmatpush.bf16.msra.mxu0 %v3089
        %3149 = vmatpush.bf16.msra.mxu0 %v3087
        %3150 = vmatpush.bf16.msra.mxu0 %v3085
        %3151 = vmatpush.bf16.msra.mxu0 %v3083
        %3152 = vmatpush.bf16.msra.mxu0 %v3081
        %3153 = vmatmul.bf16.gmra.mxu0 %v2945
        %v3154 = vpop.f32.mrf.mxu0
        %v3155 = vadd.f32 %v2981, %v3154
        %v3156 = vpop.f32.mrf.mxu0
        %v3157 = vadd.f32 %v2981, %v3156
        %3158 = vdwg.mxu0
        %3159 = vmatpush.bf16.msra.mxu0 %v3111
        %3160 = vmatpush.bf16.msra.mxu0 %v3109
        %3161 = vmatpush.bf16.msra.mxu0 %v3107
        %3162 = vmatpush.bf16.msra.mxu0 %v3105
        %3163 = vmatpush.bf16.msra.mxu0 %v3103
        %3164 = vmatpush.bf16.msra.mxu0 %v3101
        %3165 = vmatpush.bf16.msra.mxu0 %v3099
        %3166 = vmatpush.bf16.msra.mxu0 %v3097
        %3167 = vmatmul.bf16.gmra.mxu0 %v2946
        %v3168 = vpop.f32.mrf.mxu0
        %v3169 = vadd.f32 %v3155, %v3168
        %v3170 = vpop.f32.mrf.mxu0
        %v3171 = vadd.f32 %v3157, %v3170
        %3172 = vdwg.mxu0
        %3173 = vmatpush.bf16.msra.mxu0 %v3096
        %3174 = vmatpush.bf16.msra.mxu0 %v3094
        %3175 = vmatpush.bf16.msra.mxu0 %v3092
        %3176 = vmatpush.bf16.msra.mxu0 %v3090
        %3177 = vmatpush.bf16.msra.mxu0 %v3088
        %3178 = vmatpush.bf16.msra.mxu0 %v3086
        %3179 = vmatpush.bf16.msra.mxu0 %v3084
        %3180 = vmatpush.bf16.msra.mxu0 %v3082
        %3181 = vmatmul.bf16.gmra.mxu0 %v2945
        %v3182 = vpop.f32.mrf.mxu0
        %v3183 = vadd.f32 %v2982, %v3182
        %v3184 = vpop.f32.mrf.mxu0
        %v3185 = vadd.f32 %v2982, %v3184
        %3186 = vdwg.mxu0
        %3187 = vmatpush.bf16.msra.mxu0 %v3112
        %3188 = vmatpush.bf16.msra.mxu0 %v3110
        %3189 = vmatpush.bf16.msra.mxu0 %v3108
        %3190 = vmatpush.bf16.msra.mxu0 %v3106
        %3191 = vmatpush.bf16.msra.mxu0 %v3104
        %3192 = vmatpush.bf16.msra.mxu0 %v3102
        %3193 = vmatpush.bf16.msra.mxu0 %v3100
        %3194 = vmatpush.bf16.msra.mxu0 %v3098
        %3195 = vmatmul.bf16.gmra.mxu0 %v2946
        %v3196 = vpop.f32.mrf.mxu0
        %v3197 = vadd.f32 %v3183, %v3196
        %v3198 = vpop.f32.mrf.mxu0
        %v3199 = vadd.f32 %v3185, %v3198
        %3200 = vdwg.mxu0
        %v3201 = vmin.f32 %v3169, 20.0
        %v3202 = vmin.f32 %v3197, 20.0
        %v3203 = vmin.f32 %v3171, 20.0
        %v3204 = vmin.f32 %v3199, 20.0
        %v3205 = vmul.f32 %v3201, 1.442695
        %v3206 = vpow.pop %v3205
        %v3207 = vmul.f32 %v3202, 1.442695
        %v3208 = vpow.pop %v3207
        %v3209 = vmul.f32 %v3203, 1.442695
        %v3210 = vpow.pop %v3209
        %v3211 = vmul.f32 %v3204, 1.442695
        %v3212 = vpow.pop %v3211
        %v3213 = vadd.f32 %v3206, 2.0
        %v3214 = vadd.f32 %v3208, 2.0
        %v3215 = vadd.f32 %v3210, 2.0
        %v3216 = vadd.f32 %v3212, 2.0
        %v3217 = vmul.f32 %v3206, %v3213
        %v3218 = vmul.f32 %v3208, %v3214
        %v3219 = vmul.f32 %v3210, %v3215
        %v3220 = vmul.f32 %v3212, %v3216
        %vm3221 = vcmp.gt.f32.partialorder %v3169, 20.0
        %vm3222 = vcmp.gt.f32.partialorder %v3197, 20.0
        %vm3223 = vcmp.gt.f32.partialorder %v3171, 20.0
        %vm3224 = vcmp.gt.f32.partialorder %v3199, 20.0
        %v3225 = vmul.f32 %v3169, %v3217
        %v3226 = vmul.f32 %v3197, %v3218
        %v3227 = vmul.f32 %v3171, %v3219
        %v3228 = vmul.f32 %v3199, %v3220
        %v3229 = vadd.f32 %v3217, 2.0
        %v3230 = vadd.f32 %v3218, 2.0
        %v3231 = vadd.f32 %v3219, 2.0
        %v3232 = vadd.f32 %v3220, 2.0
        %v3233 = vrcp.pop %v3229
        %v3234 = vrcp.pop %v3230
        %v3235 = vrcp.pop %v3231
        %v3236 = vrcp.pop %v3232
        %v3237 = vmul.f32 %v3225, %v3233
        %v3238 = vmul.f32 %v3226, %v3234
        %v3239 = vmul.f32 %v3227, %v3235
        %v3240 = vmul.f32 %v3228, %v3236
        %v3241 = vsel %vm3221, %v3169, %v3237
        %v3242 = vsel %vm3222, %v3197, %v3238
        %v3243 = vsel %vm3223, %v3171, %v3239
        %v3244 = vsel %vm3224, %v3199, %v3240
        %v3245 = vld [vmem:[%s14] sm:$0x3]
        %v3247 = vperm.slane %v3245, 0
        %v3248 = vperm.slane %v3245, 1
        %v3251 = vmul.f32 %v3241, %v3247
        %v3252 = vmul.f32 %v3242, %v3248
        %v3253 = vmul.f32 %v3243, %v3247
        %v3254 = vmul.f32 %v3244, %v3248
        %v3255 = vld [vmem:[%s15] sm:$0x3]
        %v3257 = vperm.slane %v3255, 0
        %v3258 = vperm.slane %v3255, 1
        %v3261 = vadd.f32 %v3251, %v3257
        %v3262 = vadd.f32 %v3252, %v3258
        %v3263 = vadd.f32 %v3253, %v3257
        %v3264 = vadd.f32 %v3254, %v3258
        %3265 = vst [vmem:[%s748] sm:$0xff] %v3261
        %3266 = vst [vmem:[%s748 + $0x8] sm:$0xff] %v3262
        %3267 = vst [vmem:[%s748 + $0x10] sm:$0xff] %v3263
        %3268 = vst [vmem:[%s748 + $0x18] sm:$0xff] %v3264
        %s3269 = sand.u32 %s405, 1
        %s3270 = scalar_lea.sflag [#allocation4], %s3269
        %s3271 = sand.u32 %s405, 1
        %s3272 = smul.addr %s3271, 32
        %s3273 = scalar_lea.vmem [#allocation17], %s3272
        // Predicated region
        $region121: #{tpu_custom_call.1} parent=83 // pred_check
          %p3274 = pneg %p415
        $region122: #{tpu_custom_call.1} parent=83 // pred_check_branch
          %3276 = sbr.rel (%p3274) target = $region124
        $region123: #{tpu_custom_call.1} parent=83 // pred_region
          %s3277 = smul.u32 2, %s41
          %3279 = vsyncadd %s3270, 0
          %s3280 = smul.addr %s3277, 2
          %s3281 = smul.addr %s3280, 8
          %s3282 = scalar_lea.hbm %s16, %s3281
          %s3283 = sshll.u32 %s3273, 4
          %s3284 = int_to_ptr.vmem [resolvable:$true] %s3283
          %s3285 = sshll.u32 %s3282, 4
          %s3286 = int_to_ptr.hbm [resolvable:$true] %s3285
          %3291 = dma.vmem_to_hbm [thread:$0]  %s3284, 512, %s3286, %s3270, 256, 256, 16
        $region124: #{tpu_custom_call.1} parent=83 // pred_fallthru
          _
      $region84: #{tpu_custom_call.1} parent=5 // pred_fallthru
        _
      %p3292 = scmp.le.s32.totalorder 2, %s36
      // Predicated region
      $region125: #{tpu_custom_call.1} parent=5 // pred_check
        %p3293 = pneg %p3292
      $region126: #{tpu_custom_call.1} parent=5 // pred_check_branch
        %3295 = sbr.rel (%p3293) target = $region128
      $region127: #{tpu_custom_call.1} parent=5 // pred_region
        %s3296 = ssub.s32 %s36, 2
        // Predicated region
        $region129: #{tpu_custom_call.1} parent=127 // pred_check
          %p3297 = pneg %p421
        $region130: #{tpu_custom_call.1} parent=127 // pred_check_branch
          %3299 = sbr.rel (%p3297) target = $region132
        $region131: #{tpu_custom_call.1} parent=127 // pred_region
          %s3300 = sand.u32 %s406, 1
          %s3301 = scalar_lea.sflag [#allocation4], %s3300
          %s3302 = sand.u32 %s406, 1
          %s3303 = smul.addr %s3302, 32
          %s3304 = scalar_lea.vmem [#allocation17], %s3303
          %3306 = dma.done %s3301, 512
        $region132: #{tpu_custom_call.1} parent=127 // pred_fallthru
          _
      $region128: #{tpu_custom_call.1} parent=5 // pred_fallthru
        _
    $region6: #{tpu_custom_call.1} parent=1 // loop_footer
      %s40 = sadd.s32 1, %s36
    $region7: #{tpu_custom_call.1} parent=1 // loop_footer_branch
      %35 = sbr.rel target = $region3
    $region8: #{tpu_custom_call.1} parent=1 // loop_exit
      _
    %3307 = vsyncpa [#allocation3], 1
    %s3308 = scalar_lea.sflag [#allocation3], 1
    %3309 = vsyncpa %s3308, 1
    %3310 = vsyncpa [#allocation6], 1
    %s3311 = scalar_lea.sflag [#allocation6], 1
    %3312 = vsyncpa %s3311, 1
    %3313 = vsyncpa [#allocation9], 1
    %s3314 = scalar_lea.sflag [#allocation9], 1
    %3315 = vsyncpa %s3314, 1
    %3316 = vsyncpa [#allocation12], 1
    %3317 = vsyncpa [#allocation15], 1
    %3318 = vsyncpa [#allocation4], 1
    %s3319 = scalar_lea.sflag [#allocation4], 1
    %3320 = vsyncpa %s3319, 1

</llo_original>
